<compile_context>
chip_gen: v7x
topology: tpu7x:2x2x1
jax: 0.10.0
libtpu: 0.0.40
codegen_flags: <defaults>
</compile_context>

<pallas_src>
import jax
import jax.numpy as jnp
import numpy as np
from jax.experimental import pallas as pl
from jax.experimental.pallas import tpu as pltpu


def _round_up(x, m):
    return ((x + m - 1) // m) * m


def _hw_params():
    """Best-effort hardware query: (VMEM budget bytes, TensorCores/device, max batch tile)."""
    vmem_cap = 64 * 1024 * 1024               # conservative default (v7x per-core VMEM)
    try:
        cap = getattr(pltpu.get_tpu_info(), "vmem_capacity_bytes", None)
        if cap:
            vmem_cap = int(cap)
    except Exception:
        pass
    n_cores, b_tile_cap = 2, 256              # megacore-style defaults (v4/v5p/v7x)
    try:
        kind = jax.devices()[0].device_kind.lower()
        if any(s in kind for s in ("lite", "v5e", "v6e", "v2", "v3")):
            n_cores = 1                       # single TensorCore per device
        if any(s in kind for s in ("v5 lite", "v5e", "v4", "v2", "v3")):
            b_tile_cap = 128                  # 128x128 MXU: 128-row LHS already matches
    except Exception:
        pass
    budget = int(vmem_cap * 0.70)             # ~45 MiB on v7x, ~90 MiB on v5e/v6e
    return budget, n_cores, b_tile_cap


# ---------------------------------------------------------------------------
# Recurrent Pallas kernel: one LSTM layer, time-chunked, carry in hN/cN outputs.
# ---------------------------------------------------------------------------
def lstm_chunk_kernel(maxlen_ref, gx_ref, whh_ref, len_ref, y_ref, hN_ref, cN_ref):
    """Grid = (batch_tiles, time_chunks).

    maxlen_ref : (n_batch_tiles,) int32 SMEM   per-batch-tile max sequence length
    gx_ref     : (T_CHUNK, B_TILE, 4*H_pad) bf16   x @ W_ih^T + bias (precomputed)
    whh_ref    : (H_pad, 4*H_pad)           bf16   resident recurrent weight
    len_ref    : (B_TILE, 1)                int32  per-sequence lengths
    y_ref      : (T_CHUNK, B_TILE, H_pad)   f32    output chunk
    hN_ref/cN_ref : (B_TILE, H_pad)         f32    final state; also the resident carry
    """
    b = pl.program_id(0)
    tc = pl.program_id(1)
    t_chunk = gx_ref.shape[0]
    H = hN_ref.shape[-1]                      # H_pad (multiple of 128)
    t0 = tc * t_chunk

    @pl.when(tc == 0)
    def _():                                  # state=None -> zero initial state
        hN_ref[...] = jnp.zeros(hN_ref.shape, hN_ref.dtype)
        cN_ref[...] = jnp.zeros(cN_ref.shape, cN_ref.dtype)

    max_len = maxlen_ref[b]

    @pl.when(t0 >= max_len)
    def _():
        # Whole chunk lies past every sequence in this batch tile: outputs are zero
        # (pad_packed default) and (h, c) are unchanged -> skip the serial loop.
        y_ref[...] = jnp.zeros(y_ref.shape, y_ref.dtype)

    @pl.when(t0 < max_len)
    def _():
        lens = len_ref[...]                   # (B_TILE, 1) int32, hoisted
        whh = whh_ref[...]                    # (H_pad, 4*H_pad) bf16, resident

        def step(j, carry):
            h_prev = hN_ref[...]
            c_prev = cN_ref[...]
            # gates_t = gates_x[t] + h_{t-1} @ W_hh^T  (bias already folded into gx).
            gates = gx_ref[j].astype(jnp.float32) + jnp.dot(
                h_prev.astype(jnp.bfloat16), whh,
                preferred_element_type=jnp.float32)

            i_g = jax.nn.sigmoid(gates[:, 0 * H:1 * H])
            f_g = jax.nn.sigmoid(gates[:, 1 * H:2 * H])
            g_g = jnp.tanh(gates[:, 2 * H:3 * H])
            o_g = jax.nn.sigmoid(gates[:, 3 * H:4 * H])

            c_new = f_g * c_prev + i_g * g_g
            h_new = o_g * jnp.tanh(c_new)

            valid = (t0 + j) < lens           # (B_TILE, 1): inside the packed sequence?
            hN_ref[...] = jnp.where(valid, h_new, h_prev)
            cN_ref[...] = jnp.where(valid, c_new, c_prev)
            y_ref[j] = jnp.where(valid, h_new, 0.0)
            return carry

        jax.lax.fori_loop(0, t_chunk, step, 0, unroll=True)


_SINGLE_BUFFER_WEIGHTS = [True]   # cached probe: does pipeline_mode=pl.Buffered(1) lower?


def lstm_recurrence(gx, whh_t, lens2d, tile_maxlen, t_chunk, b_tile, vmem_limit_bytes):
    """gx: (T_pad, B_pad, 4*H_pad) bf16.  Returns y (T_pad,B_pad,H_pad) f32, h_n, c_n."""
    T_pad, B_pad, G = gx.shape
    H_pad = G // 4
    n_bt = B_pad // b_tile
    n_tc = T_pad // t_chunk

    def build(single_buffer_weight):
        whh_kw = {"pipeline_mode": pl.Buffered(1)} if single_buffer_weight else {}
        return pl.pallas_call(
            lstm_chunk_kernel,
            out_shape=(
                jax.ShapeDtypeStruct((T_pad, B_pad, H_pad), jnp.float32),
                jax.ShapeDtypeStruct((B_pad, H_pad), jnp.float32),
                jax.ShapeDtypeStruct((B_pad, H_pad), jnp.float32),
            ),
            grid_spec=pltpu.PrefetchScalarGridSpec(
                num_scalar_prefetch=1,
                grid=(n_bt, n_tc),
                in_specs=[
                    pl.BlockSpec((t_chunk, b_tile, G), lambda b, t, ml: (t, b, 0)),
                    pl.BlockSpec((H_pad, G), lambda b, t, ml: (0, 0), **whh_kw),
                    pl.BlockSpec((b_tile, 1), lambda b, t, ml: (b, 0)),
                ],
                out_specs=(
                    pl.BlockSpec((t_chunk, b_tile, H_pad), lambda b, t, ml: (t, b, 0)),
                    pl.BlockSpec((b_tile, H_pad), lambda b, t, ml: (b, 0)),
                    pl.BlockSpec((b_tile, H_pad), lambda b, t, ml: (b, 0)),
                ),
            ),
            compiler_params=pltpu.CompilerParams(
                dimension_semantics=("parallel", "arbitrary"),
                vmem_limit_bytes=int(vmem_limit_bytes),
            ),
        )

    if _SINGLE_BUFFER_WEIGHTS[0]:
        try:
            out = build(True)(tile_maxlen, gx, whh_t, lens2d)
            jax.block_until_ready(out)
            return out
        except Exception:
            _SINGLE_BUFFER_WEIGHTS[0] = False   # fall back to default double buffering
    return build(False)(tile_maxlen, gx, whh_t, lens2d)


# ---------------------------------------------------------------------------
# Weight prep: transpose to (in, 4H), pad each gate block H -> H_pad with zeros
# (padded hidden units stay identically 0), store W_hh^T in bf16.
# ---------------------------------------------------------------------------
def _prepare_layer(w_ih, w_hh, b_ih, b_hh, H, H_pad, in_real, in_pad):
    def pad_gates_T(w, n_real, n_pad):
        w_t = jnp.transpose(w).reshape(n_real, 4, H)     # gate order i, f, g, o
        w_t = jnp.pad(w_t, ((0, n_pad - n_real), (0, 0), (0, H_pad - H)))
        return w_t.reshape(n_pad, 4 * H_pad)

    wih_t = pad_gates_T(w_ih, in_real, in_pad)                     # f32 (XLA projection)
    whh_t = pad_gates_T(w_hh, H, H_pad).astype(jnp.bfloat16)       # bf16 resident weight
    bias = (b_ih + b_hh).reshape(4, H)
    bias = jnp.pad(bias, ((0, 0), (0, H_pad - H))).reshape(1, 1, 4 * H_pad)
    return wih_t, whh_t, bias


class CustomLSTMPallas:
    """Pallas equivalent of CustomLSTM.forward (eval mode, unidirectional)."""

    def __init__(self, input_size, hidden_size, num_layers, dropout,
                 bidirectional=False, key=jax.random.PRNGKey(0)):
        assert not bidirectional, "TODO(synk): bidirectional path not implemented"
        self.num_layers = num_layers
        self.hidden_size = hidden_size
        self.hidden_pad = _round_up(hidden_size, 128)    # lane-align H and gate slices
        k = 1.0 / np.sqrt(hidden_size)
        H, H_pad = hidden_size, self.hidden_pad
        self.params = []      # raw torch-layout params (for the reference)
        self.prepared = []    # padded / transposed params (for the kernel)
        for layer in range(num_layers):
            in_sz = input_size if layer == 0 else hidden_size
            in_pad = input_size if layer == 0 else H_pad
            key, k1, k2, k3, k4 = jax.random.split(key, 5)
            w_ih = jax.random.uniform(k1, (4 * H, in_sz), jnp.float32, -k, k)
            w_hh = jax.random.uniform(k2, (4 * H, H), jnp.float32, -k, k)
            b_ih = jax.random.uniform(k3, (4 * H,), jnp.float32, -k, k)
            b_hh = jax.random.uniform(k4, (4 * H,), jnp.float32, -k, k)
            self.params.append((w_ih, w_hh, b_ih, b_hh))
            self.prepared.append(_prepare_layer(w_ih, w_hh, b_ih, b_hh,
                                                H, H_pad, in_sz, in_pad))

    def __call__(self, inputs, input_lengths, state=None):
        # inputs: (B, T, I) float32, batch_first like the PyTorch module.
        assert state is None, "TODO(synk): non-None initial state not wired up"
        B, T, _ = inputs.shape
        H, H_pad = self.hidden_size, self.hidden_pad
        G = 4 * H_pad
        budget, n_cores, b_tile_cap = _hw_params()

        # ---- batch tiling: sublane-aligned, >=2 tiles when a 2nd TensorCore exists.
        b_sub = _round_up(B, 8)
        n_bt = pl.cdiv(b_sub, b_tile_cap)
        if n_cores > 1 and b_sub >= 16:
            n_bt = max(n_bt, n_cores)
        b_tile = _round_up(pl.cdiv(b_sub, n_bt), 8)
        B_pad = n_bt * b_tile

        # ---- time chunking from the VMEM budget:
        #   2*(gx chunk bf16 + y chunk f32) + W_hh bf16 (counted x2 to be safe)
        #   + resident hN/cN + lens  <=  budget
        bytes_fixed = (2 * H_pad * G * 2                 # W_hh^T (conservative x2)
                       + 2 * 2 * b_tile * H_pad * 4      # hN / cN resident outputs
                       + 2 * b_tile * 128 * 4)           # lengths block (lane-padded)
        bytes_per_t = b_tile * (2 * G * 2 + 2 * H_pad * 4)   # gx (bf16 x2) + y (f32 x2)
        t_budget = max(1, (budget - bytes_fixed) // bytes_per_t)
        t_chunk = int(max(1, min(t_budget, 64, T)))
        T_pad = _round_up(T, t_chunk)

        x = jnp.pad(inputs.astype(jnp.float32),
                    ((0, B_pad - B), (0, T_pad - T), (0, 0)))
        lens = jnp.pad(jnp.asarray(input_lengths).astype(jnp.int32), (0, B_pad - B))
        lens2d = lens.reshape(B_pad, 1)
        tile_maxlen = jnp.max(lens.reshape(n_bt, b_tile), axis=1).astype(jnp.int32)

        h_list, c_list = [], []
        cur = None   # time-major activations (T_pad, B_pad, H_pad) f32
        for li, (wih_t, whh_t, bias) in enumerate(self.prepared):
            # Input projection for ALL time steps in one big matmul (bias folded in),
            # then cast to bf16: gx is the dominant HBM stream into the kernel.
            if li == 0:
                gx = jnp.einsum('bti,ig->tbg', x, wih_t) + bias
            else:
                gx = jnp.einsum('tbh,hg->tbg', cur, wih_t) + bias
            gx = gx.astype(jnp.bfloat16)
            cur, h_n, c_n = lstm_recurrence(gx, whh_t, lens2d, tile_maxlen,
                                            t_chunk, b_tile, budget)
            h_list.append(h_n[:B, :H])
            c_list.append(c_n[:B, :H])
            # inter-layer dropout: identity in eval mode

        # Single transpose back to batch_first; strip batch/time/hidden padding.
        output = jnp.transpose(cur[:T, :B, :H], (1, 0, 2))     # (B, T, H)
        # final self.dropout(output): identity in eval mode
        h_n = jnp.stack(h_list, axis=0)                        # (num_layers, B, H)
        c_n = jnp.stack(c_list, axis=0)
        return output, (h_n, c_n)


# ---------------------------------------------------------------------------
# Pure-JAX reference with the same packed-sequence semantics.  With
# compute_dtype=bfloat16 it mimics the kernel's dtype flow (bf16 gates_x / W_hh
# storage, f32 accumulation and carries).
# ---------------------------------------------------------------------------
def reference_lstm(inputs, lengths, params, compute_dtype=jnp.float32):
    B, T, _ = inputs.shape
    x = inputs.astype(jnp.float32)
    lengths = jnp.asarray(lengths)
    h_list, c_list = [], []
    for (w_ih, w_hh, b_ih, b_hh) in params:
        H = w_hh.shape[1]
        gx = jnp.einsum('bti,gi->btg', x, w_ih) + (b_ih + b_hh)          # f32
        gx = gx.astype(compute_dtype).astype(jnp.float32)
        whh_c = w_hh.astype(compute_dtype)

        def step(carry, tup, whh_c=whh_c, H=H):
            h, c = carry
            gx_t, t = tup
            gates = gx_t + jnp.dot(h.astype(compute_dtype), whh_c.T,
                                   preferred_element_type=jnp.float32)
            i = jax.nn.sigmoid(gates[:, :H])
            f = jax.nn.sigmoid(gates[:, H:2 * H])
            g = jnp.tanh(gates[:, 2 * H:3 * H])
            o = jax.nn.sigmoid(gates[:, 3 * H:])
            c_new = f * c + i * g
            h_new = o * jnp.tanh(c_new)
            mask = (t < lengths)[:, None]
            return ((jnp.where(mask, h_new, h), jnp.where(mask, c_new, c)),
                    jnp.where(mask, h_new, 0.0))

        init = (jnp.zeros((B, H), jnp.float32), jnp.zeros((B, H), jnp.float32))
        (hN, cN), ys = jax.lax.scan(step, init,
                                    (jnp.transpose(gx, (1, 0, 2)), jnp.arange(T)))
        x = jnp.transpose(ys, (1, 0, 2))
        h_list.append(hN)
        c_list.append(cN)
    return x, (jnp.stack(h_list), jnp.stack(c_list))


if __name__ == "__main__":
    B, T, I, H, L = 2, 8, 16, 32, 2   # batch, seq, input_size, hidden_size, num_layers

    key = jax.random.PRNGKey(0)
    k_in, k_mod = jax.random.split(key)
    inputs = jax.random.normal(k_in, (B, T, I), dtype=jnp.float32)
    input_lengths = jnp.array([8, 5], dtype=jnp.int32)

    model = CustomLSTMPallas(input_size=I, hidden_size=H, num_layers=L,
                             dropout=0.1, bidirectional=False, key=k_mod)

    output, (h_n, c_n) = model(inputs, input_lengths)
    jax.block_until_ready((output, h_n, c_n))

    # Tight check against a reference that mimics the kernel's bf16/f32 dtype flow.
    ref_out, (ref_h, ref_c) = reference_lstm(inputs, input_lengths, model.params,
                                             compute_dtype=jnp.bfloat16)
    np.testing.assert_allclose(np.asarray(output), np.asarray(ref_out), atol=1e-2, rtol=1e-2)
    np.testing.assert_allclose(np.asarray(h_n), np.asarray(ref_h), atol=1e-2, rtol=1e-2)
    np.testing.assert_allclose(np.asarray(c_n), np.asarray(ref_c), atol=1e-2, rtol=1e-2)

    # Sanity check against exact f32 math (bounds the bf16 gates/W_hh error).
    f32_out, _ = reference_lstm(inputs, input_lengths, model.params)
    np.testing.assert_allclose(np.asarray(output), np.asarray(f32_out), atol=5e-2, rtol=5e-2)

    assert output.shape == (B, T, H) and h_n.shape == (L, B, H) and c_n.shape == (L, B, H)
    print("KERNEL_OK")
</pallas_src>

<mosaic_0001>
module attributes {stable_mosaic.version = 11 : i64} {
  func.func @lstm_chunk_kernel(%arg0: i32, %arg1: i32, %arg2: memref<1xi32, #tpu.memory_space<smem>>, %arg3: memref<8x8x512xbf16, #tpu.memory_space<vmem>>, %arg4: memref<128x512xbf16, #tpu.memory_space<vmem>>, %arg5: memref<8x1xi32, #tpu.memory_space<vmem>>, %arg6: memref<8x8x128xf32, #tpu.memory_space<vmem>>, %arg7: memref<8x128xf32, #tpu.memory_space<vmem>>, %arg8: memref<8x128xf32, #tpu.memory_space<vmem>>) attributes {dimension_semantics = [#tpu.dimension_semantics<parallel>, #tpu.dimension_semantics<arbitrary>], iteration_bounds = array<i64: 1, 1>, scalar_prefetch = 1 : i64, scratch_operands = 0 : i64, tpu.core_type = #tpu.core_type<tc>, window_params = [{transform_indices = @transform_0, window_bounds = array<i64: 8, 8, 512>}, {pipeline_mode = #tpu.pipeline_mode<synchronous>, transform_indices = @transform_1, window_bounds = array<i64: 128, 512>}, {transform_indices = @transform_2, window_bounds = array<i64: 8, 1>}, {transform_indices = @transform_3, window_bounds = array<i64: 8, 8, 128>}, {transform_indices = @transform_4, window_bounds = array<i64: 8, 128>}, {transform_indices = @transform_5, window_bounds = array<i64: 8, 128>}]} {
    %c8_i32 = arith.constant 8 : i32
    %0 = arith.muli %arg1, %c8_i32 : i32
    %c0_i32 = arith.constant 0 : i32
    %1 = arith.cmpi eq, %arg1, %c0_i32 : i32
    %2 = arith.extui %1 : i1 to i32
    %c0_i32_0 = arith.constant 0 : i32
    %3 = arith.cmpi ne, %2, %c0_i32_0 : i32
    scf.if %3 {
      %cst = arith.constant 0.000000e+00 : f32
      %12 = vector.broadcast %cst : f32 to vector<8x128xf32>
      %c0 = arith.constant 0 : index
      %c0_3 = arith.constant 0 : index
      %13 = vector.load %arg7[%c0, %c0_3] : memref<8x128xf32, #tpu.memory_space<vmem>>, vector<8x128xf32>
      tpu.vector_store %arg7[%c0, %c0_3], %12 {strides = array<i32>} : memref<8x128xf32, #tpu.memory_space<vmem>>, vector<8x128xf32>,
      %cst_4 = arith.constant 0.000000e+00 : f32
      %14 = vector.broadcast %cst_4 : f32 to vector<8x128xf32>
      %c0_5 = arith.constant 0 : index
      %c0_6 = arith.constant 0 : index
      %15 = vector.load %arg8[%c0_5, %c0_6] : memref<8x128xf32, #tpu.memory_space<vmem>>, vector<8x128xf32>
      tpu.vector_store %arg8[%c0_5, %c0_6], %14 {strides = array<i32>} : memref<8x128xf32, #tpu.memory_space<vmem>>, vector<8x128xf32>,
    } else {
    }
    %4 = arith.index_cast %arg0 : i32 to index
    %5 = memref.load %arg2[%4] : memref<1xi32, #tpu.memory_space<smem>>
    %6 = arith.cmpi sge, %0, %5 : i32
    %7 = arith.extui %6 : i1 to i32
    %c0_i32_1 = arith.constant 0 : i32
    %8 = arith.cmpi ne, %7, %c0_i32_1 : i32
    scf.if %8 {
      %cst = arith.constant 0.000000e+00 : f32
      %12 = vector.broadcast %cst : f32 to vector<8x8x128xf32>
      %c0 = arith.constant 0 : index
      %c0_3 = arith.constant 0 : index
      %c0_4 = arith.constant 0 : index
      %13 = vector.load %arg6[%c0, %c0_3, %c0_4] : memref<8x8x128xf32, #tpu.memory_space<vmem>>, vector<8x8x128xf32>
      tpu.vector_store %arg6[%c0, %c0_3, %c0_4], %12 {strides = array<i32>} : memref<8x8x128xf32, #tpu.memory_space<vmem>>, vector<8x8x128xf32>,
    } else {
    }
    %9 = arith.cmpi slt, %0, %5 : i32
    %10 = arith.extui %9 : i1 to i32
    %c0_i32_2 = arith.constant 0 : i32
    %11 = arith.cmpi ne, %10, %c0_i32_2 : i32
    scf.if %11 {
      %c0 = arith.constant 0 : index
      %c0_3 = arith.constant 0 : index
      %12 = vector.load %arg5[%c0, %c0_3] : memref<8x1xi32, #tpu.memory_space<vmem>>, vector<8x1xi32>
      %c0_4 = arith.constant 0 : index
      %c0_5 = arith.constant 0 : index
      %13 = vector.load %arg4[%c0_4, %c0_5] : memref<128x512xbf16, #tpu.memory_space<vmem>>, vector<128x512xbf16>
      %c0_i32_6 = arith.constant 0 : i32
      %c0_7 = arith.constant 0 : index
      %c0_8 = arith.constant 0 : index
      %14 = vector.load %arg7[%c0_7, %c0_8] : memref<8x128xf32, #tpu.memory_space<vmem>>, vector<8x128xf32>
      %c0_9 = arith.constant 0 : index
      %c0_10 = arith.constant 0 : index
      %15 = vector.load %arg8[%c0_9, %c0_10] : memref<8x128xf32, #tpu.memory_space<vmem>>, vector<8x128xf32>
      %16 = arith.index_cast %c0_i32_6 : i32 to index
      %c0_11 = arith.constant 0 : index
      %c0_12 = arith.constant 0 : index
      %17 = vector.load %arg3[%16, %c0_11, %c0_12] : memref<8x8x512xbf16, #tpu.memory_space<vmem>>, vector<1x8x512xbf16>
      %18 = vector.shape_cast %17 : vector<1x8x512xbf16> to vector<8x512xbf16>
      %19 = arith.extf %18 : vector<8x512xbf16> to vector<8x512xf32>
      %20 = arith.truncf %14 : vector<8x128xf32> to vector<8x128xbf16>
      %cst = arith.constant dense<0.000000e+00> : vector<8x512xf32>
      %21 = tpu.matmul %20, %13, %cst {dimension_numbers = #tpu.dot_dimension_numbers<[1], [0], [0], [1], [0, 0, 1, 1], [], []>} : vector<8x128xbf16>, vector<128x512xbf16>, vector<8x512xf32> -> vector<8x512xf32>
      %22 = arith.addf %19, %21 : vector<8x512xf32>
      %23 = vector.extract_strided_slice %22 {offsets = [0, 0], sizes = [8, 128], strides = [1, 1]} : vector<8x512xf32> to vector<8x128xf32>
      %24 = arith.negf %23 : vector<8x128xf32>
      %25 = math.exp %24 : vector<8x128xf32>
      %cst_13 = arith.constant 1.000000e+00 : f32
      %26 = vector.broadcast %cst_13 : f32 to vector<8x128xf32>
      %27 = arith.addf %26, %25 : vector<8x128xf32>
      %28 = arith.divf %26, %27 : vector<8x128xf32>
      %29 = vector.extract_strided_slice %22 {offsets = [0, 128], sizes = [8, 128], strides = [1, 1]} : vector<8x512xf32> to vector<8x128xf32>
      %30 = arith.negf %29 : vector<8x128xf32>
      %31 = math.exp %30 : vector<8x128xf32>
      %cst_14 = arith.constant 1.000000e+00 : f32
      %32 = vector.broadcast %cst_14 : f32 to vector<8x128xf32>
      %33 = arith.addf %32, %31 : vector<8x128xf32>
      %34 = arith.divf %32, %33 : vector<8x128xf32>
      %35 = vector.extract_strided_slice %22 {offsets = [0, 256], sizes = [8, 128], strides = [1, 1]} : vector<8x512xf32> to vector<8x128xf32>
      %36 = math.tanh %35 : vector<8x128xf32>
      %37 = vector.extract_strided_slice %22 {offsets = [0, 384], sizes = [8, 128], strides = [1, 1]} : vector<8x512xf32> to vector<8x128xf32>
      %38 = arith.negf %37 : vector<8x128xf32>
      %39 = math.exp %38 : vector<8x128xf32>
      %cst_15 = arith.constant 1.000000e+00 : f32
      %40 = vector.broadcast %cst_15 : f32 to vector<8x128xf32>
      %41 = arith.addf %40, %39 : vector<8x128xf32>
      %42 = arith.divf %40, %41 : vector<8x128xf32>
      %43 = arith.mulf %34, %15 : vector<8x128xf32>
      %44 = arith.mulf %28, %36 : vector<8x128xf32>
      %45 = arith.addf %43, %44 : vector<8x128xf32>
      %46 = math.tanh %45 : vector<8x128xf32>
      %47 = arith.mulf %42, %46 : vector<8x128xf32>
      %48 = arith.addi %0, %c0_i32_6 : i32
      %49 = vector.broadcast %48 : i32 to vector<8x1xi32>
      %50 = arith.cmpi slt, %49, %12 : vector<8x1xi32>
      %51 = vector.shape_cast %50 : vector<8x1xi1> to vector<8x1xi1>
      %52 = vector.broadcast %51 : vector<8x1xi1> to vector<8x128xi1>
      %53 = arith.select %52, %47, %14 : vector<8x128xi1>, vector<8x128xf32>
      %c0_16 = arith.constant 0 : index
      %c0_17 = arith.constant 0 : index
      %54 = vector.load %arg7[%c0_16, %c0_17] : memref<8x128xf32, #tpu.memory_space<vmem>>, vector<8x128xf32>
      tpu.vector_store %arg7[%c0_16, %c0_17], %53 {strides = array<i32>} : memref<8x128xf32, #tpu.memory_space<vmem>>, vector<8x128xf32>,
      %55 = vector.shape_cast %50 : vector<8x1xi1> to vector<8x1xi1>
      %56 = vector.broadcast %55 : vector<8x1xi1> to vector<8x128xi1>
      %57 = arith.select %56, %45, %15 : vector<8x128xi1>, vector<8x128xf32>
      %c0_18 = arith.constant 0 : index
      %c0_19 = arith.constant 0 : index
      %58 = vector.load %arg8[%c0_18, %c0_19] : memref<8x128xf32, #tpu.memory_space<vmem>>, vector<8x128xf32>
      tpu.vector_store %arg8[%c0_18, %c0_19], %57 {strides = array<i32>} : memref<8x128xf32, #tpu.memory_space<vmem>>, vector<8x128xf32>,
      %cst_20 = arith.constant 0.000000e+00 : f32
      %59 = vector.shape_cast %50 : vector<8x1xi1> to vector<8x1xi1>
      %60 = vector.broadcast %59 : vector<8x1xi1> to vector<8x128xi1>
      %61 = vector.broadcast %cst_20 : f32 to vector<8x128xf32>
      %62 = arith.select %60, %47, %61 : vector<8x128xi1>, vector<8x128xf32>
      %63 = arith.index_cast %c0_i32_6 : i32 to index
      %c0_21 = arith.constant 0 : index
      %c0_22 = arith.constant 0 : index
      %64 = vector.load %arg6[%63, %c0_21, %c0_22] : memref<8x8x128xf32, #tpu.memory_space<vmem>>, vector<1x8x128xf32>
      %65 = vector.shape_cast %64 : vector<1x8x128xf32> to vector<8x128xf32>
      %66 = vector.shape_cast %62 : vector<8x128xf32> to vector<1x8x128xf32>
      tpu.vector_store %arg6[%63, %c0_21, %c0_22], %66 {strides = array<i32>} : memref<8x8x128xf32, #tpu.memory_space<vmem>>, vector<1x8x128xf32>,
      %c1_i32 = arith.constant 1 : i32
      %c0_23 = arith.constant 0 : index
      %c0_24 = arith.constant 0 : index
      %67 = vector.load %arg7[%c0_23, %c0_24] : memref<8x128xf32, #tpu.memory_space<vmem>>, vector<8x128xf32>
      %c0_25 = arith.constant 0 : index
      %c0_26 = arith.constant 0 : index
      %68 = vector.load %arg8[%c0_25, %c0_26] : memref<8x128xf32, #tpu.memory_space<vmem>>, vector<8x128xf32>
      %69 = arith.index_cast %c1_i32 : i32 to index
      %c0_27 = arith.constant 0 : index
      %c0_28 = arith.constant 0 : index
      %70 = vector.load %arg3[%69, %c0_27, %c0_28] : memref<8x8x512xbf16, #tpu.memory_space<vmem>>, vector<1x8x512xbf16>
      %71 = vector.shape_cast %70 : vector<1x8x512xbf16> to vector<8x512xbf16>
      %72 = arith.extf %71 : vector<8x512xbf16> to vector<8x512xf32>
      %73 = arith.truncf %67 : vector<8x128xf32> to vector<8x128xbf16>
      %cst_29 = arith.constant dense<0.000000e+00> : vector<8x512xf32>
      %74 = tpu.matmul %73, %13, %cst_29 {dimension_numbers = #tpu.dot_dimension_numbers<[1], [0], [0], [1], [0, 0, 1, 1], [], []>} : vector<8x128xbf16>, vector<128x512xbf16>, vector<8x512xf32> -> vector<8x512xf32>
      %75 = arith.addf %72, %74 : vector<8x512xf32>
      %76 = vector.extract_strided_slice %75 {offsets = [0, 0], sizes = [8, 128], strides = [1, 1]} : vector<8x512xf32> to vector<8x128xf32>
      %77 = arith.negf %76 : vector<8x128xf32>
      %78 = math.exp %77 : vector<8x128xf32>
      %cst_30 = arith.constant 1.000000e+00 : f32
      %79 = vector.broadcast %cst_30 : f32 to vector<8x128xf32>
      %80 = arith.addf %79, %78 : vector<8x128xf32>
      %81 = arith.divf %79, %80 : vector<8x128xf32>
      %82 = vector.extract_strided_slice %75 {offsets = [0, 128], sizes = [8, 128], strides = [1, 1]} : vector<8x512xf32> to vector<8x128xf32>
      %83 = arith.negf %82 : vector<8x128xf32>
      %84 = math.exp %83 : vector<8x128xf32>
      %cst_31 = arith.constant 1.000000e+00 : f32
      %85 = vector.broadcast %cst_31 : f32 to vector<8x128xf32>
      %86 = arith.addf %85, %84 : vector<8x128xf32>
      %87 = arith.divf %85, %86 : vector<8x128xf32>
      %88 = vector.extract_strided_slice %75 {offsets = [0, 256], sizes = [8, 128], strides = [1, 1]} : vector<8x512xf32> to vector<8x128xf32>
      %89 = math.tanh %88 : vector<8x128xf32>
      %90 = vector.extract_strided_slice %75 {offsets = [0, 384], sizes = [8, 128], strides = [1, 1]} : vector<8x512xf32> to vector<8x128xf32>
      %91 = arith.negf %90 : vector<8x128xf32>
      %92 = math.exp %91 : vector<8x128xf32>
      %cst_32 = arith.constant 1.000000e+00 : f32
      %93 = vector.broadcast %cst_32 : f32 to vector<8x128xf32>
      %94 = arith.addf %93, %92 : vector<8x128xf32>
      %95 = arith.divf %93, %94 : vector<8x128xf32>
      %96 = arith.mulf %87, %68 : vector<8x128xf32>
      %97 = arith.mulf %81, %89 : vector<8x128xf32>
      %98 = arith.addf %96, %97 : vector<8x128xf32>
      %99 = math.tanh %98 : vector<8x128xf32>
      %100 = arith.mulf %95, %99 : vector<8x128xf32>
      %101 = arith.addi %0, %c1_i32 : i32
      %102 = vector.broadcast %101 : i32 to vector<8x1xi32>
      %103 = arith.cmpi slt, %102, %12 : vector<8x1xi32>
      %104 = vector.shape_cast %103 : vector<8x1xi1> to vector<8x1xi1>
      %105 = vector.broadcast %104 : vector<8x1xi1> to vector<8x128xi1>
      %106 = arith.select %105, %100, %67 : vector<8x128xi1>, vector<8x128xf32>
      %c0_33 = arith.constant 0 : index
      %c0_34 = arith.constant 0 : index
      %107 = vector.load %arg7[%c0_33, %c0_34] : memref<8x128xf32, #tpu.memory_space<vmem>>, vector<8x128xf32>
      tpu.vector_store %arg7[%c0_33, %c0_34], %106 {strides = array<i32>} : memref<8x128xf32, #tpu.memory_space<vmem>>, vector<8x128xf32>,
      %108 = vector.shape_cast %103 : vector<8x1xi1> to vector<8x1xi1>
      %109 = vector.broadcast %108 : vector<8x1xi1> to vector<8x128xi1>
      %110 = arith.select %109, %98, %68 : vector<8x128xi1>, vector<8x128xf32>
      %c0_35 = arith.constant 0 : index
      %c0_36 = arith.constant 0 : index
      %111 = vector.load %arg8[%c0_35, %c0_36] : memref<8x128xf32, #tpu.memory_space<vmem>>, vector<8x128xf32>
      tpu.vector_store %arg8[%c0_35, %c0_36], %110 {strides = array<i32>} : memref<8x128xf32, #tpu.memory_space<vmem>>, vector<8x128xf32>,
      %cst_37 = arith.constant 0.000000e+00 : f32
      %112 = vector.shape_cast %103 : vector<8x1xi1> to vector<8x1xi1>
      %113 = vector.broadcast %112 : vector<8x1xi1> to vector<8x128xi1>
      %114 = vector.broadcast %cst_37 : f32 to vector<8x128xf32>
      %115 = arith.select %113, %100, %114 : vector<8x128xi1>, vector<8x128xf32>
      %116 = arith.index_cast %c1_i32 : i32 to index
      %c0_38 = arith.constant 0 : index
      %c0_39 = arith.constant 0 : index
      %117 = vector.load %arg6[%116, %c0_38, %c0_39] : memref<8x8x128xf32, #tpu.memory_space<vmem>>, vector<1x8x128xf32>
      %118 = vector.shape_cast %117 : vector<1x8x128xf32> to vector<8x128xf32>
      %119 = vector.shape_cast %115 : vector<8x128xf32> to vector<1x8x128xf32>
      tpu.vector_store %arg6[%116, %c0_38, %c0_39], %119 {strides = array<i32>} : memref<8x8x128xf32, #tpu.memory_space<vmem>>, vector<1x8x128xf32>,
      %c2_i32 = arith.constant 2 : i32
      %c0_40 = arith.constant 0 : index
      %c0_41 = arith.constant 0 : index
      %120 = vector.load %arg7[%c0_40, %c0_41] : memref<8x128xf32, #tpu.memory_space<vmem>>, vector<8x128xf32>
      %c0_42 = arith.constant 0 : index
      %c0_43 = arith.constant 0 : index
      %121 = vector.load %arg8[%c0_42, %c0_43] : memref<8x128xf32, #tpu.memory_space<vmem>>, vector<8x128xf32>
      %122 = arith.index_cast %c2_i32 : i32 to index
      %c0_44 = arith.constant 0 : index
      %c0_45 = arith.constant 0 : index
      %123 = vector.load %arg3[%122, %c0_44, %c0_45] : memref<8x8x512xbf16, #tpu.memory_space<vmem>>, vector<1x8x512xbf16>
      %124 = vector.shape_cast %123 : vector<1x8x512xbf16> to vector<8x512xbf16>
      %125 = arith.extf %124 : vector<8x512xbf16> to vector<8x512xf32>
      %126 = arith.truncf %120 : vector<8x128xf32> to vector<8x128xbf16>
      %cst_46 = arith.constant dense<0.000000e+00> : vector<8x512xf32>
      %127 = tpu.matmul %126, %13, %cst_46 {dimension_numbers = #tpu.dot_dimension_numbers<[1], [0], [0], [1], [0, 0, 1, 1], [], []>} : vector<8x128xbf16>, vector<128x512xbf16>, vector<8x512xf32> -> vector<8x512xf32>
      %128 = arith.addf %125, %127 : vector<8x512xf32>
      %129 = vector.extract_strided_slice %128 {offsets = [0, 0], sizes = [8, 128], strides = [1, 1]} : vector<8x512xf32> to vector<8x128xf32>
      %130 = arith.negf %129 : vector<8x128xf32>
      %131 = math.exp %130 : vector<8x128xf32>
      %cst_47 = arith.constant 1.000000e+00 : f32
      %132 = vector.broadcast %cst_47 : f32 to vector<8x128xf32>
      %133 = arith.addf %132, %131 : vector<8x128xf32>
      %134 = arith.divf %132, %133 : vector<8x128xf32>
      %135 = vector.extract_strided_slice %128 {offsets = [0, 128], sizes = [8, 128], strides = [1, 1]} : vector<8x512xf32> to vector<8x128xf32>
      %136 = arith.negf %135 : vector<8x128xf32>
      %137 = math.exp %136 : vector<8x128xf32>
      %cst_48 = arith.constant 1.000000e+00 : f32
      %138 = vector.broadcast %cst_48 : f32 to vector<8x128xf32>
      %139 = arith.addf %138, %137 : vector<8x128xf32>
      %140 = arith.divf %138, %139 : vector<8x128xf32>
      %141 = vector.extract_strided_slice %128 {offsets = [0, 256], sizes = [8, 128], strides = [1, 1]} : vector<8x512xf32> to vector<8x128xf32>
      %142 = math.tanh %141 : vector<8x128xf32>
      %143 = vector.extract_strided_slice %128 {offsets = [0, 384], sizes = [8, 128], strides = [1, 1]} : vector<8x512xf32> to vector<8x128xf32>
      %144 = arith.negf %143 : vector<8x128xf32>
      %145 = math.exp %144 : vector<8x128xf32>
      %cst_49 = arith.constant 1.000000e+00 : f32
      %146 = vector.broadcast %cst_49 : f32 to vector<8x128xf32>
      %147 = arith.addf %146, %145 : vector<8x128xf32>
      %148 = arith.divf %146, %147 : vector<8x128xf32>
      %149 = arith.mulf %140, %121 : vector<8x128xf32>
      %150 = arith.mulf %134, %142 : vector<8x128xf32>
      %151 = arith.addf %149, %150 : vector<8x128xf32>
      %152 = math.tanh %151 : vector<8x128xf32>
      %153 = arith.mulf %148, %152 : vector<8x128xf32>
      %154 = arith.addi %0, %c2_i32 : i32
      %155 = vector.broadcast %154 : i32 to vector<8x1xi32>
      %156 = arith.cmpi slt, %155, %12 : vector<8x1xi32>
      %157 = vector.shape_cast %156 : vector<8x1xi1> to vector<8x1xi1>
      %158 = vector.broadcast %157 : vector<8x1xi1> to vector<8x128xi1>
      %159 = arith.select %158, %153, %120 : vector<8x128xi1>, vector<8x128xf32>
      %c0_50 = arith.constant 0 : index
      %c0_51 = arith.constant 0 : index
      %160 = vector.load %arg7[%c0_50, %c0_51] : memref<8x128xf32, #tpu.memory_space<vmem>>, vector<8x128xf32>
      tpu.vector_store %arg7[%c0_50, %c0_51], %159 {strides = array<i32>} : memref<8x128xf32, #tpu.memory_space<vmem>>, vector<8x128xf32>,
      %161 = vector.shape_cast %156 : vector<8x1xi1> to vector<8x1xi1>
      %162 = vector.broadcast %161 : vector<8x1xi1> to vector<8x128xi1>
      %163 = arith.select %162, %151, %121 : vector<8x128xi1>, vector<8x128xf32>
      %c0_52 = arith.constant 0 : index
      %c0_53 = arith.constant 0 : index
      %164 = vector.load %arg8[%c0_52, %c0_53] : memref<8x128xf32, #tpu.memory_space<vmem>>, vector<8x128xf32>
      tpu.vector_store %arg8[%c0_52, %c0_53], %163 {strides = array<i32>} : memref<8x128xf32, #tpu.memory_space<vmem>>, vector<8x128xf32>,
      %cst_54 = arith.constant 0.000000e+00 : f32
      %165 = vector.shape_cast %156 : vector<8x1xi1> to vector<8x1xi1>
      %166 = vector.broadcast %165 : vector<8x1xi1> to vector<8x128xi1>
      %167 = vector.broadcast %cst_54 : f32 to vector<8x128xf32>
      %168 = arith.select %166, %153, %167 : vector<8x128xi1>, vector<8x128xf32>
      %169 = arith.index_cast %c2_i32 : i32 to index
      %c0_55 = arith.constant 0 : index
      %c0_56 = arith.constant 0 : index
      %170 = vector.load %arg6[%169, %c0_55, %c0_56] : memref<8x8x128xf32, #tpu.memory_space<vmem>>, vector<1x8x128xf32>
      %171 = vector.shape_cast %170 : vector<1x8x128xf32> to vector<8x128xf32>
      %172 = vector.shape_cast %168 : vector<8x128xf32> to vector<1x8x128xf32>
      tpu.vector_store %arg6[%169, %c0_55, %c0_56], %172 {strides = array<i32>} : memref<8x8x128xf32, #tpu.memory_space<vmem>>, vector<1x8x128xf32>,
      %c3_i32 = arith.constant 3 : i32
      %c0_57 = arith.constant 0 : index
      %c0_58 = arith.constant 0 : index
      %173 = vector.load %arg7[%c0_57, %c0_58] : memref<8x128xf32, #tpu.memory_space<vmem>>, vector<8x128xf32>
      %c0_59 = arith.constant 0 : index
      %c0_60 = arith.constant 0 : index
      %174 = vector.load %arg8[%c0_59, %c0_60] : memref<8x128xf32, #tpu.memory_space<vmem>>, vector<8x128xf32>
      %175 = arith.index_cast %c3_i32 : i32 to index
      %c0_61 = arith.constant 0 : index
      %c0_62 = arith.constant 0 : index
      %176 = vector.load %arg3[%175, %c0_61, %c0_62] : memref<8x8x512xbf16, #tpu.memory_space<vmem>>, vector<1x8x512xbf16>
      %177 = vector.shape_cast %176 : vector<1x8x512xbf16> to vector<8x512xbf16>
      %178 = arith.extf %177 : vector<8x512xbf16> to vector<8x512xf32>
      %179 = arith.truncf %173 : vector<8x128xf32> to vector<8x128xbf16>
      %cst_63 = arith.constant dense<0.000000e+00> : vector<8x512xf32>
      %180 = tpu.matmul %179, %13, %cst_63 {dimension_numbers = #tpu.dot_dimension_numbers<[1], [0], [0], [1], [0, 0, 1, 1], [], []>} : vector<8x128xbf16>, vector<128x512xbf16>, vector<8x512xf32> -> vector<8x512xf32>
      %181 = arith.addf %178, %180 : vector<8x512xf32>
      %182 = vector.extract_strided_slice %181 {offsets = [0, 0], sizes = [8, 128], strides = [1, 1]} : vector<8x512xf32> to vector<8x128xf32>
      %183 = arith.negf %182 : vector<8x128xf32>
      %184 = math.exp %183 : vector<8x128xf32>
      %cst_64 = arith.constant 1.000000e+00 : f32
      %185 = vector.broadcast %cst_64 : f32 to vector<8x128xf32>
      %186 = arith.addf %185, %184 : vector<8x128xf32>
      %187 = arith.divf %185, %186 : vector<8x128xf32>
      %188 = vector.extract_strided_slice %181 {offsets = [0, 128], sizes = [8, 128], strides = [1, 1]} : vector<8x512xf32> to vector<8x128xf32>
      %189 = arith.negf %188 : vector<8x128xf32>
      %190 = math.exp %189 : vector<8x128xf32>
      %cst_65 = arith.constant 1.000000e+00 : f32
      %191 = vector.broadcast %cst_65 : f32 to vector<8x128xf32>
      %192 = arith.addf %191, %190 : vector<8x128xf32>
      %193 = arith.divf %191, %192 : vector<8x128xf32>
      %194 = vector.extract_strided_slice %181 {offsets = [0, 256], sizes = [8, 128], strides = [1, 1]} : vector<8x512xf32> to vector<8x128xf32>
      %195 = math.tanh %194 : vector<8x128xf32>
      %196 = vector.extract_strided_slice %181 {offsets = [0, 384], sizes = [8, 128], strides = [1, 1]} : vector<8x512xf32> to vector<8x128xf32>
      %197 = arith.negf %196 : vector<8x128xf32>
      %198 = math.exp %197 : vector<8x128xf32>
      %cst_66 = arith.constant 1.000000e+00 : f32
      %199 = vector.broadcast %cst_66 : f32 to vector<8x128xf32>
      %200 = arith.addf %199, %198 : vector<8x128xf32>
      %201 = arith.divf %199, %200 : vector<8x128xf32>
      %202 = arith.mulf %193, %174 : vector<8x128xf32>
      %203 = arith.mulf %187, %195 : vector<8x128xf32>
      %204 = arith.addf %202, %203 : vector<8x128xf32>
      %205 = math.tanh %204 : vector<8x128xf32>
      %206 = arith.mulf %201, %205 : vector<8x128xf32>
      %207 = arith.addi %0, %c3_i32 : i32
      %208 = vector.broadcast %207 : i32 to vector<8x1xi32>
      %209 = arith.cmpi slt, %208, %12 : vector<8x1xi32>
      %210 = vector.shape_cast %209 : vector<8x1xi1> to vector<8x1xi1>
      %211 = vector.broadcast %210 : vector<8x1xi1> to vector<8x128xi1>
      %212 = arith.select %211, %206, %173 : vector<8x128xi1>, vector<8x128xf32>
      %c0_67 = arith.constant 0 : index
      %c0_68 = arith.constant 0 : index
      %213 = vector.load %arg7[%c0_67, %c0_68] : memref<8x128xf32, #tpu.memory_space<vmem>>, vector<8x128xf32>
      tpu.vector_store %arg7[%c0_67, %c0_68], %212 {strides = array<i32>} : memref<8x128xf32, #tpu.memory_space<vmem>>, vector<8x128xf32>,
      %214 = vector.shape_cast %209 : vector<8x1xi1> to vector<8x1xi1>
      %215 = vector.broadcast %214 : vector<8x1xi1> to vector<8x128xi1>
      %216 = arith.select %215, %204, %174 : vector<8x128xi1>, vector<8x128xf32>
      %c0_69 = arith.constant 0 : index
      %c0_70 = arith.constant 0 : index
      %217 = vector.load %arg8[%c0_69, %c0_70] : memref<8x128xf32, #tpu.memory_space<vmem>>, vector<8x128xf32>
      tpu.vector_store %arg8[%c0_69, %c0_70], %216 {strides = array<i32>} : memref<8x128xf32, #tpu.memory_space<vmem>>, vector<8x128xf32>,
      %cst_71 = arith.constant 0.000000e+00 : f32
      %218 = vector.shape_cast %209 : vector<8x1xi1> to vector<8x1xi1>
      %219 = vector.broadcast %218 : vector<8x1xi1> to vector<8x128xi1>
      %220 = vector.broadcast %cst_71 : f32 to vector<8x128xf32>
      %221 = arith.select %219, %206, %220 : vector<8x128xi1>, vector<8x128xf32>
      %222 = arith.index_cast %c3_i32 : i32 to index
      %c0_72 = arith.constant 0 : index
      %c0_73 = arith.constant 0 : index
      %223 = vector.load %arg6[%222, %c0_72, %c0_73] : memref<8x8x128xf32, #tpu.memory_space<vmem>>, vector<1x8x128xf32>
      %224 = vector.shape_cast %223 : vector<1x8x128xf32> to vector<8x128xf32>
      %225 = vector.shape_cast %221 : vector<8x128xf32> to vector<1x8x128xf32>
      tpu.vector_store %arg6[%222, %c0_72, %c0_73], %225 {strides = array<i32>} : memref<8x8x128xf32, #tpu.memory_space<vmem>>, vector<1x8x128xf32>,
      %c4_i32 = arith.constant 4 : i32
      %c0_74 = arith.constant 0 : index
      %c0_75 = arith.constant 0 : index
      %226 = vector.load %arg7[%c0_74, %c0_75] : memref<8x128xf32, #tpu.memory_space<vmem>>, vector<8x128xf32>
      %c0_76 = arith.constant 0 : index
      %c0_77 = arith.constant 0 : index
      %227 = vector.load %arg8[%c0_76, %c0_77] : memref<8x128xf32, #tpu.memory_space<vmem>>, vector<8x128xf32>
      %228 = arith.index_cast %c4_i32 : i32 to index
      %c0_78 = arith.constant 0 : index
      %c0_79 = arith.constant 0 : index
      %229 = vector.load %arg3[%228, %c0_78, %c0_79] : memref<8x8x512xbf16, #tpu.memory_space<vmem>>, vector<1x8x512xbf16>
      %230 = vector.shape_cast %229 : vector<1x8x512xbf16> to vector<8x512xbf16>
      %231 = arith.extf %230 : vector<8x512xbf16> to vector<8x512xf32>
      %232 = arith.truncf %226 : vector<8x128xf32> to vector<8x128xbf16>
      %cst_80 = arith.constant dense<0.000000e+00> : vector<8x512xf32>
      %233 = tpu.matmul %232, %13, %cst_80 {dimension_numbers = #tpu.dot_dimension_numbers<[1], [0], [0], [1], [0, 0, 1, 1], [], []>} : vector<8x128xbf16>, vector<128x512xbf16>, vector<8x512xf32> -> vector<8x512xf32>
      %234 = arith.addf %231, %233 : vector<8x512xf32>
      %235 = vector.extract_strided_slice %234 {offsets = [0, 0], sizes = [8, 128], strides = [1, 1]} : vector<8x512xf32> to vector<8x128xf32>
      %236 = arith.negf %235 : vector<8x128xf32>
      %237 = math.exp %236 : vector<8x128xf32>
      %cst_81 = arith.constant 1.000000e+00 : f32
      %238 = vector.broadcast %cst_81 : f32 to vector<8x128xf32>
      %239 = arith.addf %238, %237 : vector<8x128xf32>
      %240 = arith.divf %238, %239 : vector<8x128xf32>
      %241 = vector.extract_strided_slice %234 {offsets = [0, 128], sizes = [8, 128], strides = [1, 1]} : vector<8x512xf32> to vector<8x128xf32>
      %242 = arith.negf %241 : vector<8x128xf32>
      %243 = math.exp %242 : vector<8x128xf32>
      %cst_82 = arith.constant 1.000000e+00 : f32
      %244 = vector.broadcast %cst_82 : f32 to vector<8x128xf32>
      %245 = arith.addf %244, %243 : vector<8x128xf32>
      %246 = arith.divf %244, %245 : vector<8x128xf32>
      %247 = vector.extract_strided_slice %234 {offsets = [0, 256], sizes = [8, 128], strides = [1, 1]} : vector<8x512xf32> to vector<8x128xf32>
      %248 = math.tanh %247 : vector<8x128xf32>
      %249 = vector.extract_strided_slice %234 {offsets = [0, 384], sizes = [8, 128], strides = [1, 1]} : vector<8x512xf32> to vector<8x128xf32>
      %250 = arith.negf %249 : vector<8x128xf32>
      %251 = math.exp %250 : vector<8x128xf32>
      %cst_83 = arith.constant 1.000000e+00 : f32
      %252 = vector.broadcast %cst_83 : f32 to vector<8x128xf32>
      %253 = arith.addf %252, %251 : vector<8x128xf32>
      %254 = arith.divf %252, %253 : vector<8x128xf32>
      %255 = arith.mulf %246, %227 : vector<8x128xf32>
      %256 = arith.mulf %240, %248 : vector<8x128xf32>
      %257 = arith.addf %255, %256 : vector<8x128xf32>
      %258 = math.tanh %257 : vector<8x128xf32>
      %259 = arith.mulf %254, %258 : vector<8x128xf32>
      %260 = arith.addi %0, %c4_i32 : i32
      %261 = vector.broadcast %260 : i32 to vector<8x1xi32>
      %262 = arith.cmpi slt, %261, %12 : vector<8x1xi32>
      %263 = vector.shape_cast %262 : vector<8x1xi1> to vector<8x1xi1>
      %264 = vector.broadcast %263 : vector<8x1xi1> to vector<8x128xi1>
      %265 = arith.select %264, %259, %226 : vector<8x128xi1>, vector<8x128xf32>
      %c0_84 = arith.constant 0 : index
      %c0_85 = arith.constant 0 : index
      %266 = vector.load %arg7[%c0_84, %c0_85] : memref<8x128xf32, #tpu.memory_space<vmem>>, vector<8x128xf32>
      tpu.vector_store %arg7[%c0_84, %c0_85], %265 {strides = array<i32>} : memref<8x128xf32, #tpu.memory_space<vmem>>, vector<8x128xf32>,
      %267 = vector.shape_cast %262 : vector<8x1xi1> to vector<8x1xi1>
      %268 = vector.broadcast %267 : vector<8x1xi1> to vector<8x128xi1>
      %269 = arith.select %268, %257, %227 : vector<8x128xi1>, vector<8x128xf32>
      %c0_86 = arith.constant 0 : index
      %c0_87 = arith.constant 0 : index
      %270 = vector.load %arg8[%c0_86, %c0_87] : memref<8x128xf32, #tpu.memory_space<vmem>>, vector<8x128xf32>
      tpu.vector_store %arg8[%c0_86, %c0_87], %269 {strides = array<i32>} : memref<8x128xf32, #tpu.memory_space<vmem>>, vector<8x128xf32>,
      %cst_88 = arith.constant 0.000000e+00 : f32
      %271 = vector.shape_cast %262 : vector<8x1xi1> to vector<8x1xi1>
      %272 = vector.broadcast %271 : vector<8x1xi1> to vector<8x128xi1>
      %273 = vector.broadcast %cst_88 : f32 to vector<8x128xf32>
      %274 = arith.select %272, %259, %273 : vector<8x128xi1>, vector<8x128xf32>
      %275 = arith.index_cast %c4_i32 : i32 to index
      %c0_89 = arith.constant 0 : index
      %c0_90 = arith.constant 0 : index
      %276 = vector.load %arg6[%275, %c0_89, %c0_90] : memref<8x8x128xf32, #tpu.memory_space<vmem>>, vector<1x8x128xf32>
      %277 = vector.shape_cast %276 : vector<1x8x128xf32> to vector<8x128xf32>
      %278 = vector.shape_cast %274 : vector<8x128xf32> to vector<1x8x128xf32>
      tpu.vector_store %arg6[%275, %c0_89, %c0_90], %278 {strides = array<i32>} : memref<8x8x128xf32, #tpu.memory_space<vmem>>, vector<1x8x128xf32>,
      %c5_i32 = arith.constant 5 : i32
      %c0_91 = arith.constant 0 : index
      %c0_92 = arith.constant 0 : index
      %279 = vector.load %arg7[%c0_91, %c0_92] : memref<8x128xf32, #tpu.memory_space<vmem>>, vector<8x128xf32>
      %c0_93 = arith.constant 0 : index
      %c0_94 = arith.constant 0 : index
      %280 = vector.load %arg8[%c0_93, %c0_94] : memref<8x128xf32, #tpu.memory_space<vmem>>, vector<8x128xf32>
      %281 = arith.index_cast %c5_i32 : i32 to index
      %c0_95 = arith.constant 0 : index
      %c0_96 = arith.constant 0 : index
      %282 = vector.load %arg3[%281, %c0_95, %c0_96] : memref<8x8x512xbf16, #tpu.memory_space<vmem>>, vector<1x8x512xbf16>
      %283 = vector.shape_cast %282 : vector<1x8x512xbf16> to vector<8x512xbf16>
      %284 = arith.extf %283 : vector<8x512xbf16> to vector<8x512xf32>
      %285 = arith.truncf %279 : vector<8x128xf32> to vector<8x128xbf16>
      %cst_97 = arith.constant dense<0.000000e+00> : vector<8x512xf32>
      %286 = tpu.matmul %285, %13, %cst_97 {dimension_numbers = #tpu.dot_dimension_numbers<[1], [0], [0], [1], [0, 0, 1, 1], [], []>} : vector<8x128xbf16>, vector<128x512xbf16>, vector<8x512xf32> -> vector<8x512xf32>
      %287 = arith.addf %284, %286 : vector<8x512xf32>
      %288 = vector.extract_strided_slice %287 {offsets = [0, 0], sizes = [8, 128], strides = [1, 1]} : vector<8x512xf32> to vector<8x128xf32>
      %289 = arith.negf %288 : vector<8x128xf32>
      %290 = math.exp %289 : vector<8x128xf32>
      %cst_98 = arith.constant 1.000000e+00 : f32
      %291 = vector.broadcast %cst_98 : f32 to vector<8x128xf32>
      %292 = arith.addf %291, %290 : vector<8x128xf32>
      %293 = arith.divf %291, %292 : vector<8x128xf32>
      %294 = vector.extract_strided_slice %287 {offsets = [0, 128], sizes = [8, 128], strides = [1, 1]} : vector<8x512xf32> to vector<8x128xf32>
      %295 = arith.negf %294 : vector<8x128xf32>
      %296 = math.exp %295 : vector<8x128xf32>
      %cst_99 = arith.constant 1.000000e+00 : f32
      %297 = vector.broadcast %cst_99 : f32 to vector<8x128xf32>
      %298 = arith.addf %297, %296 : vector<8x128xf32>
      %299 = arith.divf %297, %298 : vector<8x128xf32>
      %300 = vector.extract_strided_slice %287 {offsets = [0, 256], sizes = [8, 128], strides = [1, 1]} : vector<8x512xf32> to vector<8x128xf32>
      %301 = math.tanh %300 : vector<8x128xf32>
      %302 = vector.extract_strided_slice %287 {offsets = [0, 384], sizes = [8, 128], strides = [1, 1]} : vector<8x512xf32> to vector<8x128xf32>
      %303 = arith.negf %302 : vector<8x128xf32>
      %304 = math.exp %303 : vector<8x128xf32>
      %cst_100 = arith.constant 1.000000e+00 : f32
      %305 = vector.broadcast %cst_100 : f32 to vector<8x128xf32>
      %306 = arith.addf %305, %304 : vector<8x128xf32>
      %307 = arith.divf %305, %306 : vector<8x128xf32>
      %308 = arith.mulf %299, %280 : vector<8x128xf32>
      %309 = arith.mulf %293, %301 : vector<8x128xf32>
      %310 = arith.addf %308, %309 : vector<8x128xf32>
      %311 = math.tanh %310 : vector<8x128xf32>
      %312 = arith.mulf %307, %311 : vector<8x128xf32>
      %313 = arith.addi %0, %c5_i32 : i32
      %314 = vector.broadcast %313 : i32 to vector<8x1xi32>
      %315 = arith.cmpi slt, %314, %12 : vector<8x1xi32>
      %316 = vector.shape_cast %315 : vector<8x1xi1> to vector<8x1xi1>
      %317 = vector.broadcast %316 : vector<8x1xi1> to vector<8x128xi1>
      %318 = arith.select %317, %312, %279 : vector<8x128xi1>, vector<8x128xf32>
      %c0_101 = arith.constant 0 : index
      %c0_102 = arith.constant 0 : index
      %319 = vector.load %arg7[%c0_101, %c0_102] : memref<8x128xf32, #tpu.memory_space<vmem>>, vector<8x128xf32>
      tpu.vector_store %arg7[%c0_101, %c0_102], %318 {strides = array<i32>} : memref<8x128xf32, #tpu.memory_space<vmem>>, vector<8x128xf32>,
      %320 = vector.shape_cast %315 : vector<8x1xi1> to vector<8x1xi1>
      %321 = vector.broadcast %320 : vector<8x1xi1> to vector<8x128xi1>
      %322 = arith.select %321, %310, %280 : vector<8x128xi1>, vector<8x128xf32>
      %c0_103 = arith.constant 0 : index
      %c0_104 = arith.constant 0 : index
      %323 = vector.load %arg8[%c0_103, %c0_104] : memref<8x128xf32, #tpu.memory_space<vmem>>, vector<8x128xf32>
      tpu.vector_store %arg8[%c0_103, %c0_104], %322 {strides = array<i32>} : memref<8x128xf32, #tpu.memory_space<vmem>>, vector<8x128xf32>,
      %cst_105 = arith.constant 0.000000e+00 : f32
      %324 = vector.shape_cast %315 : vector<8x1xi1> to vector<8x1xi1>
      %325 = vector.broadcast %324 : vector<8x1xi1> to vector<8x128xi1>
      %326 = vector.broadcast %cst_105 : f32 to vector<8x128xf32>
      %327 = arith.select %325, %312, %326 : vector<8x128xi1>, vector<8x128xf32>
      %328 = arith.index_cast %c5_i32 : i32 to index
      %c0_106 = arith.constant 0 : index
      %c0_107 = arith.constant 0 : index
      %329 = vector.load %arg6[%328, %c0_106, %c0_107] : memref<8x8x128xf32, #tpu.memory_space<vmem>>, vector<1x8x128xf32>
      %330 = vector.shape_cast %329 : vector<1x8x128xf32> to vector<8x128xf32>
      %331 = vector.shape_cast %327 : vector<8x128xf32> to vector<1x8x128xf32>
      tpu.vector_store %arg6[%328, %c0_106, %c0_107], %331 {strides = array<i32>} : memref<8x8x128xf32, #tpu.memory_space<vmem>>, vector<1x8x128xf32>,
      %c6_i32 = arith.constant 6 : i32
      %c0_108 = arith.constant 0 : index
      %c0_109 = arith.constant 0 : index
      %332 = vector.load %arg7[%c0_108, %c0_109] : memref<8x128xf32, #tpu.memory_space<vmem>>, vector<8x128xf32>
      %c0_110 = arith.constant 0 : index
      %c0_111 = arith.constant 0 : index
      %333 = vector.load %arg8[%c0_110, %c0_111] : memref<8x128xf32, #tpu.memory_space<vmem>>, vector<8x128xf32>
      %334 = arith.index_cast %c6_i32 : i32 to index
      %c0_112 = arith.constant 0 : index
      %c0_113 = arith.constant 0 : index
      %335 = vector.load %arg3[%334, %c0_112, %c0_113] : memref<8x8x512xbf16, #tpu.memory_space<vmem>>, vector<1x8x512xbf16>
      %336 = vector.shape_cast %335 : vector<1x8x512xbf16> to vector<8x512xbf16>
      %337 = arith.extf %336 : vector<8x512xbf16> to vector<8x512xf32>
      %338 = arith.truncf %332 : vector<8x128xf32> to vector<8x128xbf16>
      %cst_114 = arith.constant dense<0.000000e+00> : vector<8x512xf32>
      %339 = tpu.matmul %338, %13, %cst_114 {dimension_numbers = #tpu.dot_dimension_numbers<[1], [0], [0], [1], [0, 0, 1, 1], [], []>} : vector<8x128xbf16>, vector<128x512xbf16>, vector<8x512xf32> -> vector<8x512xf32>
      %340 = arith.addf %337, %339 : vector<8x512xf32>
      %341 = vector.extract_strided_slice %340 {offsets = [0, 0], sizes = [8, 128], strides = [1, 1]} : vector<8x512xf32> to vector<8x128xf32>
      %342 = arith.negf %341 : vector<8x128xf32>
      %343 = math.exp %342 : vector<8x128xf32>
      %cst_115 = arith.constant 1.000000e+00 : f32
      %344 = vector.broadcast %cst_115 : f32 to vector<8x128xf32>
      %345 = arith.addf %344, %343 : vector<8x128xf32>
      %346 = arith.divf %344, %345 : vector<8x128xf32>
      %347 = vector.extract_strided_slice %340 {offsets = [0, 128], sizes = [8, 128], strides = [1, 1]} : vector<8x512xf32> to vector<8x128xf32>
      %348 = arith.negf %347 : vector<8x128xf32>
      %349 = math.exp %348 : vector<8x128xf32>
      %cst_116 = arith.constant 1.000000e+00 : f32
      %350 = vector.broadcast %cst_116 : f32 to vector<8x128xf32>
      %351 = arith.addf %350, %349 : vector<8x128xf32>
      %352 = arith.divf %350, %351 : vector<8x128xf32>
      %353 = vector.extract_strided_slice %340 {offsets = [0, 256], sizes = [8, 128], strides = [1, 1]} : vector<8x512xf32> to vector<8x128xf32>
      %354 = math.tanh %353 : vector<8x128xf32>
      %355 = vector.extract_strided_slice %340 {offsets = [0, 384], sizes = [8, 128], strides = [1, 1]} : vector<8x512xf32> to vector<8x128xf32>
      %356 = arith.negf %355 : vector<8x128xf32>
      %357 = math.exp %356 : vector<8x128xf32>
      %cst_117 = arith.constant 1.000000e+00 : f32
      %358 = vector.broadcast %cst_117 : f32 to vector<8x128xf32>
      %359 = arith.addf %358, %357 : vector<8x128xf32>
      %360 = arith.divf %358, %359 : vector<8x128xf32>
      %361 = arith.mulf %352, %333 : vector<8x128xf32>
      %362 = arith.mulf %346, %354 : vector<8x128xf32>
      %363 = arith.addf %361, %362 : vector<8x128xf32>
      %364 = math.tanh %363 : vector<8x128xf32>
      %365 = arith.mulf %360, %364 : vector<8x128xf32>
      %366 = arith.addi %0, %c6_i32 : i32
      %367 = vector.broadcast %366 : i32 to vector<8x1xi32>
      %368 = arith.cmpi slt, %367, %12 : vector<8x1xi32>
      %369 = vector.shape_cast %368 : vector<8x1xi1> to vector<8x1xi1>
      %370 = vector.broadcast %369 : vector<8x1xi1> to vector<8x128xi1>
      %371 = arith.select %370, %365, %332 : vector<8x128xi1>, vector<8x128xf32>
      %c0_118 = arith.constant 0 : index
      %c0_119 = arith.constant 0 : index
      %372 = vector.load %arg7[%c0_118, %c0_119] : memref<8x128xf32, #tpu.memory_space<vmem>>, vector<8x128xf32>
      tpu.vector_store %arg7[%c0_118, %c0_119], %371 {strides = array<i32>} : memref<8x128xf32, #tpu.memory_space<vmem>>, vector<8x128xf32>,
      %373 = vector.shape_cast %368 : vector<8x1xi1> to vector<8x1xi1>
      %374 = vector.broadcast %373 : vector<8x1xi1> to vector<8x128xi1>
      %375 = arith.select %374, %363, %333 : vector<8x128xi1>, vector<8x128xf32>
      %c0_120 = arith.constant 0 : index
      %c0_121 = arith.constant 0 : index
      %376 = vector.load %arg8[%c0_120, %c0_121] : memref<8x128xf32, #tpu.memory_space<vmem>>, vector<8x128xf32>
      tpu.vector_store %arg8[%c0_120, %c0_121], %375 {strides = array<i32>} : memref<8x128xf32, #tpu.memory_space<vmem>>, vector<8x128xf32>,
      %cst_122 = arith.constant 0.000000e+00 : f32
      %377 = vector.shape_cast %368 : vector<8x1xi1> to vector<8x1xi1>
      %378 = vector.broadcast %377 : vector<8x1xi1> to vector<8x128xi1>
      %379 = vector.broadcast %cst_122 : f32 to vector<8x128xf32>
      %380 = arith.select %378, %365, %379 : vector<8x128xi1>, vector<8x128xf32>
      %381 = arith.index_cast %c6_i32 : i32 to index
      %c0_123 = arith.constant 0 : index
      %c0_124 = arith.constant 0 : index
      %382 = vector.load %arg6[%381, %c0_123, %c0_124] : memref<8x8x128xf32, #tpu.memory_space<vmem>>, vector<1x8x128xf32>
      %383 = vector.shape_cast %382 : vector<1x8x128xf32> to vector<8x128xf32>
      %384 = vector.shape_cast %380 : vector<8x128xf32> to vector<1x8x128xf32>
      tpu.vector_store %arg6[%381, %c0_123, %c0_124], %384 {strides = array<i32>} : memref<8x8x128xf32, #tpu.memory_space<vmem>>, vector<1x8x128xf32>,
      %c7_i32 = arith.constant 7 : i32
      %c0_125 = arith.constant 0 : index
      %c0_126 = arith.constant 0 : index
      %385 = vector.load %arg7[%c0_125, %c0_126] : memref<8x128xf32, #tpu.memory_space<vmem>>, vector<8x128xf32>
      %c0_127 = arith.constant 0 : index
      %c0_128 = arith.constant 0 : index
      %386 = vector.load %arg8[%c0_127, %c0_128] : memref<8x128xf32, #tpu.memory_space<vmem>>, vector<8x128xf32>
      %387 = arith.index_cast %c7_i32 : i32 to index
      %c0_129 = arith.constant 0 : index
      %c0_130 = arith.constant 0 : index
      %388 = vector.load %arg3[%387, %c0_129, %c0_130] : memref<8x8x512xbf16, #tpu.memory_space<vmem>>, vector<1x8x512xbf16>
      %389 = vector.shape_cast %388 : vector<1x8x512xbf16> to vector<8x512xbf16>
      %390 = arith.extf %389 : vector<8x512xbf16> to vector<8x512xf32>
      %391 = arith.truncf %385 : vector<8x128xf32> to vector<8x128xbf16>
      %cst_131 = arith.constant dense<0.000000e+00> : vector<8x512xf32>
      %392 = tpu.matmul %391, %13, %cst_131 {dimension_numbers = #tpu.dot_dimension_numbers<[1], [0], [0], [1], [0, 0, 1, 1], [], []>} : vector<8x128xbf16>, vector<128x512xbf16>, vector<8x512xf32> -> vector<8x512xf32>
      %393 = arith.addf %390, %392 : vector<8x512xf32>
      %394 = vector.extract_strided_slice %393 {offsets = [0, 0], sizes = [8, 128], strides = [1, 1]} : vector<8x512xf32> to vector<8x128xf32>
      %395 = arith.negf %394 : vector<8x128xf32>
      %396 = math.exp %395 : vector<8x128xf32>
      %cst_132 = arith.constant 1.000000e+00 : f32
      %397 = vector.broadcast %cst_132 : f32 to vector<8x128xf32>
      %398 = arith.addf %397, %396 : vector<8x128xf32>
      %399 = arith.divf %397, %398 : vector<8x128xf32>
      %400 = vector.extract_strided_slice %393 {offsets = [0, 128], sizes = [8, 128], strides = [1, 1]} : vector<8x512xf32> to vector<8x128xf32>
      %401 = arith.negf %400 : vector<8x128xf32>
      %402 = math.exp %401 : vector<8x128xf32>
      %cst_133 = arith.constant 1.000000e+00 : f32
      %403 = vector.broadcast %cst_133 : f32 to vector<8x128xf32>
      %404 = arith.addf %403, %402 : vector<8x128xf32>
      %405 = arith.divf %403, %404 : vector<8x128xf32>
      %406 = vector.extract_strided_slice %393 {offsets = [0, 256], sizes = [8, 128], strides = [1, 1]} : vector<8x512xf32> to vector<8x128xf32>
      %407 = math.tanh %406 : vector<8x128xf32>
      %408 = vector.extract_strided_slice %393 {offsets = [0, 384], sizes = [8, 128], strides = [1, 1]} : vector<8x512xf32> to vector<8x128xf32>
      %409 = arith.negf %408 : vector<8x128xf32>
      %410 = math.exp %409 : vector<8x128xf32>
      %cst_134 = arith.constant 1.000000e+00 : f32
      %411 = vector.broadcast %cst_134 : f32 to vector<8x128xf32>
      %412 = arith.addf %411, %410 : vector<8x128xf32>
      %413 = arith.divf %411, %412 : vector<8x128xf32>
      %414 = arith.mulf %405, %386 : vector<8x128xf32>
      %415 = arith.mulf %399, %407 : vector<8x128xf32>
      %416 = arith.addf %414, %415 : vector<8x128xf32>
      %417 = math.tanh %416 : vector<8x128xf32>
      %418 = arith.mulf %413, %417 : vector<8x128xf32>
      %419 = arith.addi %0, %c7_i32 : i32
      %420 = vector.broadcast %419 : i32 to vector<8x1xi32>
      %421 = arith.cmpi slt, %420, %12 : vector<8x1xi32>
      %422 = vector.shape_cast %421 : vector<8x1xi1> to vector<8x1xi1>
      %423 = vector.broadcast %422 : vector<8x1xi1> to vector<8x128xi1>
      %424 = arith.select %423, %418, %385 : vector<8x128xi1>, vector<8x128xf32>
      %c0_135 = arith.constant 0 : index
      %c0_136 = arith.constant 0 : index
      %425 = vector.load %arg7[%c0_135, %c0_136] : memref<8x128xf32, #tpu.memory_space<vmem>>, vector<8x128xf32>
      tpu.vector_store %arg7[%c0_135, %c0_136], %424 {strides = array<i32>} : memref<8x128xf32, #tpu.memory_space<vmem>>, vector<8x128xf32>,
      %426 = vector.shape_cast %421 : vector<8x1xi1> to vector<8x1xi1>
      %427 = vector.broadcast %426 : vector<8x1xi1> to vector<8x128xi1>
      %428 = arith.select %427, %416, %386 : vector<8x128xi1>, vector<8x128xf32>
      %c0_137 = arith.constant 0 : index
      %c0_138 = arith.constant 0 : index
      %429 = vector.load %arg8[%c0_137, %c0_138] : memref<8x128xf32, #tpu.memory_space<vmem>>, vector<8x128xf32>
      tpu.vector_store %arg8[%c0_137, %c0_138], %428 {strides = array<i32>} : memref<8x128xf32, #tpu.memory_space<vmem>>, vector<8x128xf32>,
      %cst_139 = arith.constant 0.000000e+00 : f32
      %430 = vector.shape_cast %421 : vector<8x1xi1> to vector<8x1xi1>
      %431 = vector.broadcast %430 : vector<8x1xi1> to vector<8x128xi1>
      %432 = vector.broadcast %cst_139 : f32 to vector<8x128xf32>
      %433 = arith.select %431, %418, %432 : vector<8x128xi1>, vector<8x128xf32>
      %434 = arith.index_cast %c7_i32 : i32 to index
      %c0_140 = arith.constant 0 : index
      %c0_141 = arith.constant 0 : index
      %435 = vector.load %arg6[%434, %c0_140, %c0_141] : memref<8x8x128xf32, #tpu.memory_space<vmem>>, vector<1x8x128xf32>
      %436 = vector.shape_cast %435 : vector<1x8x128xf32> to vector<8x128xf32>
      %437 = vector.shape_cast %433 : vector<8x128xf32> to vector<1x8x128xf32>
      tpu.vector_store %arg6[%434, %c0_140, %c0_141], %437 {strides = array<i32>} : memref<8x8x128xf32, #tpu.memory_space<vmem>>, vector<1x8x128xf32>,
      %c8_i32_142 = arith.constant 8 : i32
    } else {
    }
    return
  }
  func.func @transform_0(%arg0: i32, %arg1: i32, %arg2: memref<1xi32, #tpu.memory_space<smem>>) -> (i32, i32, i32) {
    %c0_i32 = arith.constant 0 : i32
    %c0_i32_0 = arith.constant 0 : i32
    return %arg1, %arg0, %c0_i32 : i32, i32, i32
  }
  func.func @transform_1(%arg0: i32, %arg1: i32, %arg2: memref<1xi32, #tpu.memory_space<smem>>) -> (i32, i32) {
    %c0_i32 = arith.constant 0 : i32
    %c0_i32_0 = arith.constant 0 : i32
    %c0_i32_1 = arith.constant 0 : i32
    return %c0_i32, %c0_i32_0 : i32, i32
  }
  func.func @transform_2(%arg0: i32, %arg1: i32, %arg2: memref<1xi32, #tpu.memory_space<smem>>) -> (i32, i32) {
    %c0_i32 = arith.constant 0 : i32
    %c0_i32_0 = arith.constant 0 : i32
    return %arg0, %c0_i32 : i32, i32
  }
  func.func @transform_3(%arg0: i32, %arg1: i32, %arg2: memref<1xi32, #tpu.memory_space<smem>>) -> (i32, i32, i32) {
    %c0_i32 = arith.constant 0 : i32
    %c0_i32_0 = arith.constant 0 : i32
    return %arg1, %arg0, %c0_i32 : i32, i32, i32
  }
  func.func @transform_4(%arg0: i32, %arg1: i32, %arg2: memref<1xi32, #tpu.memory_space<smem>>) -> (i32, i32) {
    %c0_i32 = arith.constant 0 : i32
    %c0_i32_0 = arith.constant 0 : i32
    return %arg0, %c0_i32 : i32, i32
  }
  func.func @transform_5(%arg0: i32, %arg1: i32, %arg2: memref<1xi32, #tpu.memory_space<smem>>) -> (i32, i32) {
    %c0_i32 = arith.constant 0 : i32
    %c0_i32_0 = arith.constant 0 : i32
    return %arg0, %c0_i32 : i32, i32
  }
}

module attributes {stable_mosaic.version = 11 : i64} {
  func.func @lstm_chunk_kernel(%arg0: i32, %arg1: i32, %arg2: memref<1xi32, #tpu.memory_space<smem>>, %arg3: memref<8x8x512xbf16, #tpu.memory_space<vmem>>, %arg4: memref<128x512xbf16, #tpu.memory_space<vmem>>, %arg5: memref<8x1xi32, #tpu.memory_space<vmem>>, %arg6: memref<8x8x128xf32, #tpu.memory_space<vmem>>, %arg7: memref<8x128xf32, #tpu.memory_space<vmem>>, %arg8: memref<8x128xf32, #tpu.memory_space<vmem>>) attributes {dimension_semantics = [#tpu.dimension_semantics<parallel>, #tpu.dimension_semantics<arbitrary>], iteration_bounds = array<i64: 1, 1>, scalar_prefetch = 1 : i64, scratch_operands = 0 : i64, tpu.core_type = #tpu.core_type<tc>, window_params = [{transform_indices = @transform_0, window_bounds = array<i64: 8, 8, 512>}, {pipeline_mode = #tpu.pipeline_mode<synchronous>, transform_indices = @transform_1, window_bounds = array<i64: 128, 512>}, {transform_indices = @transform_2, window_bounds = array<i64: 8, 1>}, {transform_indices = @transform_3, window_bounds = array<i64: 8, 8, 128>}, {transform_indices = @transform_4, window_bounds = array<i64: 8, 128>}, {transform_indices = @transform_5, window_bounds = array<i64: 8, 128>}]} {
    %c8_i32 = arith.constant 8 : i32
    %0 = arith.muli %arg1, %c8_i32 : i32
    %c0_i32 = arith.constant 0 : i32
    %1 = arith.cmpi eq, %arg1, %c0_i32 : i32
    %2 = arith.extui %1 : i1 to i32
    %c0_i32_0 = arith.constant 0 : i32
    %3 = arith.cmpi ne, %2, %c0_i32_0 : i32
    scf.if %3 {
      %cst = arith.constant 0.000000e+00 : f32
      %12 = vector.broadcast %cst : f32 to vector<8x128xf32>
      %c0 = arith.constant 0 : index
      %c0_3 = arith.constant 0 : index
      %13 = vector.load %arg7[%c0, %c0_3] : memref<8x128xf32, #tpu.memory_space<vmem>>, vector<8x128xf32>
      tpu.vector_store %arg7[%c0, %c0_3], %12 {strides = array<i32>} : memref<8x128xf32, #tpu.memory_space<vmem>>, vector<8x128xf32>,
      %cst_4 = arith.constant 0.000000e+00 : f32
      %14 = vector.broadcast %cst_4 : f32 to vector<8x128xf32>
      %c0_5 = arith.constant 0 : index
      %c0_6 = arith.constant 0 : index
      %15 = vector.load %arg8[%c0_5, %c0_6] : memref<8x128xf32, #tpu.memory_space<vmem>>, vector<8x128xf32>
      tpu.vector_store %arg8[%c0_5, %c0_6], %14 {strides = array<i32>} : memref<8x128xf32, #tpu.memory_space<vmem>>, vector<8x128xf32>,
    } else {
    }
    %4 = arith.index_cast %arg0 : i32 to index
    %5 = memref.load %arg2[%4] : memref<1xi32, #tpu.memory_space<smem>>
    %6 = arith.cmpi sge, %0, %5 : i32
    %7 = arith.extui %6 : i1 to i32
    %c0_i32_1 = arith.constant 0 : i32
    %8 = arith.cmpi ne, %7, %c0_i32_1 : i32
    scf.if %8 {
      %cst = arith.constant 0.000000e+00 : f32
      %12 = vector.broadcast %cst : f32 to vector<8x8x128xf32>
      %c0 = arith.constant 0 : index
      %c0_3 = arith.constant 0 : index
      %c0_4 = arith.constant 0 : index
      %13 = vector.load %arg6[%c0, %c0_3, %c0_4] : memref<8x8x128xf32, #tpu.memory_space<vmem>>, vector<8x8x128xf32>
      tpu.vector_store %arg6[%c0, %c0_3, %c0_4], %12 {strides = array<i32>} : memref<8x8x128xf32, #tpu.memory_space<vmem>>, vector<8x8x128xf32>,
    } else {
    }
    %9 = arith.cmpi slt, %0, %5 : i32
    %10 = arith.extui %9 : i1 to i32
    %c0_i32_2 = arith.constant 0 : i32
    %11 = arith.cmpi ne, %10, %c0_i32_2 : i32
    scf.if %11 {
      %c0 = arith.constant 0 : index
      %c0_3 = arith.constant 0 : index
      %12 = vector.load %arg5[%c0, %c0_3] : memref<8x1xi32, #tpu.memory_space<vmem>>, vector<8x1xi32>
      %c0_4 = arith.constant 0 : index
      %c0_5 = arith.constant 0 : index
      %13 = vector.load %arg4[%c0_4, %c0_5] : memref<128x512xbf16, #tpu.memory_space<vmem>>, vector<128x512xbf16>
      %c0_i32_6 = arith.constant 0 : i32
      %c0_7 = arith.constant 0 : index
      %c0_8 = arith.constant 0 : index
      %14 = vector.load %arg7[%c0_7, %c0_8] : memref<8x128xf32, #tpu.memory_space<vmem>>, vector<8x128xf32>
      %c0_9 = arith.constant 0 : index
      %c0_10 = arith.constant 0 : index
      %15 = vector.load %arg8[%c0_9, %c0_10] : memref<8x128xf32, #tpu.memory_space<vmem>>, vector<8x128xf32>
      %16 = arith.index_cast %c0_i32_6 : i32 to index
      %c0_11 = arith.constant 0 : index
      %c0_12 = arith.constant 0 : index
      %17 = vector.load %arg3[%16, %c0_11, %c0_12] : memref<8x8x512xbf16, #tpu.memory_space<vmem>>, vector<1x8x512xbf16>
      %18 = vector.shape_cast %17 : vector<1x8x512xbf16> to vector<8x512xbf16>
      %19 = arith.extf %18 : vector<8x512xbf16> to vector<8x512xf32>
      %20 = arith.truncf %14 : vector<8x128xf32> to vector<8x128xbf16>
      %cst = arith.constant dense<0.000000e+00> : vector<8x512xf32>
      %21 = tpu.matmul %20, %13, %cst {dimension_numbers = #tpu.dot_dimension_numbers<[1], [0], [0], [1], [0, 0, 1, 1], [], []>} : vector<8x128xbf16>, vector<128x512xbf16>, vector<8x512xf32> -> vector<8x512xf32>
      %22 = arith.addf %19, %21 : vector<8x512xf32>
      %23 = vector.extract_strided_slice %22 {offsets = [0, 0], sizes = [8, 128], strides = [1, 1]} : vector<8x512xf32> to vector<8x128xf32>
      %24 = arith.negf %23 : vector<8x128xf32>
      %25 = math.exp %24 : vector<8x128xf32>
      %cst_13 = arith.constant 1.000000e+00 : f32
      %26 = vector.broadcast %cst_13 : f32 to vector<8x128xf32>
      %27 = arith.addf %26, %25 : vector<8x128xf32>
      %28 = arith.divf %26, %27 : vector<8x128xf32>
      %29 = vector.extract_strided_slice %22 {offsets = [0, 128], sizes = [8, 128], strides = [1, 1]} : vector<8x512xf32> to vector<8x128xf32>
      %30 = arith.negf %29 : vector<8x128xf32>
      %31 = math.exp %30 : vector<8x128xf32>
      %cst_14 = arith.constant 1.000000e+00 : f32
      %32 = vector.broadcast %cst_14 : f32 to vector<8x128xf32>
      %33 = arith.addf %32, %31 : vector<8x128xf32>
      %34 = arith.divf %32, %33 : vector<8x128xf32>
      %35 = vector.extract_strided_slice %22 {offsets = [0, 256], sizes = [8, 128], strides = [1, 1]} : vector<8x512xf32> to vector<8x128xf32>
      %36 = math.tanh %35 : vector<8x128xf32>
      %37 = vector.extract_strided_slice %22 {offsets = [0, 384], sizes = [8, 128], strides = [1, 1]} : vector<8x512xf32> to vector<8x128xf32>
      %38 = arith.negf %37 : vector<8x128xf32>
      %39 = math.exp %38 : vector<8x128xf32>
      %cst_15 = arith.constant 1.000000e+00 : f32
      %40 = vector.broadcast %cst_15 : f32 to vector<8x128xf32>
      %41 = arith.addf %40, %39 : vector<8x128xf32>
      %42 = arith.divf %40, %41 : vector<8x128xf32>
      %43 = arith.mulf %34, %15 : vector<8x128xf32>
      %44 = arith.mulf %28, %36 : vector<8x128xf32>
      %45 = arith.addf %43, %44 : vector<8x128xf32>
      %46 = math.tanh %45 : vector<8x128xf32>
      %47 = arith.mulf %42, %46 : vector<8x128xf32>
      %48 = arith.addi %0, %c0_i32_6 : i32
      %49 = vector.broadcast %48 : i32 to vector<8x1xi32>
      %50 = arith.cmpi slt, %49, %12 : vector<8x1xi32>
      %51 = vector.shape_cast %50 : vector<8x1xi1> to vector<8x1xi1>
      %52 = vector.broadcast %51 : vector<8x1xi1> to vector<8x128xi1>
      %53 = arith.select %52, %47, %14 : vector<8x128xi1>, vector<8x128xf32>
      %c0_16 = arith.constant 0 : index
      %c0_17 = arith.constant 0 : index
      %54 = vector.load %arg7[%c0_16, %c0_17] : memref<8x128xf32, #tpu.memory_space<vmem>>, vector<8x128xf32>
      tpu.vector_store %arg7[%c0_16, %c0_17], %53 {strides = array<i32>} : memref<8x128xf32, #tpu.memory_space<vmem>>, vector<8x128xf32>,
      %55 = vector.shape_cast %50 : vector<8x1xi1> to vector<8x1xi1>
      %56 = vector.broadcast %55 : vector<8x1xi1> to vector<8x128xi1>
      %57 = arith.select %56, %45, %15 : vector<8x128xi1>, vector<8x128xf32>
      %c0_18 = arith.constant 0 : index
      %c0_19 = arith.constant 0 : index
      %58 = vector.load %arg8[%c0_18, %c0_19] : memref<8x128xf32, #tpu.memory_space<vmem>>, vector<8x128xf32>
      tpu.vector_store %arg8[%c0_18, %c0_19], %57 {strides = array<i32>} : memref<8x128xf32, #tpu.memory_space<vmem>>, vector<8x128xf32>,
      %cst_20 = arith.constant 0.000000e+00 : f32
      %59 = vector.shape_cast %50 : vector<8x1xi1> to vector<8x1xi1>
      %60 = vector.broadcast %59 : vector<8x1xi1> to vector<8x128xi1>
      %61 = vector.broadcast %cst_20 : f32 to vector<8x128xf32>
      %62 = arith.select %60, %47, %61 : vector<8x128xi1>, vector<8x128xf32>
      %63 = arith.index_cast %c0_i32_6 : i32 to index
      %c0_21 = arith.constant 0 : index
      %c0_22 = arith.constant 0 : index
      %64 = vector.load %arg6[%63, %c0_21, %c0_22] : memref<8x8x128xf32, #tpu.memory_space<vmem>>, vector<1x8x128xf32>
      %65 = vector.shape_cast %64 : vector<1x8x128xf32> to vector<8x128xf32>
      %66 = vector.shape_cast %62 : vector<8x128xf32> to vector<1x8x128xf32>
      tpu.vector_store %arg6[%63, %c0_21, %c0_22], %66 {strides = array<i32>} : memref<8x8x128xf32, #tpu.memory_space<vmem>>, vector<1x8x128xf32>,
      %c1_i32 = arith.constant 1 : i32
      %c0_23 = arith.constant 0 : index
      %c0_24 = arith.constant 0 : index
      %67 = vector.load %arg7[%c0_23, %c0_24] : memref<8x128xf32, #tpu.memory_space<vmem>>, vector<8x128xf32>
      %c0_25 = arith.constant 0 : index
      %c0_26 = arith.constant 0 : index
      %68 = vector.load %arg8[%c0_25, %c0_26] : memref<8x128xf32, #tpu.memory_space<vmem>>, vector<8x128xf32>
      %69 = arith.index_cast %c1_i32 : i32 to index
      %c0_27 = arith.constant 0 : index
      %c0_28 = arith.constant 0 : index
      %70 = vector.load %arg3[%69, %c0_27, %c0_28] : memref<8x8x512xbf16, #tpu.memory_space<vmem>>, vector<1x8x512xbf16>
      %71 = vector.shape_cast %70 : vector<1x8x512xbf16> to vector<8x512xbf16>
      %72 = arith.extf %71 : vector<8x512xbf16> to vector<8x512xf32>
      %73 = arith.truncf %67 : vector<8x128xf32> to vector<8x128xbf16>
      %cst_29 = arith.constant dense<0.000000e+00> : vector<8x512xf32>
      %74 = tpu.matmul %73, %13, %cst_29 {dimension_numbers = #tpu.dot_dimension_numbers<[1], [0], [0], [1], [0, 0, 1, 1], [], []>} : vector<8x128xbf16>, vector<128x512xbf16>, vector<8x512xf32> -> vector<8x512xf32>
      %75 = arith.addf %72, %74 : vector<8x512xf32>
      %76 = vector.extract_strided_slice %75 {offsets = [0, 0], sizes = [8, 128], strides = [1, 1]} : vector<8x512xf32> to vector<8x128xf32>
      %77 = arith.negf %76 : vector<8x128xf32>
      %78 = math.exp %77 : vector<8x128xf32>
      %cst_30 = arith.constant 1.000000e+00 : f32
      %79 = vector.broadcast %cst_30 : f32 to vector<8x128xf32>
      %80 = arith.addf %79, %78 : vector<8x128xf32>
      %81 = arith.divf %79, %80 : vector<8x128xf32>
      %82 = vector.extract_strided_slice %75 {offsets = [0, 128], sizes = [8, 128], strides = [1, 1]} : vector<8x512xf32> to vector<8x128xf32>
      %83 = arith.negf %82 : vector<8x128xf32>
      %84 = math.exp %83 : vector<8x128xf32>
      %cst_31 = arith.constant 1.000000e+00 : f32
      %85 = vector.broadcast %cst_31 : f32 to vector<8x128xf32>
      %86 = arith.addf %85, %84 : vector<8x128xf32>
      %87 = arith.divf %85, %86 : vector<8x128xf32>
      %88 = vector.extract_strided_slice %75 {offsets = [0, 256], sizes = [8, 128], strides = [1, 1]} : vector<8x512xf32> to vector<8x128xf32>
      %89 = math.tanh %88 : vector<8x128xf32>
      %90 = vector.extract_strided_slice %75 {offsets = [0, 384], sizes = [8, 128], strides = [1, 1]} : vector<8x512xf32> to vector<8x128xf32>
      %91 = arith.negf %90 : vector<8x128xf32>
      %92 = math.exp %91 : vector<8x128xf32>
      %cst_32 = arith.constant 1.000000e+00 : f32
      %93 = vector.broadcast %cst_32 : f32 to vector<8x128xf32>
      %94 = arith.addf %93, %92 : vector<8x128xf32>
      %95 = arith.divf %93, %94 : vector<8x128xf32>
      %96 = arith.mulf %87, %68 : vector<8x128xf32>
      %97 = arith.mulf %81, %89 : vector<8x128xf32>
      %98 = arith.addf %96, %97 : vector<8x128xf32>
      %99 = math.tanh %98 : vector<8x128xf32>
      %100 = arith.mulf %95, %99 : vector<8x128xf32>
      %101 = arith.addi %0, %c1_i32 : i32
      %102 = vector.broadcast %101 : i32 to vector<8x1xi32>
      %103 = arith.cmpi slt, %102, %12 : vector<8x1xi32>
      %104 = vector.shape_cast %103 : vector<8x1xi1> to vector<8x1xi1>
      %105 = vector.broadcast %104 : vector<8x1xi1> to vector<8x128xi1>
      %106 = arith.select %105, %100, %67 : vector<8x128xi1>, vector<8x128xf32>
      %c0_33 = arith.constant 0 : index
      %c0_34 = arith.constant 0 : index
      %107 = vector.load %arg7[%c0_33, %c0_34] : memref<8x128xf32, #tpu.memory_space<vmem>>, vector<8x128xf32>
      tpu.vector_store %arg7[%c0_33, %c0_34], %106 {strides = array<i32>} : memref<8x128xf32, #tpu.memory_space<vmem>>, vector<8x128xf32>,
      %108 = vector.shape_cast %103 : vector<8x1xi1> to vector<8x1xi1>
      %109 = vector.broadcast %108 : vector<8x1xi1> to vector<8x128xi1>
      %110 = arith.select %109, %98, %68 : vector<8x128xi1>, vector<8x128xf32>
      %c0_35 = arith.constant 0 : index
      %c0_36 = arith.constant 0 : index
      %111 = vector.load %arg8[%c0_35, %c0_36] : memref<8x128xf32, #tpu.memory_space<vmem>>, vector<8x128xf32>
      tpu.vector_store %arg8[%c0_35, %c0_36], %110 {strides = array<i32>} : memref<8x128xf32, #tpu.memory_space<vmem>>, vector<8x128xf32>,
      %cst_37 = arith.constant 0.000000e+00 : f32
      %112 = vector.shape_cast %103 : vector<8x1xi1> to vector<8x1xi1>
      %113 = vector.broadcast %112 : vector<8x1xi1> to vector<8x128xi1>
      %114 = vector.broadcast %cst_37 : f32 to vector<8x128xf32>
      %115 = arith.select %113, %100, %114 : vector<8x128xi1>, vector<8x128xf32>
      %116 = arith.index_cast %c1_i32 : i32 to index
      %c0_38 = arith.constant 0 : index
      %c0_39 = arith.constant 0 : index
      %117 = vector.load %arg6[%116, %c0_38, %c0_39] : memref<8x8x128xf32, #tpu.memory_space<vmem>>, vector<1x8x128xf32>
      %118 = vector.shape_cast %117 : vector<1x8x128xf32> to vector<8x128xf32>
      %119 = vector.shape_cast %115 : vector<8x128xf32> to vector<1x8x128xf32>
      tpu.vector_store %arg6[%116, %c0_38, %c0_39], %119 {strides = array<i32>} : memref<8x8x128xf32, #tpu.memory_space<vmem>>, vector<1x8x128xf32>,
      %c2_i32 = arith.constant 2 : i32
      %c0_40 = arith.constant 0 : index
      %c0_41 = arith.constant 0 : index
      %120 = vector.load %arg7[%c0_40, %c0_41] : memref<8x128xf32, #tpu.memory_space<vmem>>, vector<8x128xf32>
      %c0_42 = arith.constant 0 : index
      %c0_43 = arith.constant 0 : index
      %121 = vector.load %arg8[%c0_42, %c0_43] : memref<8x128xf32, #tpu.memory_space<vmem>>, vector<8x128xf32>
      %122 = arith.index_cast %c2_i32 : i32 to index
      %c0_44 = arith.constant 0 : index
      %c0_45 = arith.constant 0 : index
      %123 = vector.load %arg3[%122, %c0_44, %c0_45] : memref<8x8x512xbf16, #tpu.memory_space<vmem>>, vector<1x8x512xbf16>
      %124 = vector.shape_cast %123 : vector<1x8x512xbf16> to vector<8x512xbf16>
      %125 = arith.extf %124 : vector<8x512xbf16> to vector<8x512xf32>
      %126 = arith.truncf %120 : vector<8x128xf32> to vector<8x128xbf16>
      %cst_46 = arith.constant dense<0.000000e+00> : vector<8x512xf32>
      %127 = tpu.matmul %126, %13, %cst_46 {dimension_numbers = #tpu.dot_dimension_numbers<[1], [0], [0], [1], [0, 0, 1, 1], [], []>} : vector<8x128xbf16>, vector<128x512xbf16>, vector<8x512xf32> -> vector<8x512xf32>
      %128 = arith.addf %125, %127 : vector<8x512xf32>
      %129 = vector.extract_strided_slice %128 {offsets = [0, 0], sizes = [8, 128], strides = [1, 1]} : vector<8x512xf32> to vector<8x128xf32>
      %130 = arith.negf %129 : vector<8x128xf32>
      %131 = math.exp %130 : vector<8x128xf32>
      %cst_47 = arith.constant 1.000000e+00 : f32
      %132 = vector.broadcast %cst_47 : f32 to vector<8x128xf32>
      %133 = arith.addf %132, %131 : vector<8x128xf32>
      %134 = arith.divf %132, %133 : vector<8x128xf32>
      %135 = vector.extract_strided_slice %128 {offsets = [0, 128], sizes = [8, 128], strides = [1, 1]} : vector<8x512xf32> to vector<8x128xf32>
      %136 = arith.negf %135 : vector<8x128xf32>
      %137 = math.exp %136 : vector<8x128xf32>
      %cst_48 = arith.constant 1.000000e+00 : f32
      %138 = vector.broadcast %cst_48 : f32 to vector<8x128xf32>
      %139 = arith.addf %138, %137 : vector<8x128xf32>
      %140 = arith.divf %138, %139 : vector<8x128xf32>
      %141 = vector.extract_strided_slice %128 {offsets = [0, 256], sizes = [8, 128], strides = [1, 1]} : vector<8x512xf32> to vector<8x128xf32>
      %142 = math.tanh %141 : vector<8x128xf32>
      %143 = vector.extract_strided_slice %128 {offsets = [0, 384], sizes = [8, 128], strides = [1, 1]} : vector<8x512xf32> to vector<8x128xf32>
      %144 = arith.negf %143 : vector<8x128xf32>
      %145 = math.exp %144 : vector<8x128xf32>
      %cst_49 = arith.constant 1.000000e+00 : f32
      %146 = vector.broadcast %cst_49 : f32 to vector<8x128xf32>
      %147 = arith.addf %146, %145 : vector<8x128xf32>
      %148 = arith.divf %146, %147 : vector<8x128xf32>
      %149 = arith.mulf %140, %121 : vector<8x128xf32>
      %150 = arith.mulf %134, %142 : vector<8x128xf32>
      %151 = arith.addf %149, %150 : vector<8x128xf32>
      %152 = math.tanh %151 : vector<8x128xf32>
      %153 = arith.mulf %148, %152 : vector<8x128xf32>
      %154 = arith.addi %0, %c2_i32 : i32
      %155 = vector.broadcast %154 : i32 to vector<8x1xi32>
      %156 = arith.cmpi slt, %155, %12 : vector<8x1xi32>
      %157 = vector.shape_cast %156 : vector<8x1xi1> to vector<8x1xi1>
      %158 = vector.broadcast %157 : vector<8x1xi1> to vector<8x128xi1>
      %159 = arith.select %158, %153, %120 : vector<8x128xi1>, vector<8x128xf32>
      %c0_50 = arith.constant 0 : index
      %c0_51 = arith.constant 0 : index
      %160 = vector.load %arg7[%c0_50, %c0_51] : memref<8x128xf32, #tpu.memory_space<vmem>>, vector<8x128xf32>
      tpu.vector_store %arg7[%c0_50, %c0_51], %159 {strides = array<i32>} : memref<8x128xf32, #tpu.memory_space<vmem>>, vector<8x128xf32>,
      %161 = vector.shape_cast %156 : vector<8x1xi1> to vector<8x1xi1>
      %162 = vector.broadcast %161 : vector<8x1xi1> to vector<8x128xi1>
      %163 = arith.select %162, %151, %121 : vector<8x128xi1>, vector<8x128xf32>
      %c0_52 = arith.constant 0 : index
      %c0_53 = arith.constant 0 : index
      %164 = vector.load %arg8[%c0_52, %c0_53] : memref<8x128xf32, #tpu.memory_space<vmem>>, vector<8x128xf32>
      tpu.vector_store %arg8[%c0_52, %c0_53], %163 {strides = array<i32>} : memref<8x128xf32, #tpu.memory_space<vmem>>, vector<8x128xf32>,
      %cst_54 = arith.constant 0.000000e+00 : f32
      %165 = vector.shape_cast %156 : vector<8x1xi1> to vector<8x1xi1>
      %166 = vector.broadcast %165 : vector<8x1xi1> to vector<8x128xi1>
      %167 = vector.broadcast %cst_54 : f32 to vector<8x128xf32>
      %168 = arith.select %166, %153, %167 : vector<8x128xi1>, vector<8x128xf32>
      %169 = arith.index_cast %c2_i32 : i32 to index
      %c0_55 = arith.constant 0 : index
      %c0_56 = arith.constant 0 : index
      %170 = vector.load %arg6[%169, %c0_55, %c0_56] : memref<8x8x128xf32, #tpu.memory_space<vmem>>, vector<1x8x128xf32>
      %171 = vector.shape_cast %170 : vector<1x8x128xf32> to vector<8x128xf32>
      %172 = vector.shape_cast %168 : vector<8x128xf32> to vector<1x8x128xf32>
      tpu.vector_store %arg6[%169, %c0_55, %c0_56], %172 {strides = array<i32>} : memref<8x8x128xf32, #tpu.memory_space<vmem>>, vector<1x8x128xf32>,
      %c3_i32 = arith.constant 3 : i32
      %c0_57 = arith.constant 0 : index
      %c0_58 = arith.constant 0 : index
      %173 = vector.load %arg7[%c0_57, %c0_58] : memref<8x128xf32, #tpu.memory_space<vmem>>, vector<8x128xf32>
      %c0_59 = arith.constant 0 : index
      %c0_60 = arith.constant 0 : index
      %174 = vector.load %arg8[%c0_59, %c0_60] : memref<8x128xf32, #tpu.memory_space<vmem>>, vector<8x128xf32>
      %175 = arith.index_cast %c3_i32 : i32 to index
      %c0_61 = arith.constant 0 : index
      %c0_62 = arith.constant 0 : index
      %176 = vector.load %arg3[%175, %c0_61, %c0_62] : memref<8x8x512xbf16, #tpu.memory_space<vmem>>, vector<1x8x512xbf16>
      %177 = vector.shape_cast %176 : vector<1x8x512xbf16> to vector<8x512xbf16>
      %178 = arith.extf %177 : vector<8x512xbf16> to vector<8x512xf32>
      %179 = arith.truncf %173 : vector<8x128xf32> to vector<8x128xbf16>
      %cst_63 = arith.constant dense<0.000000e+00> : vector<8x512xf32>
      %180 = tpu.matmul %179, %13, %cst_63 {dimension_numbers = #tpu.dot_dimension_numbers<[1], [0], [0], [1], [0, 0, 1, 1], [], []>} : vector<8x128xbf16>, vector<128x512xbf16>, vector<8x512xf32> -> vector<8x512xf32>
      %181 = arith.addf %178, %180 : vector<8x512xf32>
      %182 = vector.extract_strided_slice %181 {offsets = [0, 0], sizes = [8, 128], strides = [1, 1]} : vector<8x512xf32> to vector<8x128xf32>
      %183 = arith.negf %182 : vector<8x128xf32>
      %184 = math.exp %183 : vector<8x128xf32>
      %cst_64 = arith.constant 1.000000e+00 : f32
      %185 = vector.broadcast %cst_64 : f32 to vector<8x128xf32>
      %186 = arith.addf %185, %184 : vector<8x128xf32>
      %187 = arith.divf %185, %186 : vector<8x128xf32>
      %188 = vector.extract_strided_slice %181 {offsets = [0, 128], sizes = [8, 128], strides = [1, 1]} : vector<8x512xf32> to vector<8x128xf32>
      %189 = arith.negf %188 : vector<8x128xf32>
      %190 = math.exp %189 : vector<8x128xf32>
      %cst_65 = arith.constant 1.000000e+00 : f32
      %191 = vector.broadcast %cst_65 : f32 to vector<8x128xf32>
      %192 = arith.addf %191, %190 : vector<8x128xf32>
      %193 = arith.divf %191, %192 : vector<8x128xf32>
      %194 = vector.extract_strided_slice %181 {offsets = [0, 256], sizes = [8, 128], strides = [1, 1]} : vector<8x512xf32> to vector<8x128xf32>
      %195 = math.tanh %194 : vector<8x128xf32>
      %196 = vector.extract_strided_slice %181 {offsets = [0, 384], sizes = [8, 128], strides = [1, 1]} : vector<8x512xf32> to vector<8x128xf32>
      %197 = arith.negf %196 : vector<8x128xf32>
      %198 = math.exp %197 : vector<8x128xf32>
      %cst_66 = arith.constant 1.000000e+00 : f32
      %199 = vector.broadcast %cst_66 : f32 to vector<8x128xf32>
      %200 = arith.addf %199, %198 : vector<8x128xf32>
      %201 = arith.divf %199, %200 : vector<8x128xf32>
      %202 = arith.mulf %193, %174 : vector<8x128xf32>
      %203 = arith.mulf %187, %195 : vector<8x128xf32>
      %204 = arith.addf %202, %203 : vector<8x128xf32>
      %205 = math.tanh %204 : vector<8x128xf32>
      %206 = arith.mulf %201, %205 : vector<8x128xf32>
      %207 = arith.addi %0, %c3_i32 : i32
      %208 = vector.broadcast %207 : i32 to vector<8x1xi32>
      %209 = arith.cmpi slt, %208, %12 : vector<8x1xi32>
      %210 = vector.shape_cast %209 : vector<8x1xi1> to vector<8x1xi1>
      %211 = vector.broadcast %210 : vector<8x1xi1> to vector<8x128xi1>
      %212 = arith.select %211, %206, %173 : vector<8x128xi1>, vector<8x128xf32>
      %c0_67 = arith.constant 0 : index
      %c0_68 = arith.constant 0 : index
      %213 = vector.load %arg7[%c0_67, %c0_68] : memref<8x128xf32, #tpu.memory_space<vmem>>, vector<8x128xf32>
      tpu.vector_store %arg7[%c0_67, %c0_68], %212 {strides = array<i32>} : memref<8x128xf32, #tpu.memory_space<vmem>>, vector<8x128xf32>,
      %214 = vector.shape_cast %209 : vector<8x1xi1> to vector<8x1xi1>
      %215 = vector.broadcast %214 : vector<8x1xi1> to vector<8x128xi1>
      %216 = arith.select %215, %204, %174 : vector<8x128xi1>, vector<8x128xf32>
      %c0_69 = arith.constant 0 : index
      %c0_70 = arith.constant 0 : index
      %217 = vector.load %arg8[%c0_69, %c0_70] : memref<8x128xf32, #tpu.memory_space<vmem>>, vector<8x128xf32>
      tpu.vector_store %arg8[%c0_69, %c0_70], %216 {strides = array<i32>} : memref<8x128xf32, #tpu.memory_space<vmem>>, vector<8x128xf32>,
      %cst_71 = arith.constant 0.000000e+00 : f32
      %218 = vector.shape_cast %209 : vector<8x1xi1> to vector<8x1xi1>
      %219 = vector.broadcast %218 : vector<8x1xi1> to vector<8x128xi1>
      %220 = vector.broadcast %cst_71 : f32 to vector<8x128xf32>
      %221 = arith.select %219, %206, %220 : vector<8x128xi1>, vector<8x128xf32>
      %222 = arith.index_cast %c3_i32 : i32 to index
      %c0_72 = arith.constant 0 : index
      %c0_73 = arith.constant 0 : index
      %223 = vector.load %arg6[%222, %c0_72, %c0_73] : memref<8x8x128xf32, #tpu.memory_space<vmem>>, vector<1x8x128xf32>
      %224 = vector.shape_cast %223 : vector<1x8x128xf32> to vector<8x128xf32>
      %225 = vector.shape_cast %221 : vector<8x128xf32> to vector<1x8x128xf32>
      tpu.vector_store %arg6[%222, %c0_72, %c0_73], %225 {strides = array<i32>} : memref<8x8x128xf32, #tpu.memory_space<vmem>>, vector<1x8x128xf32>,
      %c4_i32 = arith.constant 4 : i32
      %c0_74 = arith.constant 0 : index
      %c0_75 = arith.constant 0 : index
      %226 = vector.load %arg7[%c0_74, %c0_75] : memref<8x128xf32, #tpu.memory_space<vmem>>, vector<8x128xf32>
      %c0_76 = arith.constant 0 : index
      %c0_77 = arith.constant 0 : index
      %227 = vector.load %arg8[%c0_76, %c0_77] : memref<8x128xf32, #tpu.memory_space<vmem>>, vector<8x128xf32>
      %228 = arith.index_cast %c4_i32 : i32 to index
      %c0_78 = arith.constant 0 : index
      %c0_79 = arith.constant 0 : index
      %229 = vector.load %arg3[%228, %c0_78, %c0_79] : memref<8x8x512xbf16, #tpu.memory_space<vmem>>, vector<1x8x512xbf16>
      %230 = vector.shape_cast %229 : vector<1x8x512xbf16> to vector<8x512xbf16>
      %231 = arith.extf %230 : vector<8x512xbf16> to vector<8x512xf32>
      %232 = arith.truncf %226 : vector<8x128xf32> to vector<8x128xbf16>
      %cst_80 = arith.constant dense<0.000000e+00> : vector<8x512xf32>
      %233 = tpu.matmul %232, %13, %cst_80 {dimension_numbers = #tpu.dot_dimension_numbers<[1], [0], [0], [1], [0, 0, 1, 1], [], []>} : vector<8x128xbf16>, vector<128x512xbf16>, vector<8x512xf32> -> vector<8x512xf32>
      %234 = arith.addf %231, %233 : vector<8x512xf32>
      %235 = vector.extract_strided_slice %234 {offsets = [0, 0], sizes = [8, 128], strides = [1, 1]} : vector<8x512xf32> to vector<8x128xf32>
      %236 = arith.negf %235 : vector<8x128xf32>
      %237 = math.exp %236 : vector<8x128xf32>
      %cst_81 = arith.constant 1.000000e+00 : f32
      %238 = vector.broadcast %cst_81 : f32 to vector<8x128xf32>
      %239 = arith.addf %238, %237 : vector<8x128xf32>
      %240 = arith.divf %238, %239 : vector<8x128xf32>
      %241 = vector.extract_strided_slice %234 {offsets = [0, 128], sizes = [8, 128], strides = [1, 1]} : vector<8x512xf32> to vector<8x128xf32>
      %242 = arith.negf %241 : vector<8x128xf32>
      %243 = math.exp %242 : vector<8x128xf32>
      %cst_82 = arith.constant 1.000000e+00 : f32
      %244 = vector.broadcast %cst_82 : f32 to vector<8x128xf32>
      %245 = arith.addf %244, %243 : vector<8x128xf32>
      %246 = arith.divf %244, %245 : vector<8x128xf32>
      %247 = vector.extract_strided_slice %234 {offsets = [0, 256], sizes = [8, 128], strides = [1, 1]} : vector<8x512xf32> to vector<8x128xf32>
      %248 = math.tanh %247 : vector<8x128xf32>
      %249 = vector.extract_strided_slice %234 {offsets = [0, 384], sizes = [8, 128], strides = [1, 1]} : vector<8x512xf32> to vector<8x128xf32>
      %250 = arith.negf %249 : vector<8x128xf32>
      %251 = math.exp %250 : vector<8x128xf32>
      %cst_83 = arith.constant 1.000000e+00 : f32
      %252 = vector.broadcast %cst_83 : f32 to vector<8x128xf32>
      %253 = arith.addf %252, %251 : vector<8x128xf32>
      %254 = arith.divf %252, %253 : vector<8x128xf32>
      %255 = arith.mulf %246, %227 : vector<8x128xf32>
      %256 = arith.mulf %240, %248 : vector<8x128xf32>
      %257 = arith.addf %255, %256 : vector<8x128xf32>
      %258 = math.tanh %257 : vector<8x128xf32>
      %259 = arith.mulf %254, %258 : vector<8x128xf32>
      %260 = arith.addi %0, %c4_i32 : i32
      %261 = vector.broadcast %260 : i32 to vector<8x1xi32>
      %262 = arith.cmpi slt, %261, %12 : vector<8x1xi32>
      %263 = vector.shape_cast %262 : vector<8x1xi1> to vector<8x1xi1>
      %264 = vector.broadcast %263 : vector<8x1xi1> to vector<8x128xi1>
      %265 = arith.select %264, %259, %226 : vector<8x128xi1>, vector<8x128xf32>
      %c0_84 = arith.constant 0 : index
      %c0_85 = arith.constant 0 : index
      %266 = vector.load %arg7[%c0_84, %c0_85] : memref<8x128xf32, #tpu.memory_space<vmem>>, vector<8x128xf32>
      tpu.vector_store %arg7[%c0_84, %c0_85], %265 {strides = array<i32>} : memref<8x128xf32, #tpu.memory_space<vmem>>, vector<8x128xf32>,
      %267 = vector.shape_cast %262 : vector<8x1xi1> to vector<8x1xi1>
      %268 = vector.broadcast %267 : vector<8x1xi1> to vector<8x128xi1>
      %269 = arith.select %268, %257, %227 : vector<8x128xi1>, vector<8x128xf32>
      %c0_86 = arith.constant 0 : index
      %c0_87 = arith.constant 0 : index
      %270 = vector.load %arg8[%c0_86, %c0_87] : memref<8x128xf32, #tpu.memory_space<vmem>>, vector<8x128xf32>
      tpu.vector_store %arg8[%c0_86, %c0_87], %269 {strides = array<i32>} : memref<8x128xf32, #tpu.memory_space<vmem>>, vector<8x128xf32>,
      %cst_88 = arith.constant 0.000000e+00 : f32
      %271 = vector.shape_cast %262 : vector<8x1xi1> to vector<8x1xi1>
      %272 = vector.broadcast %271 : vector<8x1xi1> to vector<8x128xi1>
      %273 = vector.broadcast %cst_88 : f32 to vector<8x128xf32>
      %274 = arith.select %272, %259, %273 : vector<8x128xi1>, vector<8x128xf32>
      %275 = arith.index_cast %c4_i32 : i32 to index
      %c0_89 = arith.constant 0 : index
      %c0_90 = arith.constant 0 : index
      %276 = vector.load %arg6[%275, %c0_89, %c0_90] : memref<8x8x128xf32, #tpu.memory_space<vmem>>, vector<1x8x128xf32>
      %277 = vector.shape_cast %276 : vector<1x8x128xf32> to vector<8x128xf32>
      %278 = vector.shape_cast %274 : vector<8x128xf32> to vector<1x8x128xf32>
      tpu.vector_store %arg6[%275, %c0_89, %c0_90], %278 {strides = array<i32>} : memref<8x8x128xf32, #tpu.memory_space<vmem>>, vector<1x8x128xf32>,
      %c5_i32 = arith.constant 5 : i32
      %c0_91 = arith.constant 0 : index
      %c0_92 = arith.constant 0 : index
      %279 = vector.load %arg7[%c0_91, %c0_92] : memref<8x128xf32, #tpu.memory_space<vmem>>, vector<8x128xf32>
      %c0_93 = arith.constant 0 : index
      %c0_94 = arith.constant 0 : index
      %280 = vector.load %arg8[%c0_93, %c0_94] : memref<8x128xf32, #tpu.memory_space<vmem>>, vector<8x128xf32>
      %281 = arith.index_cast %c5_i32 : i32 to index
      %c0_95 = arith.constant 0 : index
      %c0_96 = arith.constant 0 : index
      %282 = vector.load %arg3[%281, %c0_95, %c0_96] : memref<8x8x512xbf16, #tpu.memory_space<vmem>>, vector<1x8x512xbf16>
      %283 = vector.shape_cast %282 : vector<1x8x512xbf16> to vector<8x512xbf16>
      %284 = arith.extf %283 : vector<8x512xbf16> to vector<8x512xf32>
      %285 = arith.truncf %279 : vector<8x128xf32> to vector<8x128xbf16>
      %cst_97 = arith.constant dense<0.000000e+00> : vector<8x512xf32>
      %286 = tpu.matmul %285, %13, %cst_97 {dimension_numbers = #tpu.dot_dimension_numbers<[1], [0], [0], [1], [0, 0, 1, 1], [], []>} : vector<8x128xbf16>, vector<128x512xbf16>, vector<8x512xf32> -> vector<8x512xf32>
      %287 = arith.addf %284, %286 : vector<8x512xf32>
      %288 = vector.extract_strided_slice %287 {offsets = [0, 0], sizes = [8, 128], strides = [1, 1]} : vector<8x512xf32> to vector<8x128xf32>
      %289 = arith.negf %288 : vector<8x128xf32>
      %290 = math.exp %289 : vector<8x128xf32>
      %cst_98 = arith.constant 1.000000e+00 : f32
      %291 = vector.broadcast %cst_98 : f32 to vector<8x128xf32>
      %292 = arith.addf %291, %290 : vector<8x128xf32>
      %293 = arith.divf %291, %292 : vector<8x128xf32>
      %294 = vector.extract_strided_slice %287 {offsets = [0, 128], sizes = [8, 128], strides = [1, 1]} : vector<8x512xf32> to vector<8x128xf32>
      %295 = arith.negf %294 : vector<8x128xf32>
      %296 = math.exp %295 : vector<8x128xf32>
      %cst_99 = arith.constant 1.000000e+00 : f32
      %297 = vector.broadcast %cst_99 : f32 to vector<8x128xf32>
      %298 = arith.addf %297, %296 : vector<8x128xf32>
      %299 = arith.divf %297, %298 : vector<8x128xf32>
      %300 = vector.extract_strided_slice %287 {offsets = [0, 256], sizes = [8, 128], strides = [1, 1]} : vector<8x512xf32> to vector<8x128xf32>
      %301 = math.tanh %300 : vector<8x128xf32>
      %302 = vector.extract_strided_slice %287 {offsets = [0, 384], sizes = [8, 128], strides = [1, 1]} : vector<8x512xf32> to vector<8x128xf32>
      %303 = arith.negf %302 : vector<8x128xf32>
      %304 = math.exp %303 : vector<8x128xf32>
      %cst_100 = arith.constant 1.000000e+00 : f32
      %305 = vector.broadcast %cst_100 : f32 to vector<8x128xf32>
      %306 = arith.addf %305, %304 : vector<8x128xf32>
      %307 = arith.divf %305, %306 : vector<8x128xf32>
      %308 = arith.mulf %299, %280 : vector<8x128xf32>
      %309 = arith.mulf %293, %301 : vector<8x128xf32>
      %310 = arith.addf %308, %309 : vector<8x128xf32>
      %311 = math.tanh %310 : vector<8x128xf32>
      %312 = arith.mulf %307, %311 : vector<8x128xf32>
      %313 = arith.addi %0, %c5_i32 : i32
      %314 = vector.broadcast %313 : i32 to vector<8x1xi32>
      %315 = arith.cmpi slt, %314, %12 : vector<8x1xi32>
      %316 = vector.shape_cast %315 : vector<8x1xi1> to vector<8x1xi1>
      %317 = vector.broadcast %316 : vector<8x1xi1> to vector<8x128xi1>
      %318 = arith.select %317, %312, %279 : vector<8x128xi1>, vector<8x128xf32>
      %c0_101 = arith.constant 0 : index
      %c0_102 = arith.constant 0 : index
      %319 = vector.load %arg7[%c0_101, %c0_102] : memref<8x128xf32, #tpu.memory_space<vmem>>, vector<8x128xf32>
      tpu.vector_store %arg7[%c0_101, %c0_102], %318 {strides = array<i32>} : memref<8x128xf32, #tpu.memory_space<vmem>>, vector<8x128xf32>,
      %320 = vector.shape_cast %315 : vector<8x1xi1> to vector<8x1xi1>
      %321 = vector.broadcast %320 : vector<8x1xi1> to vector<8x128xi1>
      %322 = arith.select %321, %310, %280 : vector<8x128xi1>, vector<8x128xf32>
      %c0_103 = arith.constant 0 : index
      %c0_104 = arith.constant 0 : index
      %323 = vector.load %arg8[%c0_103, %c0_104] : memref<8x128xf32, #tpu.memory_space<vmem>>, vector<8x128xf32>
      tpu.vector_store %arg8[%c0_103, %c0_104], %322 {strides = array<i32>} : memref<8x128xf32, #tpu.memory_space<vmem>>, vector<8x128xf32>,
      %cst_105 = arith.constant 0.000000e+00 : f32
      %324 = vector.shape_cast %315 : vector<8x1xi1> to vector<8x1xi1>
      %325 = vector.broadcast %324 : vector<8x1xi1> to vector<8x128xi1>
      %326 = vector.broadcast %cst_105 : f32 to vector<8x128xf32>
      %327 = arith.select %325, %312, %326 : vector<8x128xi1>, vector<8x128xf32>
      %328 = arith.index_cast %c5_i32 : i32 to index
      %c0_106 = arith.constant 0 : index
      %c0_107 = arith.constant 0 : index
      %329 = vector.load %arg6[%328, %c0_106, %c0_107] : memref<8x8x128xf32, #tpu.memory_space<vmem>>, vector<1x8x128xf32>
      %330 = vector.shape_cast %329 : vector<1x8x128xf32> to vector<8x128xf32>
      %331 = vector.shape_cast %327 : vector<8x128xf32> to vector<1x8x128xf32>
      tpu.vector_store %arg6[%328, %c0_106, %c0_107], %331 {strides = array<i32>} : memref<8x8x128xf32, #tpu.memory_space<vmem>>, vector<1x8x128xf32>,
      %c6_i32 = arith.constant 6 : i32
      %c0_108 = arith.constant 0 : index
      %c0_109 = arith.constant 0 : index
      %332 = vector.load %arg7[%c0_108, %c0_109] : memref<8x128xf32, #tpu.memory_space<vmem>>, vector<8x128xf32>
      %c0_110 = arith.constant 0 : index
      %c0_111 = arith.constant 0 : index
      %333 = vector.load %arg8[%c0_110, %c0_111] : memref<8x128xf32, #tpu.memory_space<vmem>>, vector<8x128xf32>
      %334 = arith.index_cast %c6_i32 : i32 to index
      %c0_112 = arith.constant 0 : index
      %c0_113 = arith.constant 0 : index
      %335 = vector.load %arg3[%334, %c0_112, %c0_113] : memref<8x8x512xbf16, #tpu.memory_space<vmem>>, vector<1x8x512xbf16>
      %336 = vector.shape_cast %335 : vector<1x8x512xbf16> to vector<8x512xbf16>
      %337 = arith.extf %336 : vector<8x512xbf16> to vector<8x512xf32>
      %338 = arith.truncf %332 : vector<8x128xf32> to vector<8x128xbf16>
      %cst_114 = arith.constant dense<0.000000e+00> : vector<8x512xf32>
      %339 = tpu.matmul %338, %13, %cst_114 {dimension_numbers = #tpu.dot_dimension_numbers<[1], [0], [0], [1], [0, 0, 1, 1], [], []>} : vector<8x128xbf16>, vector<128x512xbf16>, vector<8x512xf32> -> vector<8x512xf32>
      %340 = arith.addf %337, %339 : vector<8x512xf32>
      %341 = vector.extract_strided_slice %340 {offsets = [0, 0], sizes = [8, 128], strides = [1, 1]} : vector<8x512xf32> to vector<8x128xf32>
      %342 = arith.negf %341 : vector<8x128xf32>
      %343 = math.exp %342 : vector<8x128xf32>
      %cst_115 = arith.constant 1.000000e+00 : f32
      %344 = vector.broadcast %cst_115 : f32 to vector<8x128xf32>
      %345 = arith.addf %344, %343 : vector<8x128xf32>
      %346 = arith.divf %344, %345 : vector<8x128xf32>
      %347 = vector.extract_strided_slice %340 {offsets = [0, 128], sizes = [8, 128], strides = [1, 1]} : vector<8x512xf32> to vector<8x128xf32>
      %348 = arith.negf %347 : vector<8x128xf32>
      %349 = math.exp %348 : vector<8x128xf32>
      %cst_116 = arith.constant 1.000000e+00 : f32
      %350 = vector.broadcast %cst_116 : f32 to vector<8x128xf32>
      %351 = arith.addf %350, %349 : vector<8x128xf32>
      %352 = arith.divf %350, %351 : vector<8x128xf32>
      %353 = vector.extract_strided_slice %340 {offsets = [0, 256], sizes = [8, 128], strides = [1, 1]} : vector<8x512xf32> to vector<8x128xf32>
      %354 = math.tanh %353 : vector<8x128xf32>
      %355 = vector.extract_strided_slice %340 {offsets = [0, 384], sizes = [8, 128], strides = [1, 1]} : vector<8x512xf32> to vector<8x128xf32>
      %356 = arith.negf %355 : vector<8x128xf32>
      %357 = math.exp %356 : vector<8x128xf32>
      %cst_117 = arith.constant 1.000000e+00 : f32
      %358 = vector.broadcast %cst_117 : f32 to vector<8x128xf32>
      %359 = arith.addf %358, %357 : vector<8x128xf32>
      %360 = arith.divf %358, %359 : vector<8x128xf32>
      %361 = arith.mulf %352, %333 : vector<8x128xf32>
      %362 = arith.mulf %346, %354 : vector<8x128xf32>
      %363 = arith.addf %361, %362 : vector<8x128xf32>
      %364 = math.tanh %363 : vector<8x128xf32>
      %365 = arith.mulf %360, %364 : vector<8x128xf32>
      %366 = arith.addi %0, %c6_i32 : i32
      %367 = vector.broadcast %366 : i32 to vector<8x1xi32>
      %368 = arith.cmpi slt, %367, %12 : vector<8x1xi32>
      %369 = vector.shape_cast %368 : vector<8x1xi1> to vector<8x1xi1>
      %370 = vector.broadcast %369 : vector<8x1xi1> to vector<8x128xi1>
      %371 = arith.select %370, %365, %332 : vector<8x128xi1>, vector<8x128xf32>
      %c0_118 = arith.constant 0 : index
      %c0_119 = arith.constant 0 : index
      %372 = vector.load %arg7[%c0_118, %c0_119] : memref<8x128xf32, #tpu.memory_space<vmem>>, vector<8x128xf32>
      tpu.vector_store %arg7[%c0_118, %c0_119], %371 {strides = array<i32>} : memref<8x128xf32, #tpu.memory_space<vmem>>, vector<8x128xf32>,
      %373 = vector.shape_cast %368 : vector<8x1xi1> to vector<8x1xi1>
      %374 = vector.broadcast %373 : vector<8x1xi1> to vector<8x128xi1>
      %375 = arith.select %374, %363, %333 : vector<8x128xi1>, vector<8x128xf32>
      %c0_120 = arith.constant 0 : index
      %c0_121 = arith.constant 0 : index
      %376 = vector.load %arg8[%c0_120, %c0_121] : memref<8x128xf32, #tpu.memory_space<vmem>>, vector<8x128xf32>
      tpu.vector_store %arg8[%c0_120, %c0_121], %375 {strides = array<i32>} : memref<8x128xf32, #tpu.memory_space<vmem>>, vector<8x128xf32>,
      %cst_122 = arith.constant 0.000000e+00 : f32
      %377 = vector.shape_cast %368 : vector<8x1xi1> to vector<8x1xi1>
      %378 = vector.broadcast %377 : vector<8x1xi1> to vector<8x128xi1>
      %379 = vector.broadcast %cst_122 : f32 to vector<8x128xf32>
      %380 = arith.select %378, %365, %379 : vector<8x128xi1>, vector<8x128xf32>
      %381 = arith.index_cast %c6_i32 : i32 to index
      %c0_123 = arith.constant 0 : index
      %c0_124 = arith.constant 0 : index
      %382 = vector.load %arg6[%381, %c0_123, %c0_124] : memref<8x8x128xf32, #tpu.memory_space<vmem>>, vector<1x8x128xf32>
      %383 = vector.shape_cast %382 : vector<1x8x128xf32> to vector<8x128xf32>
      %384 = vector.shape_cast %380 : vector<8x128xf32> to vector<1x8x128xf32>
      tpu.vector_store %arg6[%381, %c0_123, %c0_124], %384 {strides = array<i32>} : memref<8x8x128xf32, #tpu.memory_space<vmem>>, vector<1x8x128xf32>,
      %c7_i32 = arith.constant 7 : i32
      %c0_125 = arith.constant 0 : index
      %c0_126 = arith.constant 0 : index
      %385 = vector.load %arg7[%c0_125, %c0_126] : memref<8x128xf32, #tpu.memory_space<vmem>>, vector<8x128xf32>
      %c0_127 = arith.constant 0 : index
      %c0_128 = arith.constant 0 : index
      %386 = vector.load %arg8[%c0_127, %c0_128] : memref<8x128xf32, #tpu.memory_space<vmem>>, vector<8x128xf32>
      %387 = arith.index_cast %c7_i32 : i32 to index
      %c0_129 = arith.constant 0 : index
      %c0_130 = arith.constant 0 : index
      %388 = vector.load %arg3[%387, %c0_129, %c0_130] : memref<8x8x512xbf16, #tpu.memory_space<vmem>>, vector<1x8x512xbf16>
      %389 = vector.shape_cast %388 : vector<1x8x512xbf16> to vector<8x512xbf16>
      %390 = arith.extf %389 : vector<8x512xbf16> to vector<8x512xf32>
      %391 = arith.truncf %385 : vector<8x128xf32> to vector<8x128xbf16>
      %cst_131 = arith.constant dense<0.000000e+00> : vector<8x512xf32>
      %392 = tpu.matmul %391, %13, %cst_131 {dimension_numbers = #tpu.dot_dimension_numbers<[1], [0], [0], [1], [0, 0, 1, 1], [], []>} : vector<8x128xbf16>, vector<128x512xbf16>, vector<8x512xf32> -> vector<8x512xf32>
      %393 = arith.addf %390, %392 : vector<8x512xf32>
      %394 = vector.extract_strided_slice %393 {offsets = [0, 0], sizes = [8, 128], strides = [1, 1]} : vector<8x512xf32> to vector<8x128xf32>
      %395 = arith.negf %394 : vector<8x128xf32>
      %396 = math.exp %395 : vector<8x128xf32>
      %cst_132 = arith.constant 1.000000e+00 : f32
      %397 = vector.broadcast %cst_132 : f32 to vector<8x128xf32>
      %398 = arith.addf %397, %396 : vector<8x128xf32>
      %399 = arith.divf %397, %398 : vector<8x128xf32>
      %400 = vector.extract_strided_slice %393 {offsets = [0, 128], sizes = [8, 128], strides = [1, 1]} : vector<8x512xf32> to vector<8x128xf32>
      %401 = arith.negf %400 : vector<8x128xf32>
      %402 = math.exp %401 : vector<8x128xf32>
      %cst_133 = arith.constant 1.000000e+00 : f32
      %403 = vector.broadcast %cst_133 : f32 to vector<8x128xf32>
      %404 = arith.addf %403, %402 : vector<8x128xf32>
      %405 = arith.divf %403, %404 : vector<8x128xf32>
      %406 = vector.extract_strided_slice %393 {offsets = [0, 256], sizes = [8, 128], strides = [1, 1]} : vector<8x512xf32> to vector<8x128xf32>
      %407 = math.tanh %406 : vector<8x128xf32>
      %408 = vector.extract_strided_slice %393 {offsets = [0, 384], sizes = [8, 128], strides = [1, 1]} : vector<8x512xf32> to vector<8x128xf32>
      %409 = arith.negf %408 : vector<8x128xf32>
      %410 = math.exp %409 : vector<8x128xf32>
      %cst_134 = arith.constant 1.000000e+00 : f32
      %411 = vector.broadcast %cst_134 : f32 to vector<8x128xf32>
      %412 = arith.addf %411, %410 : vector<8x128xf32>
      %413 = arith.divf %411, %412 : vector<8x128xf32>
      %414 = arith.mulf %405, %386 : vector<8x128xf32>
      %415 = arith.mulf %399, %407 : vector<8x128xf32>
      %416 = arith.addf %414, %415 : vector<8x128xf32>
      %417 = math.tanh %416 : vector<8x128xf32>
      %418 = arith.mulf %413, %417 : vector<8x128xf32>
      %419 = arith.addi %0, %c7_i32 : i32
      %420 = vector.broadcast %419 : i32 to vector<8x1xi32>
      %421 = arith.cmpi slt, %420, %12 : vector<8x1xi32>
      %422 = vector.shape_cast %421 : vector<8x1xi1> to vector<8x1xi1>
      %423 = vector.broadcast %422 : vector<8x1xi1> to vector<8x128xi1>
      %424 = arith.select %423, %418, %385 : vector<8x128xi1>, vector<8x128xf32>
      %c0_135 = arith.constant 0 : index
      %c0_136 = arith.constant 0 : index
      %425 = vector.load %arg7[%c0_135, %c0_136] : memref<8x128xf32, #tpu.memory_space<vmem>>, vector<8x128xf32>
      tpu.vector_store %arg7[%c0_135, %c0_136], %424 {strides = array<i32>} : memref<8x128xf32, #tpu.memory_space<vmem>>, vector<8x128xf32>,
      %426 = vector.shape_cast %421 : vector<8x1xi1> to vector<8x1xi1>
      %427 = vector.broadcast %426 : vector<8x1xi1> to vector<8x128xi1>
      %428 = arith.select %427, %416, %386 : vector<8x128xi1>, vector<8x128xf32>
      %c0_137 = arith.constant 0 : index
      %c0_138 = arith.constant 0 : index
      %429 = vector.load %arg8[%c0_137, %c0_138] : memref<8x128xf32, #tpu.memory_space<vmem>>, vector<8x128xf32>
      tpu.vector_store %arg8[%c0_137, %c0_138], %428 {strides = array<i32>} : memref<8x128xf32, #tpu.memory_space<vmem>>, vector<8x128xf32>,
      %cst_139 = arith.constant 0.000000e+00 : f32
      %430 = vector.shape_cast %421 : vector<8x1xi1> to vector<8x1xi1>
      %431 = vector.broadcast %430 : vector<8x1xi1> to vector<8x128xi1>
      %432 = vector.broadcast %cst_139 : f32 to vector<8x128xf32>
      %433 = arith.select %431, %418, %432 : vector<8x128xi1>, vector<8x128xf32>
      %434 = arith.index_cast %c7_i32 : i32 to index
      %c0_140 = arith.constant 0 : index
      %c0_141 = arith.constant 0 : index
      %435 = vector.load %arg6[%434, %c0_140, %c0_141] : memref<8x8x128xf32, #tpu.memory_space<vmem>>, vector<1x8x128xf32>
      %436 = vector.shape_cast %435 : vector<1x8x128xf32> to vector<8x128xf32>
      %437 = vector.shape_cast %433 : vector<8x128xf32> to vector<1x8x128xf32>
      tpu.vector_store %arg6[%434, %c0_140, %c0_141], %437 {strides = array<i32>} : memref<8x8x128xf32, #tpu.memory_space<vmem>>, vector<1x8x128xf32>,
      %c8_i32_142 = arith.constant 8 : i32
    } else {
    }
    return
  }
  func.func @transform_0(%arg0: i32, %arg1: i32, %arg2: memref<1xi32, #tpu.memory_space<smem>>) -> (i32, i32, i32) {
    %c0_i32 = arith.constant 0 : i32
    %c0_i32_0 = arith.constant 0 : i32
    return %arg1, %arg0, %c0_i32 : i32, i32, i32
  }
  func.func @transform_1(%arg0: i32, %arg1: i32, %arg2: memref<1xi32, #tpu.memory_space<smem>>) -> (i32, i32) {
    %c0_i32 = arith.constant 0 : i32
    %c0_i32_0 = arith.constant 0 : i32
    %c0_i32_1 = arith.constant 0 : i32
    return %c0_i32, %c0_i32_0 : i32, i32
  }
  func.func @transform_2(%arg0: i32, %arg1: i32, %arg2: memref<1xi32, #tpu.memory_space<smem>>) -> (i32, i32) {
    %c0_i32 = arith.constant 0 : i32
    %c0_i32_0 = arith.constant 0 : i32
    return %arg0, %c0_i32 : i32, i32
  }
  func.func @transform_3(%arg0: i32, %arg1: i32, %arg2: memref<1xi32, #tpu.memory_space<smem>>) -> (i32, i32, i32) {
    %c0_i32 = arith.constant 0 : i32
    %c0_i32_0 = arith.constant 0 : i32
    return %arg1, %arg0, %c0_i32 : i32, i32, i32
  }
  func.func @transform_4(%arg0: i32, %arg1: i32, %arg2: memref<1xi32, #tpu.memory_space<smem>>) -> (i32, i32) {
    %c0_i32 = arith.constant 0 : i32
    %c0_i32_0 = arith.constant 0 : i32
    return %arg0, %c0_i32 : i32, i32
  }
  func.func @transform_5(%arg0: i32, %arg1: i32, %arg2: memref<1xi32, #tpu.memory_space<smem>>) -> (i32, i32) {
    %c0_i32 = arith.constant 0 : i32
    %c0_i32_0 = arith.constant 0 : i32
    return %arg0, %c0_i32 : i32, i32
  }
}

</mosaic_0001>

<llo_original>
// kernel: tpu_custom_call.1
$region0: #{tpu_custom_call.1}
  #allocation0 [shape = 'u32[]', space=smem, size = 0x4, offset = 0x4, fixed_abs, tag = 'smem constant byte address 0x4 - core index']
  #allocation1 [shape = 'u32[144,128]{1,0:T(1,128)}', space=vmem, size = 0x12000, scoped, tag = 'internal scratch']
  #allocation2 [shape = 's32[1]{0}', space=sflag, size = 0x4, scoped, tag = 'scoped memory for tpu_custom_call.1']
  #allocation3 [shape = 's32[1]{0:T(128)S(6)}', space=smem, size = 0x200, scoped, tag = 'prefetched SMEM operand 0']
  %s0 = inlined_call_operand.<no memory space> [shape: s32[1], index: 0, kind: input, shape index: {}]
  %s1 = inlined_call_operand.hbm [shape: bf16[8,8,512], index: 1, kind: input, shape index: {}]
  %s2 = inlined_call_operand.hbm [shape: bf16[128,512], index: 2, kind: input, shape index: {}]
  %s3 = inlined_call_operand.vmem [shape: s32[8,1], index: 3, kind: input, shape index: {}]
  %s4 = inlined_call_operand.hbm [shape: f32[8,8,128], index: 4, kind: output, shape index: {0}]
  %s5 = inlined_call_operand.hbm [shape: f32[8,128], index: 5, kind: output, shape index: {1}]
  %s6 = inlined_call_operand.hbm [shape: f32[8,128], index: 6, kind: output, shape index: {2}]
  %7 = xla_tuple %s4, %s5, %s6
  %s8 = sld [smem:[#allocation0]]
  $region58: #{tpu_custom_call.1} parent=0
    _
  %s10 = ssub.s32 1, %s8
  %s11 = scalar_select 0, %s10, %s8
  %12 = sst [smem:[#allocation3]] %s0
  $region1: #{tpu_custom_call.1} parent=0
    #allocation4 [shape = 'u8[65536]{0}', space=vmem, size = 0x10000, scoped, tag = 'input window, operand 1, single buffered']
    #allocation5 [shape = 's32[1]{0}', space=sflag, size = 0x4, scoped, tag = 'scoped memory for tpu_custom_call.1']
    #allocation6 [shape = 's32[1]{0}', space=sflag, size = 0x4, scoped, tag = 'scoped memory for tpu_custom_call.1']
    #allocation7 [shape = 'u8[131072]{0}', space=vmem, size = 0x20000, scoped, tag = 'input window, operand 2, single buffered']
    #allocation8 [shape = 's32[1]{0}', space=sflag, size = 0x4, scoped, tag = 'scoped memory for tpu_custom_call.1']
    #allocation9 [shape = 'u8[32768]{0}', space=vmem, size = 0x8000, scoped, tag = 'output window, operand 0, single buffered']
    #allocation10 [shape = 'u8[4096]{0}', space=vmem, size = 0x1000, scoped, tag = 'output window, operand 1, single buffered']
    #allocation11 [shape = 's32[1]{0}', space=sflag, size = 0x4, scoped, tag = 'scoped memory for tpu_custom_call.1']
    #allocation12 [shape = 'u8[4096]{0}', space=vmem, size = 0x1000, scoped, tag = 'output window, operand 2, single buffered']
    %13 = vsyncpa [#allocation5], 0
    %14 = vsyncpa [#allocation8], 0
    %15 = vsyncpa [#allocation6], 0
    %16 = vsyncpa [#allocation11], 0
    // Predicated region
    $region2: #{tpu_custom_call.1} parent=1 // pred_check
      _
    $region3: #{tpu_custom_call.1} parent=1 // pred_check_branch
      %18 = sbr.rel (0) target = $region5
    $region4: #{tpu_custom_call.1} parent=1 // pred_region
      %s20 = ssub.s32 2048, 2048
      %21 = vsyncadd [#allocation5], %s20
      %s22 = sshll.u32 [#allocation4], 4
      %s23 = int_to_ptr.vmem [resolvable:$true] %s22
      %28 = dma.hbm_to_vmem [thread:$0]  %s1, 2048, %s23, [#allocation5], 256, 256, 16
    $region5: #{tpu_custom_call.1} parent=1 // pred_fallthru
      _
    // Predicated region
    $region6: #{tpu_custom_call.1} parent=1 // pred_check
      _
    $region7: #{tpu_custom_call.1} parent=1 // pred_check_branch
      %30 = sbr.rel (0) target = $region9
    $region8: #{tpu_custom_call.1} parent=1 // pred_region
      %s32 = ssub.s32 4096, 4096
      %33 = vsyncadd [#allocation8], %s32
      %s34 = sshll.u32 [#allocation7], 4
      %s35 = int_to_ptr.vmem [resolvable:$true] %s34
      %40 = dma.hbm_to_vmem [thread:$0]  %s2, 4096, %s35, [#allocation8], 256, 256, 16
    $region9: #{tpu_custom_call.1} parent=1 // pred_fallthru
      _
    // Predicated region
    $region10: #{tpu_custom_call.1} parent=1 // pred_check
      _
    $region11: #{tpu_custom_call.1} parent=1 // pred_check_branch
      %42 = sbr.rel (0) target = $region13
    $region12: #{tpu_custom_call.1} parent=1 // pred_region
      _
    $region13: #{tpu_custom_call.1} parent=1 // pred_fallthru
      _
    // Predicated region
    $region14: #{tpu_custom_call.1} parent=1 // pred_check
      _
    $region15: #{tpu_custom_call.1} parent=1 // pred_check_branch
      %44 = sbr.rel (0) target = $region17
    $region16: #{tpu_custom_call.1} parent=1 // pred_region
      %45 = dma.done [#allocation5], 2048
    $region17: #{tpu_custom_call.1} parent=1 // pred_fallthru
      _
    // Predicated region
    $region18: #{tpu_custom_call.1} parent=1 // pred_check
      _
    $region19: #{tpu_custom_call.1} parent=1 // pred_check_branch
      %47 = sbr.rel (0) target = $region21
    $region20: #{tpu_custom_call.1} parent=1 // pred_region
      %48 = dma.done [#allocation8], 4096
    $region21: #{tpu_custom_call.1} parent=1 // pred_fallthru
      _
    %s50 = smul.u32 0, 8
    %p51 = scmp.eq.s32.totalorder 0, 0
    // Predicated region
    $region22: #{tpu_custom_call.1} parent=1 // pred_check
      %p52 = pneg %p51
    $region23: #{tpu_custom_call.1} parent=1 // pred_check_branch
      %54 = sbr.rel (%p52) target = $region25
    $region24: #{tpu_custom_call.1} parent=1 // pred_region
      %55 = vst [vmem:[#allocation10] sm:$0xff] 0.0
      %56 = vst [vmem:[#allocation12] sm:$0xff] 0.0
    $region25: #{tpu_custom_call.1} parent=1 // pred_fallthru
      _
    %s57 = sld [smem:[#allocation3]]
    %p58 = scmp.ge.s32.totalorder %s50, %s57
    // Predicated region
    $region26: #{tpu_custom_call.1} parent=1 // pred_check
      %p59 = pneg %p58
    $region27: #{tpu_custom_call.1} parent=1 // pred_check_branch
      %61 = sbr.rel (%p59) target = $region29
    $region28: #{tpu_custom_call.1} parent=1 // pred_region
      %62 = vst [vmem:[#allocation9] sm:$0xff] 0.0
      %63 = vst [vmem:[#allocation9 + $0x8] sm:$0xff] 0.0
      %64 = vst [vmem:[#allocation9 + $0x10] sm:$0xff] 0.0
      %65 = vst [vmem:[#allocation9 + $0x18] sm:$0xff] 0.0
      %66 = vst [vmem:[#allocation9 + $0x20] sm:$0xff] 0.0
      %67 = vst [vmem:[#allocation9 + $0x28] sm:$0xff] 0.0
      %68 = vst [vmem:[#allocation9 + $0x30] sm:$0xff] 0.0
      %69 = vst [vmem:[#allocation9 + $0x38] sm:$0xff] 0.0
    $region29: #{tpu_custom_call.1} parent=1 // pred_fallthru
      _
    %p70 = scmp.lt.s32.totalorder %s50, %s57
    // Predicated region
    $region30: #{tpu_custom_call.1} parent=1 // pred_check
      %p71 = pneg %p70
    $region31: #{tpu_custom_call.1} parent=1 // pred_check_branch
      %73 = sbr.rel (%p71) target = $region33
    $region32: #{tpu_custom_call.1} parent=1 // pred_region
      %v74 = vld [vmem:[%s3] sm:$0xff]
      %v75 = vld [vmem:[#allocation7] sm:$0xff]
      %v76 = vld [vmem:[#allocation7 + $0x8] sm:$0xff]
      %v77 = vld [vmem:[#allocation7 + $0x10] sm:$0xff]
      %v78 = vld [vmem:[#allocation7 + $0x18] sm:$0xff]
      %v79 = vld [vmem:[#allocation7 + $0x20] sm:$0xff]
      %v80 = vld [vmem:[#allocation7 + $0x28] sm:$0xff]
      %v81 = vld [vmem:[#allocation7 + $0x30] sm:$0xff]
      %v82 = vld [vmem:[#allocation7 + $0x38] sm:$0xff]
      %v83 = vld [vmem:[#allocation7 + $0x40] sm:$0xff]
      %v84 = vld [vmem:[#allocation7 + $0x48] sm:$0xff]
      %v85 = vld [vmem:[#allocation7 + $0x50] sm:$0xff]
      %v86 = vld [vmem:[#allocation7 + $0x58] sm:$0xff]
      %v87 = vld [vmem:[#allocation7 + $0x60] sm:$0xff]
      %v88 = vld [vmem:[#allocation7 + $0x68] sm:$0xff]
      %v89 = vld [vmem:[#allocation7 + $0x70] sm:$0xff]
      %v90 = vld [vmem:[#allocation7 + $0x78] sm:$0xff]
      %v91 = vld [vmem:[#allocation7 + $0x80] sm:$0xff]
      %v92 = vld [vmem:[#allocation7 + $0x88] sm:$0xff]
      %v93 = vld [vmem:[#allocation7 + $0x90] sm:$0xff]
      %v94 = vld [vmem:[#allocation7 + $0x98] sm:$0xff]
      %v95 = vld [vmem:[#allocation7 + $0xa0] sm:$0xff]
      %v96 = vld [vmem:[#allocation7 + $0xa8] sm:$0xff]
      %v97 = vld [vmem:[#allocation7 + $0xb0] sm:$0xff]
      %v98 = vld [vmem:[#allocation7 + $0xb8] sm:$0xff]
      %v99 = vld [vmem:[#allocation7 + $0xc0] sm:$0xff]
      %v100 = vld [vmem:[#allocation7 + $0xc8] sm:$0xff]
      %v101 = vld [vmem:[#allocation7 + $0xd0] sm:$0xff]
      %v102 = vld [vmem:[#allocation7 + $0xd8] sm:$0xff]
      %v103 = vld [vmem:[#allocation7 + $0xe0] sm:$0xff]
      %v104 = vld [vmem:[#allocation7 + $0xe8] sm:$0xff]
      %v105 = vld [vmem:[#allocation7 + $0xf0] sm:$0xff]
      %v106 = vld [vmem:[#allocation7 + $0xf8] sm:$0xff]
      %v107 = vld [vmem:[#allocation10] sm:$0xff]
      %v108 = vld [vmem:[#allocation12] sm:$0xff]
      %v109 = vld [vmem:[#allocation4] sm:$0xff]
      %v110 = vld [vmem:[#allocation4 + $0x8] sm:$0xff]
      %v111 = vunpack.c.l.bf16 %v109
      %v112 = vunpack.c.h.bf16 %v109
      %v113 = vunpack.c.l.bf16 %v110
      %v114 = vunpack.c.h.bf16 %v110
      %v115 = vpack.c.bf16 %v107, %v107
      %v148 = vunpack.c.l.b16 %v75
      %v149 = vunpack.c.h.b16 %v75
      %v150 = vunpack.c.l.b16 %v76
      %v151 = vunpack.c.h.b16 %v76
      %v152 = vunpack.c.l.b16 %v77
      %v153 = vunpack.c.h.b16 %v77
      %v154 = vunpack.c.l.b16 %v78
      %v155 = vunpack.c.h.b16 %v78
      %v156 = vunpack.c.l.b16 %v79
      %v157 = vunpack.c.h.b16 %v79
      %v158 = vunpack.c.l.b16 %v80
      %v159 = vunpack.c.h.b16 %v80
      %v160 = vunpack.c.l.b16 %v81
      %v161 = vunpack.c.h.b16 %v81
      %v162 = vunpack.c.l.b16 %v82
      %v163 = vunpack.c.h.b16 %v82
      %v164 = vunpack.c.l.b16 %v83
      %v165 = vunpack.c.h.b16 %v83
      %v166 = vunpack.c.l.b16 %v84
      %v167 = vunpack.c.h.b16 %v84
      %v168 = vunpack.c.l.b16 %v85
      %v169 = vunpack.c.h.b16 %v85
      %v170 = vunpack.c.l.b16 %v86
      %v171 = vunpack.c.h.b16 %v86
      %v172 = vunpack.c.l.b16 %v87
      %v173 = vunpack.c.h.b16 %v87
      %v174 = vunpack.c.l.b16 %v88
      %v175 = vunpack.c.h.b16 %v88
      %v176 = vunpack.c.l.b16 %v89
      %v177 = vunpack.c.h.b16 %v89
      %v178 = vunpack.c.l.b16 %v90
      %v179 = vunpack.c.h.b16 %v90
      %v180 = vunpack.c.l.b16 %v91
      %v181 = vunpack.c.h.b16 %v91
      %v182 = vunpack.c.l.b16 %v92
      %v183 = vunpack.c.h.b16 %v92
      %v184 = vunpack.c.l.b16 %v93
      %v185 = vunpack.c.h.b16 %v93
      %v186 = vunpack.c.l.b16 %v94
      %v187 = vunpack.c.h.b16 %v94
      %v188 = vunpack.c.l.b16 %v95
      %v189 = vunpack.c.h.b16 %v95
      %v190 = vunpack.c.l.b16 %v96
      %v191 = vunpack.c.h.b16 %v96
      %v192 = vunpack.c.l.b16 %v97
      %v193 = vunpack.c.h.b16 %v97
      %v194 = vunpack.c.l.b16 %v98
      %v195 = vunpack.c.h.b16 %v98
      %v196 = vunpack.c.l.b16 %v99
      %v197 = vunpack.c.h.b16 %v99
      %v198 = vunpack.c.l.b16 %v100
      %v199 = vunpack.c.h.b16 %v100
      %v200 = vunpack.c.l.b16 %v101
      %v201 = vunpack.c.h.b16 %v101
      %v202 = vunpack.c.l.b16 %v102
      %v203 = vunpack.c.h.b16 %v102
      %v204 = vunpack.c.l.b16 %v103
      %v205 = vunpack.c.h.b16 %v103
      %v206 = vunpack.c.l.b16 %v104
      %v207 = vunpack.c.h.b16 %v104
      %v208 = vunpack.c.l.b16 %v105
      %v209 = vunpack.c.h.b16 %v105
      %v210 = vunpack.c.l.b16 %v106
      %v211 = vunpack.c.h.b16 %v106
      %v212 = vpack.c.b16 %v152, %v148
      %v213 = vpack.c.b16 %v153, %v149
      %v214 = vpack.c.b16 %v154, %v150
      %v215 = vpack.c.b16 %v155, %v151
      %v216 = vpack.c.b16 %v160, %v156
      %v217 = vpack.c.b16 %v161, %v157
      %v218 = vpack.c.b16 %v162, %v158
      %v219 = vpack.c.b16 %v163, %v159
      %v220 = vpack.c.b16 %v168, %v164
      %v221 = vpack.c.b16 %v169, %v165
      %v222 = vpack.c.b16 %v170, %v166
      %v223 = vpack.c.b16 %v171, %v167
      %v224 = vpack.c.b16 %v176, %v172
      %v225 = vpack.c.b16 %v177, %v173
      %v226 = vpack.c.b16 %v178, %v174
      %v227 = vpack.c.b16 %v179, %v175
      %v228 = vpack.c.b16 %v184, %v180
      %v229 = vpack.c.b16 %v185, %v181
      %v230 = vpack.c.b16 %v186, %v182
      %v231 = vpack.c.b16 %v187, %v183
      %v232 = vpack.c.b16 %v192, %v188
      %v233 = vpack.c.b16 %v193, %v189
      %v234 = vpack.c.b16 %v194, %v190
      %v235 = vpack.c.b16 %v195, %v191
      %v236 = vpack.c.b16 %v200, %v196
      %v237 = vpack.c.b16 %v201, %v197
      %v238 = vpack.c.b16 %v202, %v198
      %v239 = vpack.c.b16 %v203, %v199
      %v240 = vpack.c.b16 %v208, %v204
      %v241 = vpack.c.b16 %v209, %v205
      %v242 = vpack.c.b16 %v210, %v206
      %v243 = vpack.c.b16 %v211, %v207
      %276 = vmatprep.subr.bf16.mxu0 %v213
      %277 = vmatpush1.bf16.msra.mxu0 %v212
      %278 = vmatprep.subr.bf16.mxu0 %v217
      %279 = vmatpush1.bf16.msra.mxu0 %v216
      %280 = vmatprep.subr.bf16.mxu0 %v221
      %281 = vmatpush1.bf16.msra.mxu0 %v220
      %282 = vmatprep.subr.bf16.mxu0 %v225
      %283 = vmatpush1.bf16.msra.mxu0 %v224
      %284 = vmatprep.subr.bf16.mxu0 %v229
      %285 = vmatpush1.bf16.msra.mxu0 %v228
      %286 = vmatprep.subr.bf16.mxu0 %v233
      %287 = vmatpush1.bf16.msra.mxu0 %v232
      %288 = vmatprep.subr.bf16.mxu0 %v237
      %289 = vmatpush1.bf16.msra.mxu0 %v236
      %290 = vmatprep.subr.bf16.mxu0 %v241
      %291 = vmatpush1.bf16.msra.mxu0 %v240
      %292 = vmatprep.subr.bf16.mxu0 0
      %293 = vmatpush1.bf16.msra.mxu0 0
      %294 = vmatprep.subr.bf16.mxu0 0
      %295 = vmatpush1.bf16.msra.mxu0 0
      %296 = vmatprep.subr.bf16.mxu0 0
      %297 = vmatpush1.bf16.msra.mxu0 0
      %298 = vmatprep.subr.bf16.mxu0 0
      %299 = vmatpush1.bf16.msra.mxu0 0
      %300 = vmatprep.subr.bf16.mxu0 0
      %301 = vmatpush1.bf16.msra.mxu0 0
      %302 = vmatprep.subr.bf16.mxu0 0
      %303 = vmatpush1.bf16.msra.mxu0 0
      %304 = vmatprep.subr.bf16.mxu0 0
      %305 = vmatpush1.bf16.msra.mxu0 0
      %306 = vmatprep.subr.bf16.mxu0 0
      %307 = vmatpush1.bf16.msra.mxu0 0
      %308 = vmatprep.mubr.bf16.mxu0 0
      %309 = vmatmul.mubr.bf16.gmra.mrb[0].mxu0 %v115
      %v310 = vpop.f32.mrb[0].mxu0
      %v311 = vadd.f32 0.0, %v310
      %v312 = vpop.f32.mrb[0].mxu0
      %v313 = vadd.f32 0.0, %v312
      %v314 = vpop.f32.mrb[0].mxu0
      %v315 = vpop.f32.mrb[0].mxu0
      %316 = vdwg.mxu0
      %317 = vmatprep.subr.bf16.mxu0 %v215
      %318 = vmatpush1.bf16.msra.mxu0 %v214
      %319 = vmatprep.subr.bf16.mxu0 %v219
      %320 = vmatpush1.bf16.msra.mxu0 %v218
      %321 = vmatprep.subr.bf16.mxu0 %v223
      %322 = vmatpush1.bf16.msra.mxu0 %v222
      %323 = vmatprep.subr.bf16.mxu0 %v227
      %324 = vmatpush1.bf16.msra.mxu0 %v226
      %325 = vmatprep.subr.bf16.mxu0 %v231
      %326 = vmatpush1.bf16.msra.mxu0 %v230
      %327 = vmatprep.subr.bf16.mxu0 %v235
      %328 = vmatpush1.bf16.msra.mxu0 %v234
      %329 = vmatprep.subr.bf16.mxu0 %v239
      %330 = vmatpush1.bf16.msra.mxu0 %v238
      %331 = vmatprep.subr.bf16.mxu0 %v243
      %332 = vmatpush1.bf16.msra.mxu0 %v242
      %333 = vmatprep.subr.bf16.mxu0 0
      %334 = vmatpush1.bf16.msra.mxu0 0
      %335 = vmatprep.subr.bf16.mxu0 0
      %336 = vmatpush1.bf16.msra.mxu0 0
      %337 = vmatprep.subr.bf16.mxu0 0
      %338 = vmatpush1.bf16.msra.mxu0 0
      %339 = vmatprep.subr.bf16.mxu0 0
      %340 = vmatpush1.bf16.msra.mxu0 0
      %341 = vmatprep.subr.bf16.mxu0 0
      %342 = vmatpush1.bf16.msra.mxu0 0
      %343 = vmatprep.subr.bf16.mxu0 0
      %344 = vmatpush1.bf16.msra.mxu0 0
      %345 = vmatprep.subr.bf16.mxu0 0
      %346 = vmatpush1.bf16.msra.mxu0 0
      %347 = vmatprep.subr.bf16.mxu0 0
      %348 = vmatpush1.bf16.msra.mxu0 0
      %349 = vmatprep.mubr.bf16.mxu0 0
      %350 = vmatmul.mubr.bf16.gmra.mrb[0].mxu0 %v115
      %v351 = vpop.f32.mrb[0].mxu0
      %v352 = vadd.f32 0.0, %v351
      %v353 = vpop.f32.mrb[0].mxu0
      %v354 = vadd.f32 0.0, %v353
      %v355 = vpop.f32.mrb[0].mxu0
      %v356 = vpop.f32.mrb[0].mxu0
      %357 = vdwg.mxu0
      %v358 = vadd.f32 %v111, %v311
      %v359 = vadd.f32 %v112, %v313
      %v360 = vadd.f32 %v113, %v352
      %v361 = vadd.f32 %v114, %v354
      %v362 = vxor.u32 %v358, 2147483648
      %v363 = vmul.f32 %v362, 1.442695
      %v364 = vpow.pop %v363
      %v365 = vadd.f32 %v364, 1.0
      %v366 = vrcp.pop %v365
      %v367 = vmul.f32 1.0, %v366
      %v368 = vxor.u32 %v359, 2147483648
      %v369 = vmul.f32 %v368, 1.442695
      %v370 = vpow.pop %v369
      %v371 = vadd.f32 %v370, 1.0
      %v372 = vrcp.pop %v371
      %v373 = vmul.f32 1.0, %v372
      %v374 = vtanh.pop %v360
      %v375 = vxor.u32 %v361, 2147483648
      %v376 = vmul.f32 %v375, 1.442695
      %v377 = vpow.pop %v376
      %v378 = vadd.f32 %v377, 1.0
      %v379 = vrcp.pop %v378
      %v380 = vmul.f32 1.0, %v379
      %v381 = vmul.f32 %v373, %v108
      %v382 = vmul.f32 %v367, %v374
      %v383 = vadd.f32 %v381, %v382
      %v384 = vtanh.pop %v383
      %v385 = vmul.f32 %v380, %v384
      %v386 = vstv %s50
      %vm387 = vcmp.lt.s32.totalorder %v386, %v74
      %v388 = vsel %vm387, 1, 0
      %389 = vset.pattern.permute.xlu0 0
      %390 = vperm.xlu0 %389, %v388
      %v391 = vpop.permute.xlu0 %390
      %vm392 = vcmp.eq.s32.totalorder %v391, 1
      %v393 = vsel %vm392, %v385, %v107
      %394 = vst [vmem:[#allocation10] sm:$0xff] %v393
      %v395 = vsel %vm392, %v383, %v108
      %396 = vst [vmem:[#allocation12] sm:$0xff] %v395
      %v397 = vsel %vm392, %v385, 0.0
      %398 = vst [vmem:[#allocation9] sm:$0xff] %v397
      %v399 = vld [vmem:[#allocation10] sm:$0xff]
      %v400 = vld [vmem:[#allocation12] sm:$0xff]
      %s401 = scalar_lea.vmem [#allocation4], 16
      %v402 = vld [vmem:[%s401] sm:$0xff]
      %v403 = vld [vmem:[%s401 + $0x8] sm:$0xff]
      %v404 = vunpack.c.l.bf16 %v402
      %v405 = vunpack.c.h.bf16 %v402
      %v406 = vunpack.c.l.bf16 %v403
      %v407 = vunpack.c.h.bf16 %v403
      %v408 = vpack.c.bf16 %v399, %v399
      %409 = vmatprep.subr.bf16.mxu0 %v213
      %410 = vmatpush1.bf16.msra.mxu0 %v212
      %411 = vmatprep.subr.bf16.mxu0 %v217
      %412 = vmatpush1.bf16.msra.mxu0 %v216
      %413 = vmatprep.subr.bf16.mxu0 %v221
      %414 = vmatpush1.bf16.msra.mxu0 %v220
      %415 = vmatprep.subr.bf16.mxu0 %v225
      %416 = vmatpush1.bf16.msra.mxu0 %v224
      %417 = vmatprep.subr.bf16.mxu0 %v229
      %418 = vmatpush1.bf16.msra.mxu0 %v228
      %419 = vmatprep.subr.bf16.mxu0 %v233
      %420 = vmatpush1.bf16.msra.mxu0 %v232
      %421 = vmatprep.subr.bf16.mxu0 %v237
      %422 = vmatpush1.bf16.msra.mxu0 %v236
      %423 = vmatprep.subr.bf16.mxu0 %v241
      %424 = vmatpush1.bf16.msra.mxu0 %v240
      %425 = vmatprep.subr.bf16.mxu0 0
      %426 = vmatpush1.bf16.msra.mxu0 0
      %427 = vmatprep.subr.bf16.mxu0 0
      %428 = vmatpush1.bf16.msra.mxu0 0
      %429 = vmatprep.subr.bf16.mxu0 0
      %430 = vmatpush1.bf16.msra.mxu0 0
      %431 = vmatprep.subr.bf16.mxu0 0
      %432 = vmatpush1.bf16.msra.mxu0 0
      %433 = vmatprep.subr.bf16.mxu0 0
      %434 = vmatpush1.bf16.msra.mxu0 0
      %435 = vmatprep.subr.bf16.mxu0 0
      %436 = vmatpush1.bf16.msra.mxu0 0
      %437 = vmatprep.subr.bf16.mxu0 0
      %438 = vmatpush1.bf16.msra.mxu0 0
      %439 = vmatprep.subr.bf16.mxu0 0
      %440 = vmatpush1.bf16.msra.mxu0 0
      %441 = vmatprep.mubr.bf16.mxu0 0
      %442 = vmatmul.mubr.bf16.gmra.mrb[0].mxu0 %v408
      %v443 = vpop.f32.mrb[0].mxu0
      %v444 = vadd.f32 0.0, %v443
      %v445 = vpop.f32.mrb[0].mxu0
      %v446 = vadd.f32 0.0, %v445
      %v447 = vpop.f32.mrb[0].mxu0
      %v448 = vpop.f32.mrb[0].mxu0
      %449 = vdwg.mxu0
      %450 = vmatprep.subr.bf16.mxu0 %v215
      %451 = vmatpush1.bf16.msra.mxu0 %v214
      %452 = vmatprep.subr.bf16.mxu0 %v219
      %453 = vmatpush1.bf16.msra.mxu0 %v218
      %454 = vmatprep.subr.bf16.mxu0 %v223
      %455 = vmatpush1.bf16.msra.mxu0 %v222
      %456 = vmatprep.subr.bf16.mxu0 %v227
      %457 = vmatpush1.bf16.msra.mxu0 %v226
      %458 = vmatprep.subr.bf16.mxu0 %v231
      %459 = vmatpush1.bf16.msra.mxu0 %v230
      %460 = vmatprep.subr.bf16.mxu0 %v235
      %461 = vmatpush1.bf16.msra.mxu0 %v234
      %462 = vmatprep.subr.bf16.mxu0 %v239
      %463 = vmatpush1.bf16.msra.mxu0 %v238
      %464 = vmatprep.subr.bf16.mxu0 %v243
      %465 = vmatpush1.bf16.msra.mxu0 %v242
      %466 = vmatprep.subr.bf16.mxu0 0
      %467 = vmatpush1.bf16.msra.mxu0 0
      %468 = vmatprep.subr.bf16.mxu0 0
      %469 = vmatpush1.bf16.msra.mxu0 0
      %470 = vmatprep.subr.bf16.mxu0 0
      %471 = vmatpush1.bf16.msra.mxu0 0
      %472 = vmatprep.subr.bf16.mxu0 0
      %473 = vmatpush1.bf16.msra.mxu0 0
      %474 = vmatprep.subr.bf16.mxu0 0
      %475 = vmatpush1.bf16.msra.mxu0 0
      %476 = vmatprep.subr.bf16.mxu0 0
      %477 = vmatpush1.bf16.msra.mxu0 0
      %478 = vmatprep.subr.bf16.mxu0 0
      %479 = vmatpush1.bf16.msra.mxu0 0
      %480 = vmatprep.subr.bf16.mxu0 0
      %481 = vmatpush1.bf16.msra.mxu0 0
      %482 = vmatprep.mubr.bf16.mxu0 0
      %483 = vmatmul.mubr.bf16.gmra.mrb[0].mxu0 %v408
      %v484 = vpop.f32.mrb[0].mxu0
      %v485 = vadd.f32 0.0, %v484
      %v486 = vpop.f32.mrb[0].mxu0
      %v487 = vadd.f32 0.0, %v486
      %v488 = vpop.f32.mrb[0].mxu0
      %v489 = vpop.f32.mrb[0].mxu0
      %490 = vdwg.mxu0
      %v491 = vadd.f32 %v404, %v444
      %v492 = vadd.f32 %v405, %v446
      %v493 = vadd.f32 %v406, %v485
      %v494 = vadd.f32 %v407, %v487
      %v495 = vxor.u32 %v491, 2147483648
      %v496 = vmul.f32 %v495, 1.442695
      %v497 = vpow.pop %v496
      %v498 = vadd.f32 %v497, 1.0
      %v499 = vrcp.pop %v498
      %v500 = vmul.f32 1.0, %v499
      %v501 = vxor.u32 %v492, 2147483648
      %v502 = vmul.f32 %v501, 1.442695
      %v503 = vpow.pop %v502
      %v504 = vadd.f32 %v503, 1.0
      %v505 = vrcp.pop %v504
      %v506 = vmul.f32 1.0, %v505
      %v507 = vtanh.pop %v493
      %v508 = vxor.u32 %v494, 2147483648
      %v509 = vmul.f32 %v508, 1.442695
      %v510 = vpow.pop %v509
      %v511 = vadd.f32 %v510, 1.0
      %v512 = vrcp.pop %v511
      %v513 = vmul.f32 1.0, %v512
      %v514 = vmul.f32 %v506, %v400
      %v515 = vmul.f32 %v500, %v507
      %v516 = vadd.f32 %v514, %v515
      %v517 = vtanh.pop %v516
      %v518 = vmul.f32 %v513, %v517
      %s519 = sadd.s32 %s50, 1
      %v520 = vstv %s519
      %vm521 = vcmp.lt.s32.totalorder %v520, %v74
      %v522 = vsel %vm521, 1, 0
      %523 = vset.pattern.permute.xlu0 0
      %524 = vperm.xlu0 %523, %v522
      %v525 = vpop.permute.xlu0 %524
      %vm526 = vcmp.eq.s32.totalorder %v525, 1
      %v527 = vsel %vm526, %v518, %v399
      %528 = vst [vmem:[#allocation10] sm:$0xff] %v527
      %v529 = vsel %vm526, %v516, %v400
      %530 = vst [vmem:[#allocation12] sm:$0xff] %v529
      %v531 = vsel %vm526, %v518, 0.0
      %s532 = scalar_lea.vmem [#allocation9], 8
      %533 = vst [vmem:[%s532] sm:$0xff] %v531
      %v534 = vld [vmem:[#allocation10] sm:$0xff]
      %v535 = vld [vmem:[#allocation12] sm:$0xff]
      %s536 = scalar_lea.vmem [#allocation4], 32
      %v537 = vld [vmem:[%s536] sm:$0xff]
      %v538 = vld [vmem:[%s536 + $0x8] sm:$0xff]
      %v539 = vunpack.c.l.bf16 %v537
      %v540 = vunpack.c.h.bf16 %v537
      %v541 = vunpack.c.l.bf16 %v538
      %v542 = vunpack.c.h.bf16 %v538
      %v543 = vpack.c.bf16 %v534, %v534
      %544 = vmatprep.subr.bf16.mxu0 %v213
      %545 = vmatpush1.bf16.msra.mxu0 %v212
      %546 = vmatprep.subr.bf16.mxu0 %v217
      %547 = vmatpush1.bf16.msra.mxu0 %v216
      %548 = vmatprep.subr.bf16.mxu0 %v221
      %549 = vmatpush1.bf16.msra.mxu0 %v220
      %550 = vmatprep.subr.bf16.mxu0 %v225
      %551 = vmatpush1.bf16.msra.mxu0 %v224
      %552 = vmatprep.subr.bf16.mxu0 %v229
      %553 = vmatpush1.bf16.msra.mxu0 %v228
      %554 = vmatprep.subr.bf16.mxu0 %v233
      %555 = vmatpush1.bf16.msra.mxu0 %v232
      %556 = vmatprep.subr.bf16.mxu0 %v237
      %557 = vmatpush1.bf16.msra.mxu0 %v236
      %558 = vmatprep.subr.bf16.mxu0 %v241
      %559 = vmatpush1.bf16.msra.mxu0 %v240
      %560 = vmatprep.subr.bf16.mxu0 0
      %561 = vmatpush1.bf16.msra.mxu0 0
      %562 = vmatprep.subr.bf16.mxu0 0
      %563 = vmatpush1.bf16.msra.mxu0 0
      %564 = vmatprep.subr.bf16.mxu0 0
      %565 = vmatpush1.bf16.msra.mxu0 0
      %566 = vmatprep.subr.bf16.mxu0 0
      %567 = vmatpush1.bf16.msra.mxu0 0
      %568 = vmatprep.subr.bf16.mxu0 0
      %569 = vmatpush1.bf16.msra.mxu0 0
      %570 = vmatprep.subr.bf16.mxu0 0
      %571 = vmatpush1.bf16.msra.mxu0 0
      %572 = vmatprep.subr.bf16.mxu0 0
      %573 = vmatpush1.bf16.msra.mxu0 0
      %574 = vmatprep.subr.bf16.mxu0 0
      %575 = vmatpush1.bf16.msra.mxu0 0
      %576 = vmatprep.mubr.bf16.mxu0 0
      %577 = vmatmul.mubr.bf16.gmra.mrb[0].mxu0 %v543
      %v578 = vpop.f32.mrb[0].mxu0
      %v579 = vadd.f32 0.0, %v578
      %v580 = vpop.f32.mrb[0].mxu0
      %v581 = vadd.f32 0.0, %v580
      %v582 = vpop.f32.mrb[0].mxu0
      %v583 = vpop.f32.mrb[0].mxu0
      %584 = vdwg.mxu0
      %585 = vmatprep.subr.bf16.mxu0 %v215
      %586 = vmatpush1.bf16.msra.mxu0 %v214
      %587 = vmatprep.subr.bf16.mxu0 %v219
      %588 = vmatpush1.bf16.msra.mxu0 %v218
      %589 = vmatprep.subr.bf16.mxu0 %v223
      %590 = vmatpush1.bf16.msra.mxu0 %v222
      %591 = vmatprep.subr.bf16.mxu0 %v227
      %592 = vmatpush1.bf16.msra.mxu0 %v226
      %593 = vmatprep.subr.bf16.mxu0 %v231
      %594 = vmatpush1.bf16.msra.mxu0 %v230
      %595 = vmatprep.subr.bf16.mxu0 %v235
      %596 = vmatpush1.bf16.msra.mxu0 %v234
      %597 = vmatprep.subr.bf16.mxu0 %v239
      %598 = vmatpush1.bf16.msra.mxu0 %v238
      %599 = vmatprep.subr.bf16.mxu0 %v243
      %600 = vmatpush1.bf16.msra.mxu0 %v242
      %601 = vmatprep.subr.bf16.mxu0 0
      %602 = vmatpush1.bf16.msra.mxu0 0
      %603 = vmatprep.subr.bf16.mxu0 0
      %604 = vmatpush1.bf16.msra.mxu0 0
      %605 = vmatprep.subr.bf16.mxu0 0
      %606 = vmatpush1.bf16.msra.mxu0 0
      %607 = vmatprep.subr.bf16.mxu0 0
      %608 = vmatpush1.bf16.msra.mxu0 0
      %609 = vmatprep.subr.bf16.mxu0 0
      %610 = vmatpush1.bf16.msra.mxu0 0
      %611 = vmatprep.subr.bf16.mxu0 0
      %612 = vmatpush1.bf16.msra.mxu0 0
      %613 = vmatprep.subr.bf16.mxu0 0
      %614 = vmatpush1.bf16.msra.mxu0 0
      %615 = vmatprep.subr.bf16.mxu0 0
      %616 = vmatpush1.bf16.msra.mxu0 0
      %617 = vmatprep.mubr.bf16.mxu0 0
      %618 = vmatmul.mubr.bf16.gmra.mrb[0].mxu0 %v543
      %v619 = vpop.f32.mrb[0].mxu0
      %v620 = vadd.f32 0.0, %v619
      %v621 = vpop.f32.mrb[0].mxu0
      %v622 = vadd.f32 0.0, %v621
      %v623 = vpop.f32.mrb[0].mxu0
      %v624 = vpop.f32.mrb[0].mxu0
      %625 = vdwg.mxu0
      %v626 = vadd.f32 %v539, %v579
      %v627 = vadd.f32 %v540, %v581
      %v628 = vadd.f32 %v541, %v620
      %v629 = vadd.f32 %v542, %v622
      %v630 = vxor.u32 %v626, 2147483648
      %v631 = vmul.f32 %v630, 1.442695
      %v632 = vpow.pop %v631
      %v633 = vadd.f32 %v632, 1.0
      %v634 = vrcp.pop %v633
      %v635 = vmul.f32 1.0, %v634
      %v636 = vxor.u32 %v627, 2147483648
      %v637 = vmul.f32 %v636, 1.442695
      %v638 = vpow.pop %v637
      %v639 = vadd.f32 %v638, 1.0
      %v640 = vrcp.pop %v639
      %v641 = vmul.f32 1.0, %v640
      %v642 = vtanh.pop %v628
      %v643 = vxor.u32 %v629, 2147483648
      %v644 = vmul.f32 %v643, 1.442695
      %v645 = vpow.pop %v644
      %v646 = vadd.f32 %v645, 1.0
      %v647 = vrcp.pop %v646
      %v648 = vmul.f32 1.0, %v647
      %v649 = vmul.f32 %v641, %v535
      %v650 = vmul.f32 %v635, %v642
      %v651 = vadd.f32 %v649, %v650
      %v652 = vtanh.pop %v651
      %v653 = vmul.f32 %v648, %v652
      %s654 = sadd.s32 %s50, 2
      %v655 = vstv %s654
      %vm656 = vcmp.lt.s32.totalorder %v655, %v74
      %v657 = vsel %vm656, 1, 0
      %658 = vset.pattern.permute.xlu0 0
      %659 = vperm.xlu0 %658, %v657
      %v660 = vpop.permute.xlu0 %659
      %vm661 = vcmp.eq.s32.totalorder %v660, 1
      %v662 = vsel %vm661, %v653, %v534
      %663 = vst [vmem:[#allocation10] sm:$0xff] %v662
      %v664 = vsel %vm661, %v651, %v535
      %665 = vst [vmem:[#allocation12] sm:$0xff] %v664
      %v666 = vsel %vm661, %v653, 0.0
      %s667 = scalar_lea.vmem [#allocation9], 16
      %668 = vst [vmem:[%s667] sm:$0xff] %v666
      %v669 = vld [vmem:[#allocation10] sm:$0xff]
      %v670 = vld [vmem:[#allocation12] sm:$0xff]
      %s671 = scalar_lea.vmem [#allocation4], 48
      %v672 = vld [vmem:[%s671] sm:$0xff]
      %v673 = vld [vmem:[%s671 + $0x8] sm:$0xff]
      %v674 = vunpack.c.l.bf16 %v672
      %v675 = vunpack.c.h.bf16 %v672
      %v676 = vunpack.c.l.bf16 %v673
      %v677 = vunpack.c.h.bf16 %v673
      %v678 = vpack.c.bf16 %v669, %v669
      %679 = vmatprep.subr.bf16.mxu0 %v213
      %680 = vmatpush1.bf16.msra.mxu0 %v212
      %681 = vmatprep.subr.bf16.mxu0 %v217
      %682 = vmatpush1.bf16.msra.mxu0 %v216
      %683 = vmatprep.subr.bf16.mxu0 %v221
      %684 = vmatpush1.bf16.msra.mxu0 %v220
      %685 = vmatprep.subr.bf16.mxu0 %v225
      %686 = vmatpush1.bf16.msra.mxu0 %v224
      %687 = vmatprep.subr.bf16.mxu0 %v229
      %688 = vmatpush1.bf16.msra.mxu0 %v228
      %689 = vmatprep.subr.bf16.mxu0 %v233
      %690 = vmatpush1.bf16.msra.mxu0 %v232
      %691 = vmatprep.subr.bf16.mxu0 %v237
      %692 = vmatpush1.bf16.msra.mxu0 %v236
      %693 = vmatprep.subr.bf16.mxu0 %v241
      %694 = vmatpush1.bf16.msra.mxu0 %v240
      %695 = vmatprep.subr.bf16.mxu0 0
      %696 = vmatpush1.bf16.msra.mxu0 0
      %697 = vmatprep.subr.bf16.mxu0 0
      %698 = vmatpush1.bf16.msra.mxu0 0
      %699 = vmatprep.subr.bf16.mxu0 0
      %700 = vmatpush1.bf16.msra.mxu0 0
      %701 = vmatprep.subr.bf16.mxu0 0
      %702 = vmatpush1.bf16.msra.mxu0 0
      %703 = vmatprep.subr.bf16.mxu0 0
      %704 = vmatpush1.bf16.msra.mxu0 0
      %705 = vmatprep.subr.bf16.mxu0 0
      %706 = vmatpush1.bf16.msra.mxu0 0
      %707 = vmatprep.subr.bf16.mxu0 0
      %708 = vmatpush1.bf16.msra.mxu0 0
      %709 = vmatprep.subr.bf16.mxu0 0
      %710 = vmatpush1.bf16.msra.mxu0 0
      %711 = vmatprep.mubr.bf16.mxu0 0
      %712 = vmatmul.mubr.bf16.gmra.mrb[0].mxu0 %v678
      %v713 = vpop.f32.mrb[0].mxu0
      %v714 = vadd.f32 0.0, %v713
      %v715 = vpop.f32.mrb[0].mxu0
      %v716 = vadd.f32 0.0, %v715
      %v717 = vpop.f32.mrb[0].mxu0
      %v718 = vpop.f32.mrb[0].mxu0
      %719 = vdwg.mxu0
      %720 = vmatprep.subr.bf16.mxu0 %v215
      %721 = vmatpush1.bf16.msra.mxu0 %v214
      %722 = vmatprep.subr.bf16.mxu0 %v219
      %723 = vmatpush1.bf16.msra.mxu0 %v218
      %724 = vmatprep.subr.bf16.mxu0 %v223
      %725 = vmatpush1.bf16.msra.mxu0 %v222
      %726 = vmatprep.subr.bf16.mxu0 %v227
      %727 = vmatpush1.bf16.msra.mxu0 %v226
      %728 = vmatprep.subr.bf16.mxu0 %v231
      %729 = vmatpush1.bf16.msra.mxu0 %v230
      %730 = vmatprep.subr.bf16.mxu0 %v235
      %731 = vmatpush1.bf16.msra.mxu0 %v234
      %732 = vmatprep.subr.bf16.mxu0 %v239
      %733 = vmatpush1.bf16.msra.mxu0 %v238
      %734 = vmatprep.subr.bf16.mxu0 %v243
      %735 = vmatpush1.bf16.msra.mxu0 %v242
      %736 = vmatprep.subr.bf16.mxu0 0
      %737 = vmatpush1.bf16.msra.mxu0 0
      %738 = vmatprep.subr.bf16.mxu0 0
      %739 = vmatpush1.bf16.msra.mxu0 0
      %740 = vmatprep.subr.bf16.mxu0 0
      %741 = vmatpush1.bf16.msra.mxu0 0
      %742 = vmatprep.subr.bf16.mxu0 0
      %743 = vmatpush1.bf16.msra.mxu0 0
      %744 = vmatprep.subr.bf16.mxu0 0
      %745 = vmatpush1.bf16.msra.mxu0 0
      %746 = vmatprep.subr.bf16.mxu0 0
      %747 = vmatpush1.bf16.msra.mxu0 0
      %748 = vmatprep.subr.bf16.mxu0 0
      %749 = vmatpush1.bf16.msra.mxu0 0
      %750 = vmatprep.subr.bf16.mxu0 0
      %751 = vmatpush1.bf16.msra.mxu0 0
      %752 = vmatprep.mubr.bf16.mxu0 0
      %753 = vmatmul.mubr.bf16.gmra.mrb[0].mxu0 %v678
      %v754 = vpop.f32.mrb[0].mxu0
      %v755 = vadd.f32 0.0, %v754
      %v756 = vpop.f32.mrb[0].mxu0
      %v757 = vadd.f32 0.0, %v756
      %v758 = vpop.f32.mrb[0].mxu0
      %v759 = vpop.f32.mrb[0].mxu0
      %760 = vdwg.mxu0
      %v761 = vadd.f32 %v674, %v714
      %v762 = vadd.f32 %v675, %v716
      %v763 = vadd.f32 %v676, %v755
      %v764 = vadd.f32 %v677, %v757
      %v765 = vxor.u32 %v761, 2147483648
      %v766 = vmul.f32 %v765, 1.442695
      %v767 = vpow.pop %v766
      %v768 = vadd.f32 %v767, 1.0
      %v769 = vrcp.pop %v768
      %v770 = vmul.f32 1.0, %v769
      %v771 = vxor.u32 %v762, 2147483648
      %v772 = vmul.f32 %v771, 1.442695
      %v773 = vpow.pop %v772
      %v774 = vadd.f32 %v773, 1.0
      %v775 = vrcp.pop %v774
      %v776 = vmul.f32 1.0, %v775
      %v777 = vtanh.pop %v763
      %v778 = vxor.u32 %v764, 2147483648
      %v779 = vmul.f32 %v778, 1.442695
      %v780 = vpow.pop %v779
      %v781 = vadd.f32 %v780, 1.0
      %v782 = vrcp.pop %v781
      %v783 = vmul.f32 1.0, %v782
      %v784 = vmul.f32 %v776, %v670
      %v785 = vmul.f32 %v770, %v777
      %v786 = vadd.f32 %v784, %v785
      %v787 = vtanh.pop %v786
      %v788 = vmul.f32 %v783, %v787
      %s789 = sadd.s32 %s50, 3
      %v790 = vstv %s789
      %vm791 = vcmp.lt.s32.totalorder %v790, %v74
      %v792 = vsel %vm791, 1, 0
      %793 = vset.pattern.permute.xlu0 0
      %794 = vperm.xlu0 %793, %v792
      %v795 = vpop.permute.xlu0 %794
      %vm796 = vcmp.eq.s32.totalorder %v795, 1
      %v797 = vsel %vm796, %v788, %v669
      %798 = vst [vmem:[#allocation10] sm:$0xff] %v797
      %v799 = vsel %vm796, %v786, %v670
      %800 = vst [vmem:[#allocation12] sm:$0xff] %v799
      %v801 = vsel %vm796, %v788, 0.0
      %s802 = scalar_lea.vmem [#allocation9], 24
      %803 = vst [vmem:[%s802] sm:$0xff] %v801
      %v804 = vld [vmem:[#allocation10] sm:$0xff]
      %v805 = vld [vmem:[#allocation12] sm:$0xff]
      %s806 = scalar_lea.vmem [#allocation4], 64
      %v807 = vld [vmem:[%s806] sm:$0xff]
      %v808 = vld [vmem:[%s806 + $0x8] sm:$0xff]
      %v809 = vunpack.c.l.bf16 %v807
      %v810 = vunpack.c.h.bf16 %v807
      %v811 = vunpack.c.l.bf16 %v808
      %v812 = vunpack.c.h.bf16 %v808
      %v813 = vpack.c.bf16 %v804, %v804
      %814 = vmatprep.subr.bf16.mxu0 %v213
      %815 = vmatpush1.bf16.msra.mxu0 %v212
      %816 = vmatprep.subr.bf16.mxu0 %v217
      %817 = vmatpush1.bf16.msra.mxu0 %v216
      %818 = vmatprep.subr.bf16.mxu0 %v221
      %819 = vmatpush1.bf16.msra.mxu0 %v220
      %820 = vmatprep.subr.bf16.mxu0 %v225
      %821 = vmatpush1.bf16.msra.mxu0 %v224
      %822 = vmatprep.subr.bf16.mxu0 %v229
      %823 = vmatpush1.bf16.msra.mxu0 %v228
      %824 = vmatprep.subr.bf16.mxu0 %v233
      %825 = vmatpush1.bf16.msra.mxu0 %v232
      %826 = vmatprep.subr.bf16.mxu0 %v237
      %827 = vmatpush1.bf16.msra.mxu0 %v236
      %828 = vmatprep.subr.bf16.mxu0 %v241
      %829 = vmatpush1.bf16.msra.mxu0 %v240
      %830 = vmatprep.subr.bf16.mxu0 0
      %831 = vmatpush1.bf16.msra.mxu0 0
      %832 = vmatprep.subr.bf16.mxu0 0
      %833 = vmatpush1.bf16.msra.mxu0 0
      %834 = vmatprep.subr.bf16.mxu0 0
      %835 = vmatpush1.bf16.msra.mxu0 0
      %836 = vmatprep.subr.bf16.mxu0 0
      %837 = vmatpush1.bf16.msra.mxu0 0
      %838 = vmatprep.subr.bf16.mxu0 0
      %839 = vmatpush1.bf16.msra.mxu0 0
      %840 = vmatprep.subr.bf16.mxu0 0
      %841 = vmatpush1.bf16.msra.mxu0 0
      %842 = vmatprep.subr.bf16.mxu0 0
      %843 = vmatpush1.bf16.msra.mxu0 0
      %844 = vmatprep.subr.bf16.mxu0 0
      %845 = vmatpush1.bf16.msra.mxu0 0
      %846 = vmatprep.mubr.bf16.mxu0 0
      %847 = vmatmul.mubr.bf16.gmra.mrb[0].mxu0 %v813
      %v848 = vpop.f32.mrb[0].mxu0
      %v849 = vadd.f32 0.0, %v848
      %v850 = vpop.f32.mrb[0].mxu0
      %v851 = vadd.f32 0.0, %v850
      %v852 = vpop.f32.mrb[0].mxu0
      %v853 = vpop.f32.mrb[0].mxu0
      %854 = vdwg.mxu0
      %855 = vmatprep.subr.bf16.mxu0 %v215
      %856 = vmatpush1.bf16.msra.mxu0 %v214
      %857 = vmatprep.subr.bf16.mxu0 %v219
      %858 = vmatpush1.bf16.msra.mxu0 %v218
      %859 = vmatprep.subr.bf16.mxu0 %v223
      %860 = vmatpush1.bf16.msra.mxu0 %v222
      %861 = vmatprep.subr.bf16.mxu0 %v227
      %862 = vmatpush1.bf16.msra.mxu0 %v226
      %863 = vmatprep.subr.bf16.mxu0 %v231
      %864 = vmatpush1.bf16.msra.mxu0 %v230
      %865 = vmatprep.subr.bf16.mxu0 %v235
      %866 = vmatpush1.bf16.msra.mxu0 %v234
      %867 = vmatprep.subr.bf16.mxu0 %v239
      %868 = vmatpush1.bf16.msra.mxu0 %v238
      %869 = vmatprep.subr.bf16.mxu0 %v243
      %870 = vmatpush1.bf16.msra.mxu0 %v242
      %871 = vmatprep.subr.bf16.mxu0 0
      %872 = vmatpush1.bf16.msra.mxu0 0
      %873 = vmatprep.subr.bf16.mxu0 0
      %874 = vmatpush1.bf16.msra.mxu0 0
      %875 = vmatprep.subr.bf16.mxu0 0
      %876 = vmatpush1.bf16.msra.mxu0 0
      %877 = vmatprep.subr.bf16.mxu0 0
      %878 = vmatpush1.bf16.msra.mxu0 0
      %879 = vmatprep.subr.bf16.mxu0 0
      %880 = vmatpush1.bf16.msra.mxu0 0
      %881 = vmatprep.subr.bf16.mxu0 0
      %882 = vmatpush1.bf16.msra.mxu0 0
      %883 = vmatprep.subr.bf16.mxu0 0
      %884 = vmatpush1.bf16.msra.mxu0 0
      %885 = vmatprep.subr.bf16.mxu0 0
      %886 = vmatpush1.bf16.msra.mxu0 0
      %887 = vmatprep.mubr.bf16.mxu0 0
      %888 = vmatmul.mubr.bf16.gmra.mrb[0].mxu0 %v813
      %v889 = vpop.f32.mrb[0].mxu0
      %v890 = vadd.f32 0.0, %v889
      %v891 = vpop.f32.mrb[0].mxu0
      %v892 = vadd.f32 0.0, %v891
      %v893 = vpop.f32.mrb[0].mxu0
      %v894 = vpop.f32.mrb[0].mxu0
      %895 = vdwg.mxu0
      %v896 = vadd.f32 %v809, %v849
      %v897 = vadd.f32 %v810, %v851
      %v898 = vadd.f32 %v811, %v890
      %v899 = vadd.f32 %v812, %v892
      %v900 = vxor.u32 %v896, 2147483648
      %v901 = vmul.f32 %v900, 1.442695
      %v902 = vpow.pop %v901
      %v903 = vadd.f32 %v902, 1.0
      %v904 = vrcp.pop %v903
      %v905 = vmul.f32 1.0, %v904
      %v906 = vxor.u32 %v897, 2147483648
      %v907 = vmul.f32 %v906, 1.442695
      %v908 = vpow.pop %v907
      %v909 = vadd.f32 %v908, 1.0
      %v910 = vrcp.pop %v909
      %v911 = vmul.f32 1.0, %v910
      %v912 = vtanh.pop %v898
      %v913 = vxor.u32 %v899, 2147483648
      %v914 = vmul.f32 %v913, 1.442695
      %v915 = vpow.pop %v914
      %v916 = vadd.f32 %v915, 1.0
      %v917 = vrcp.pop %v916
      %v918 = vmul.f32 1.0, %v917
      %v919 = vmul.f32 %v911, %v805
      %v920 = vmul.f32 %v905, %v912
      %v921 = vadd.f32 %v919, %v920
      %v922 = vtanh.pop %v921
      %v923 = vmul.f32 %v918, %v922
      %s924 = sadd.s32 %s50, 4
      %v925 = vstv %s924
      %vm926 = vcmp.lt.s32.totalorder %v925, %v74
      %v927 = vsel %vm926, 1, 0
      %928 = vset.pattern.permute.xlu0 0
      %929 = vperm.xlu0 %928, %v927
      %v930 = vpop.permute.xlu0 %929
      %vm931 = vcmp.eq.s32.totalorder %v930, 1
      %v932 = vsel %vm931, %v923, %v804
      %933 = vst [vmem:[#allocation10] sm:$0xff] %v932
      %v934 = vsel %vm931, %v921, %v805
      %935 = vst [vmem:[#allocation12] sm:$0xff] %v934
      %v936 = vsel %vm931, %v923, 0.0
      %s937 = scalar_lea.vmem [#allocation9], 32
      %938 = vst [vmem:[%s937] sm:$0xff] %v936
      %v939 = vld [vmem:[#allocation10] sm:$0xff]
      %v940 = vld [vmem:[#allocation12] sm:$0xff]
      %s941 = scalar_lea.vmem [#allocation4], 80
      %v942 = vld [vmem:[%s941] sm:$0xff]
      %v943 = vld [vmem:[%s941 + $0x8] sm:$0xff]
      %v944 = vunpack.c.l.bf16 %v942
      %v945 = vunpack.c.h.bf16 %v942
      %v946 = vunpack.c.l.bf16 %v943
      %v947 = vunpack.c.h.bf16 %v943
      %v948 = vpack.c.bf16 %v939, %v939
      %949 = vmatprep.subr.bf16.mxu0 %v213
      %950 = vmatpush1.bf16.msra.mxu0 %v212
      %951 = vmatprep.subr.bf16.mxu0 %v217
      %952 = vmatpush1.bf16.msra.mxu0 %v216
      %953 = vmatprep.subr.bf16.mxu0 %v221
      %954 = vmatpush1.bf16.msra.mxu0 %v220
      %955 = vmatprep.subr.bf16.mxu0 %v225
      %956 = vmatpush1.bf16.msra.mxu0 %v224
      %957 = vmatprep.subr.bf16.mxu0 %v229
      %958 = vmatpush1.bf16.msra.mxu0 %v228
      %959 = vmatprep.subr.bf16.mxu0 %v233
      %960 = vmatpush1.bf16.msra.mxu0 %v232
      %961 = vmatprep.subr.bf16.mxu0 %v237
      %962 = vmatpush1.bf16.msra.mxu0 %v236
      %963 = vmatprep.subr.bf16.mxu0 %v241
      %964 = vmatpush1.bf16.msra.mxu0 %v240
      %965 = vmatprep.subr.bf16.mxu0 0
      %966 = vmatpush1.bf16.msra.mxu0 0
      %967 = vmatprep.subr.bf16.mxu0 0
      %968 = vmatpush1.bf16.msra.mxu0 0
      %969 = vmatprep.subr.bf16.mxu0 0
      %970 = vmatpush1.bf16.msra.mxu0 0
      %971 = vmatprep.subr.bf16.mxu0 0
      %972 = vmatpush1.bf16.msra.mxu0 0
      %973 = vmatprep.subr.bf16.mxu0 0
      %974 = vmatpush1.bf16.msra.mxu0 0
      %975 = vmatprep.subr.bf16.mxu0 0
      %976 = vmatpush1.bf16.msra.mxu0 0
      %977 = vmatprep.subr.bf16.mxu0 0
      %978 = vmatpush1.bf16.msra.mxu0 0
      %979 = vmatprep.subr.bf16.mxu0 0
      %980 = vmatpush1.bf16.msra.mxu0 0
      %981 = vmatprep.mubr.bf16.mxu0 0
      %982 = vmatmul.mubr.bf16.gmra.mrb[0].mxu0 %v948
      %v983 = vpop.f32.mrb[0].mxu0
      %v984 = vadd.f32 0.0, %v983
      %v985 = vpop.f32.mrb[0].mxu0
      %v986 = vadd.f32 0.0, %v985
      %v987 = vpop.f32.mrb[0].mxu0
      %v988 = vpop.f32.mrb[0].mxu0
      %989 = vdwg.mxu0
      %990 = vmatprep.subr.bf16.mxu0 %v215
      %991 = vmatpush1.bf16.msra.mxu0 %v214
      %992 = vmatprep.subr.bf16.mxu0 %v219
      %993 = vmatpush1.bf16.msra.mxu0 %v218
      %994 = vmatprep.subr.bf16.mxu0 %v223
      %995 = vmatpush1.bf16.msra.mxu0 %v222
      %996 = vmatprep.subr.bf16.mxu0 %v227
      %997 = vmatpush1.bf16.msra.mxu0 %v226
      %998 = vmatprep.subr.bf16.mxu0 %v231
      %999 = vmatpush1.bf16.msra.mxu0 %v230
      %1000 = vmatprep.subr.bf16.mxu0 %v235
      %1001 = vmatpush1.bf16.msra.mxu0 %v234
      %1002 = vmatprep.subr.bf16.mxu0 %v239
      %1003 = vmatpush1.bf16.msra.mxu0 %v238
      %1004 = vmatprep.subr.bf16.mxu0 %v243
      %1005 = vmatpush1.bf16.msra.mxu0 %v242
      %1006 = vmatprep.subr.bf16.mxu0 0
      %1007 = vmatpush1.bf16.msra.mxu0 0
      %1008 = vmatprep.subr.bf16.mxu0 0
      %1009 = vmatpush1.bf16.msra.mxu0 0
      %1010 = vmatprep.subr.bf16.mxu0 0
      %1011 = vmatpush1.bf16.msra.mxu0 0
      %1012 = vmatprep.subr.bf16.mxu0 0
      %1013 = vmatpush1.bf16.msra.mxu0 0
      %1014 = vmatprep.subr.bf16.mxu0 0
      %1015 = vmatpush1.bf16.msra.mxu0 0
      %1016 = vmatprep.subr.bf16.mxu0 0
      %1017 = vmatpush1.bf16.msra.mxu0 0
      %1018 = vmatprep.subr.bf16.mxu0 0
      %1019 = vmatpush1.bf16.msra.mxu0 0
      %1020 = vmatprep.subr.bf16.mxu0 0
      %1021 = vmatpush1.bf16.msra.mxu0 0
      %1022 = vmatprep.mubr.bf16.mxu0 0
      %1023 = vmatmul.mubr.bf16.gmra.mrb[0].mxu0 %v948
      %v1024 = vpop.f32.mrb[0].mxu0
      %v1025 = vadd.f32 0.0, %v1024
      %v1026 = vpop.f32.mrb[0].mxu0
      %v1027 = vadd.f32 0.0, %v1026
      %v1028 = vpop.f32.mrb[0].mxu0
      %v1029 = vpop.f32.mrb[0].mxu0
      %1030 = vdwg.mxu0
      %v1031 = vadd.f32 %v944, %v984
      %v1032 = vadd.f32 %v945, %v986
      %v1033 = vadd.f32 %v946, %v1025
      %v1034 = vadd.f32 %v947, %v1027
      %v1035 = vxor.u32 %v1031, 2147483648
      %v1036 = vmul.f32 %v1035, 1.442695
      %v1037 = vpow.pop %v1036
      %v1038 = vadd.f32 %v1037, 1.0
      %v1039 = vrcp.pop %v1038
      %v1040 = vmul.f32 1.0, %v1039
      %v1041 = vxor.u32 %v1032, 2147483648
      %v1042 = vmul.f32 %v1041, 1.442695
      %v1043 = vpow.pop %v1042
      %v1044 = vadd.f32 %v1043, 1.0
      %v1045 = vrcp.pop %v1044
      %v1046 = vmul.f32 1.0, %v1045
      %v1047 = vtanh.pop %v1033
      %v1048 = vxor.u32 %v1034, 2147483648
      %v1049 = vmul.f32 %v1048, 1.442695
      %v1050 = vpow.pop %v1049
      %v1051 = vadd.f32 %v1050, 1.0
      %v1052 = vrcp.pop %v1051
      %v1053 = vmul.f32 1.0, %v1052
      %v1054 = vmul.f32 %v1046, %v940
      %v1055 = vmul.f32 %v1040, %v1047
      %v1056 = vadd.f32 %v1054, %v1055
      %v1057 = vtanh.pop %v1056
      %v1058 = vmul.f32 %v1053, %v1057
      %s1059 = sadd.s32 %s50, 5
      %v1060 = vstv %s1059
      %vm1061 = vcmp.lt.s32.totalorder %v1060, %v74
      %v1062 = vsel %vm1061, 1, 0
      %1063 = vset.pattern.permute.xlu0 0
      %1064 = vperm.xlu0 %1063, %v1062
      %v1065 = vpop.permute.xlu0 %1064
      %vm1066 = vcmp.eq.s32.totalorder %v1065, 1
      %v1067 = vsel %vm1066, %v1058, %v939
      %1068 = vst [vmem:[#allocation10] sm:$0xff] %v1067
      %v1069 = vsel %vm1066, %v1056, %v940
      %1070 = vst [vmem:[#allocation12] sm:$0xff] %v1069
      %v1071 = vsel %vm1066, %v1058, 0.0
      %s1072 = scalar_lea.vmem [#allocation9], 40
      %1073 = vst [vmem:[%s1072] sm:$0xff] %v1071
      %v1074 = vld [vmem:[#allocation10] sm:$0xff]
      %v1075 = vld [vmem:[#allocation12] sm:$0xff]
      %s1076 = scalar_lea.vmem [#allocation4], 96
      %v1077 = vld [vmem:[%s1076] sm:$0xff]
      %v1078 = vld [vmem:[%s1076 + $0x8] sm:$0xff]
      %v1079 = vunpack.c.l.bf16 %v1077
      %v1080 = vunpack.c.h.bf16 %v1077
      %v1081 = vunpack.c.l.bf16 %v1078
      %v1082 = vunpack.c.h.bf16 %v1078
      %v1083 = vpack.c.bf16 %v1074, %v1074
      %1084 = vmatprep.subr.bf16.mxu0 %v213
      %1085 = vmatpush1.bf16.msra.mxu0 %v212
      %1086 = vmatprep.subr.bf16.mxu0 %v217
      %1087 = vmatpush1.bf16.msra.mxu0 %v216
      %1088 = vmatprep.subr.bf16.mxu0 %v221
      %1089 = vmatpush1.bf16.msra.mxu0 %v220
      %1090 = vmatprep.subr.bf16.mxu0 %v225
      %1091 = vmatpush1.bf16.msra.mxu0 %v224
      %1092 = vmatprep.subr.bf16.mxu0 %v229
      %1093 = vmatpush1.bf16.msra.mxu0 %v228
      %1094 = vmatprep.subr.bf16.mxu0 %v233
      %1095 = vmatpush1.bf16.msra.mxu0 %v232
      %1096 = vmatprep.subr.bf16.mxu0 %v237
      %1097 = vmatpush1.bf16.msra.mxu0 %v236
      %1098 = vmatprep.subr.bf16.mxu0 %v241
      %1099 = vmatpush1.bf16.msra.mxu0 %v240
      %1100 = vmatprep.subr.bf16.mxu0 0
      %1101 = vmatpush1.bf16.msra.mxu0 0
      %1102 = vmatprep.subr.bf16.mxu0 0
      %1103 = vmatpush1.bf16.msra.mxu0 0
      %1104 = vmatprep.subr.bf16.mxu0 0
      %1105 = vmatpush1.bf16.msra.mxu0 0
      %1106 = vmatprep.subr.bf16.mxu0 0
      %1107 = vmatpush1.bf16.msra.mxu0 0
      %1108 = vmatprep.subr.bf16.mxu0 0
      %1109 = vmatpush1.bf16.msra.mxu0 0
      %1110 = vmatprep.subr.bf16.mxu0 0
      %1111 = vmatpush1.bf16.msra.mxu0 0
      %1112 = vmatprep.subr.bf16.mxu0 0
      %1113 = vmatpush1.bf16.msra.mxu0 0
      %1114 = vmatprep.subr.bf16.mxu0 0
      %1115 = vmatpush1.bf16.msra.mxu0 0
      %1116 = vmatprep.mubr.bf16.mxu0 0
      %1117 = vmatmul.mubr.bf16.gmra.mrb[0].mxu0 %v1083
      %v1118 = vpop.f32.mrb[0].mxu0
      %v1119 = vadd.f32 0.0, %v1118
      %v1120 = vpop.f32.mrb[0].mxu0
      %v1121 = vadd.f32 0.0, %v1120
      %v1122 = vpop.f32.mrb[0].mxu0
      %v1123 = vpop.f32.mrb[0].mxu0
      %1124 = vdwg.mxu0
      %1125 = vmatprep.subr.bf16.mxu0 %v215
      %1126 = vmatpush1.bf16.msra.mxu0 %v214
      %1127 = vmatprep.subr.bf16.mxu0 %v219
      %1128 = vmatpush1.bf16.msra.mxu0 %v218
      %1129 = vmatprep.subr.bf16.mxu0 %v223
      %1130 = vmatpush1.bf16.msra.mxu0 %v222
      %1131 = vmatprep.subr.bf16.mxu0 %v227
      %1132 = vmatpush1.bf16.msra.mxu0 %v226
      %1133 = vmatprep.subr.bf16.mxu0 %v231
      %1134 = vmatpush1.bf16.msra.mxu0 %v230
      %1135 = vmatprep.subr.bf16.mxu0 %v235
      %1136 = vmatpush1.bf16.msra.mxu0 %v234
      %1137 = vmatprep.subr.bf16.mxu0 %v239
      %1138 = vmatpush1.bf16.msra.mxu0 %v238
      %1139 = vmatprep.subr.bf16.mxu0 %v243
      %1140 = vmatpush1.bf16.msra.mxu0 %v242
      %1141 = vmatprep.subr.bf16.mxu0 0
      %1142 = vmatpush1.bf16.msra.mxu0 0
      %1143 = vmatprep.subr.bf16.mxu0 0
      %1144 = vmatpush1.bf16.msra.mxu0 0
      %1145 = vmatprep.subr.bf16.mxu0 0
      %1146 = vmatpush1.bf16.msra.mxu0 0
      %1147 = vmatprep.subr.bf16.mxu0 0
      %1148 = vmatpush1.bf16.msra.mxu0 0
      %1149 = vmatprep.subr.bf16.mxu0 0
      %1150 = vmatpush1.bf16.msra.mxu0 0
      %1151 = vmatprep.subr.bf16.mxu0 0
      %1152 = vmatpush1.bf16.msra.mxu0 0
      %1153 = vmatprep.subr.bf16.mxu0 0
      %1154 = vmatpush1.bf16.msra.mxu0 0
      %1155 = vmatprep.subr.bf16.mxu0 0
      %1156 = vmatpush1.bf16.msra.mxu0 0
      %1157 = vmatprep.mubr.bf16.mxu0 0
      %1158 = vmatmul.mubr.bf16.gmra.mrb[0].mxu0 %v1083
      %v1159 = vpop.f32.mrb[0].mxu0
      %v1160 = vadd.f32 0.0, %v1159
      %v1161 = vpop.f32.mrb[0].mxu0
      %v1162 = vadd.f32 0.0, %v1161
      %v1163 = vpop.f32.mrb[0].mxu0
      %v1164 = vpop.f32.mrb[0].mxu0
      %1165 = vdwg.mxu0
      %v1166 = vadd.f32 %v1079, %v1119
      %v1167 = vadd.f32 %v1080, %v1121
      %v1168 = vadd.f32 %v1081, %v1160
      %v1169 = vadd.f32 %v1082, %v1162
      %v1170 = vxor.u32 %v1166, 2147483648
      %v1171 = vmul.f32 %v1170, 1.442695
      %v1172 = vpow.pop %v1171
      %v1173 = vadd.f32 %v1172, 1.0
      %v1174 = vrcp.pop %v1173
      %v1175 = vmul.f32 1.0, %v1174
      %v1176 = vxor.u32 %v1167, 2147483648
      %v1177 = vmul.f32 %v1176, 1.442695
      %v1178 = vpow.pop %v1177
      %v1179 = vadd.f32 %v1178, 1.0
      %v1180 = vrcp.pop %v1179
      %v1181 = vmul.f32 1.0, %v1180
      %v1182 = vtanh.pop %v1168
      %v1183 = vxor.u32 %v1169, 2147483648
      %v1184 = vmul.f32 %v1183, 1.442695
      %v1185 = vpow.pop %v1184
      %v1186 = vadd.f32 %v1185, 1.0
      %v1187 = vrcp.pop %v1186
      %v1188 = vmul.f32 1.0, %v1187
      %v1189 = vmul.f32 %v1181, %v1075
      %v1190 = vmul.f32 %v1175, %v1182
      %v1191 = vadd.f32 %v1189, %v1190
      %v1192 = vtanh.pop %v1191
      %v1193 = vmul.f32 %v1188, %v1192
      %s1194 = sadd.s32 %s50, 6
      %v1195 = vstv %s1194
      %vm1196 = vcmp.lt.s32.totalorder %v1195, %v74
      %v1197 = vsel %vm1196, 1, 0
      %1198 = vset.pattern.permute.xlu0 0
      %1199 = vperm.xlu0 %1198, %v1197
      %v1200 = vpop.permute.xlu0 %1199
      %vm1201 = vcmp.eq.s32.totalorder %v1200, 1
      %v1202 = vsel %vm1201, %v1193, %v1074
      %1203 = vst [vmem:[#allocation10] sm:$0xff] %v1202
      %v1204 = vsel %vm1201, %v1191, %v1075
      %1205 = vst [vmem:[#allocation12] sm:$0xff] %v1204
      %v1206 = vsel %vm1201, %v1193, 0.0
      %s1207 = scalar_lea.vmem [#allocation9], 48
      %1208 = vst [vmem:[%s1207] sm:$0xff] %v1206
      %v1209 = vld [vmem:[#allocation10] sm:$0xff]
      %v1210 = vld [vmem:[#allocation12] sm:$0xff]
      %s1211 = scalar_lea.vmem [#allocation4], 112
      %v1212 = vld [vmem:[%s1211] sm:$0xff]
      %v1213 = vld [vmem:[%s1211 + $0x8] sm:$0xff]
      %v1214 = vunpack.c.l.bf16 %v1212
      %v1215 = vunpack.c.h.bf16 %v1212
      %v1216 = vunpack.c.l.bf16 %v1213
      %v1217 = vunpack.c.h.bf16 %v1213
      %v1218 = vpack.c.bf16 %v1209, %v1209
      %1219 = vmatprep.subr.bf16.mxu0 %v213
      %1220 = vmatpush1.bf16.msra.mxu0 %v212
      %1221 = vmatprep.subr.bf16.mxu0 %v217
      %1222 = vmatpush1.bf16.msra.mxu0 %v216
      %1223 = vmatprep.subr.bf16.mxu0 %v221
      %1224 = vmatpush1.bf16.msra.mxu0 %v220
      %1225 = vmatprep.subr.bf16.mxu0 %v225
      %1226 = vmatpush1.bf16.msra.mxu0 %v224
      %1227 = vmatprep.subr.bf16.mxu0 %v229
      %1228 = vmatpush1.bf16.msra.mxu0 %v228
      %1229 = vmatprep.subr.bf16.mxu0 %v233
      %1230 = vmatpush1.bf16.msra.mxu0 %v232
      %1231 = vmatprep.subr.bf16.mxu0 %v237
      %1232 = vmatpush1.bf16.msra.mxu0 %v236
      %1233 = vmatprep.subr.bf16.mxu0 %v241
      %1234 = vmatpush1.bf16.msra.mxu0 %v240
      %1235 = vmatprep.subr.bf16.mxu0 0
      %1236 = vmatpush1.bf16.msra.mxu0 0
      %1237 = vmatprep.subr.bf16.mxu0 0
      %1238 = vmatpush1.bf16.msra.mxu0 0
      %1239 = vmatprep.subr.bf16.mxu0 0
      %1240 = vmatpush1.bf16.msra.mxu0 0
      %1241 = vmatprep.subr.bf16.mxu0 0
      %1242 = vmatpush1.bf16.msra.mxu0 0
      %1243 = vmatprep.subr.bf16.mxu0 0
      %1244 = vmatpush1.bf16.msra.mxu0 0
      %1245 = vmatprep.subr.bf16.mxu0 0
      %1246 = vmatpush1.bf16.msra.mxu0 0
      %1247 = vmatprep.subr.bf16.mxu0 0
      %1248 = vmatpush1.bf16.msra.mxu0 0
      %1249 = vmatprep.subr.bf16.mxu0 0
      %1250 = vmatpush1.bf16.msra.mxu0 0
      %1251 = vmatprep.mubr.bf16.mxu0 0
      %1252 = vmatmul.mubr.bf16.gmra.mrb[0].mxu0 %v1218
      %v1253 = vpop.f32.mrb[0].mxu0
      %v1254 = vadd.f32 0.0, %v1253
      %v1255 = vpop.f32.mrb[0].mxu0
      %v1256 = vadd.f32 0.0, %v1255
      %v1257 = vpop.f32.mrb[0].mxu0
      %v1258 = vpop.f32.mrb[0].mxu0
      %1259 = vdwg.mxu0
      %1260 = vmatprep.subr.bf16.mxu0 %v215
      %1261 = vmatpush1.bf16.msra.mxu0 %v214
      %1262 = vmatprep.subr.bf16.mxu0 %v219
      %1263 = vmatpush1.bf16.msra.mxu0 %v218
      %1264 = vmatprep.subr.bf16.mxu0 %v223
      %1265 = vmatpush1.bf16.msra.mxu0 %v222
      %1266 = vmatprep.subr.bf16.mxu0 %v227
      %1267 = vmatpush1.bf16.msra.mxu0 %v226
      %1268 = vmatprep.subr.bf16.mxu0 %v231
      %1269 = vmatpush1.bf16.msra.mxu0 %v230
      %1270 = vmatprep.subr.bf16.mxu0 %v235
      %1271 = vmatpush1.bf16.msra.mxu0 %v234
      %1272 = vmatprep.subr.bf16.mxu0 %v239
      %1273 = vmatpush1.bf16.msra.mxu0 %v238
      %1274 = vmatprep.subr.bf16.mxu0 %v243
      %1275 = vmatpush1.bf16.msra.mxu0 %v242
      %1276 = vmatprep.subr.bf16.mxu0 0
      %1277 = vmatpush1.bf16.msra.mxu0 0
      %1278 = vmatprep.subr.bf16.mxu0 0
      %1279 = vmatpush1.bf16.msra.mxu0 0
      %1280 = vmatprep.subr.bf16.mxu0 0
      %1281 = vmatpush1.bf16.msra.mxu0 0
      %1282 = vmatprep.subr.bf16.mxu0 0
      %1283 = vmatpush1.bf16.msra.mxu0 0
      %1284 = vmatprep.subr.bf16.mxu0 0
      %1285 = vmatpush1.bf16.msra.mxu0 0
      %1286 = vmatprep.subr.bf16.mxu0 0
      %1287 = vmatpush1.bf16.msra.mxu0 0
      %1288 = vmatprep.subr.bf16.mxu0 0
      %1289 = vmatpush1.bf16.msra.mxu0 0
      %1290 = vmatprep.subr.bf16.mxu0 0
      %1291 = vmatpush1.bf16.msra.mxu0 0
      %1292 = vmatprep.mubr.bf16.mxu0 0
      %1293 = vmatmul.mubr.bf16.gmra.mrb[0].mxu0 %v1218
      %v1294 = vpop.f32.mrb[0].mxu0
      %v1295 = vadd.f32 0.0, %v1294
      %v1296 = vpop.f32.mrb[0].mxu0
      %v1297 = vadd.f32 0.0, %v1296
      %v1298 = vpop.f32.mrb[0].mxu0
      %v1299 = vpop.f32.mrb[0].mxu0
      %1300 = vdwg.mxu0
      %v1301 = vadd.f32 %v1214, %v1254
      %v1302 = vadd.f32 %v1215, %v1256
      %v1303 = vadd.f32 %v1216, %v1295
      %v1304 = vadd.f32 %v1217, %v1297
      %v1305 = vxor.u32 %v1301, 2147483648
      %v1306 = vmul.f32 %v1305, 1.442695
      %v1307 = vpow.pop %v1306
      %v1308 = vadd.f32 %v1307, 1.0
      %v1309 = vrcp.pop %v1308
      %v1310 = vmul.f32 1.0, %v1309
      %v1311 = vxor.u32 %v1302, 2147483648
      %v1312 = vmul.f32 %v1311, 1.442695
      %v1313 = vpow.pop %v1312
      %v1314 = vadd.f32 %v1313, 1.0
      %v1315 = vrcp.pop %v1314
      %v1316 = vmul.f32 1.0, %v1315
      %v1317 = vtanh.pop %v1303
      %v1318 = vxor.u32 %v1304, 2147483648
      %v1319 = vmul.f32 %v1318, 1.442695
      %v1320 = vpow.pop %v1319
      %v1321 = vadd.f32 %v1320, 1.0
      %v1322 = vrcp.pop %v1321
      %v1323 = vmul.f32 1.0, %v1322
      %v1324 = vmul.f32 %v1316, %v1210
      %v1325 = vmul.f32 %v1310, %v1317
      %v1326 = vadd.f32 %v1324, %v1325
      %v1327 = vtanh.pop %v1326
      %v1328 = vmul.f32 %v1323, %v1327
      %s1329 = sadd.s32 %s50, 7
      %v1330 = vstv %s1329
      %vm1331 = vcmp.lt.s32.totalorder %v1330, %v74
      %v1332 = vsel %vm1331, 1, 0
      %1333 = vset.pattern.permute.xlu0 0
      %1334 = vperm.xlu0 %1333, %v1332
      %v1335 = vpop.permute.xlu0 %1334
      %vm1336 = vcmp.eq.s32.totalorder %v1335, 1
      %v1337 = vsel %vm1336, %v1328, %v1209
      %1338 = vst [vmem:[#allocation10] sm:$0xff] %v1337
      %v1339 = vsel %vm1336, %v1326, %v1210
      %1340 = vst [vmem:[#allocation12] sm:$0xff] %v1339
      %v1341 = vsel %vm1336, %v1328, 0.0
      %s1342 = scalar_lea.vmem [#allocation9], 56
      %1343 = vst [vmem:[%s1342] sm:$0xff] %v1341
    $region33: #{tpu_custom_call.1} parent=1 // pred_fallthru
      _
    // Predicated region
    $region34: #{tpu_custom_call.1} parent=1 // pred_check
      _
    $region35: #{tpu_custom_call.1} parent=1 // pred_check_branch
      %1345 = sbr.rel (0) target = $region37
    $region36: #{tpu_custom_call.1} parent=1 // pred_region
      %s1347 = ssub.s32 1024, 1024
      %1348 = vsyncadd [#allocation6], %s1347
      %s1349 = sshll.u32 [#allocation9], 4
      %s1350 = int_to_ptr.vmem [resolvable:$true] %s1349
      %1355 = dma.vmem_to_hbm [thread:$0]  %s1350, 1024, %s4, [#allocation6], 128, 128, 8
    $region37: #{tpu_custom_call.1} parent=1 // pred_fallthru
      _
    // Predicated region
    $region38: #{tpu_custom_call.1} parent=1 // pred_check
      _
    $region39: #{tpu_custom_call.1} parent=1 // pred_check_branch
      %1357 = sbr.rel (0) target = $region41
    $region40: #{tpu_custom_call.1} parent=1 // pred_region
      %s1359 = ssub.s32 128, 128
      %1360 = vsyncadd [#allocation11], %s1359
      %s1362 = sshll.u32 [#allocation10], 4
      %s1363 = int_to_ptr.vmem [resolvable:$true] %s1362
      %1365 = dma.vmem_to_hbm [thread:$0]  %s1363, 128, %s5, [#allocation11]
    $region41: #{tpu_custom_call.1} parent=1 // pred_fallthru
      _
    // Predicated region
    $region42: #{tpu_custom_call.1} parent=1 // pred_check
      _
    $region43: #{tpu_custom_call.1} parent=1 // pred_check_branch
      %1367 = sbr.rel (0) target = $region45
    $region44: #{tpu_custom_call.1} parent=1 // pred_region
      %s1369 = ssub.s32 128, 128
      %1370 = vsyncadd [#allocation11], %s1369
      %s1372 = sshll.u32 [#allocation12], 4
      %s1373 = int_to_ptr.vmem [resolvable:$true] %s1372
      %1375 = dma.vmem_to_hbm [thread:$0]  %s1373, 128, %s6, [#allocation11]
    $region45: #{tpu_custom_call.1} parent=1 // pred_fallthru
      _
    // Predicated region
    $region46: #{tpu_custom_call.1} parent=1 // pred_check
      _
    $region47: #{tpu_custom_call.1} parent=1 // pred_check_branch
      %1377 = sbr.rel (0) target = $region49
    $region48: #{tpu_custom_call.1} parent=1 // pred_region
      %1378 = dma.done [#allocation6], 1024
    $region49: #{tpu_custom_call.1} parent=1 // pred_fallthru
      _
    // Predicated region
    $region50: #{tpu_custom_call.1} parent=1 // pred_check
      _
    $region51: #{tpu_custom_call.1} parent=1 // pred_check_branch
      %1380 = sbr.rel (0) target = $region53
    $region52: #{tpu_custom_call.1} parent=1 // pred_region
      %1381 = dma.done [#allocation11], 128
    $region53: #{tpu_custom_call.1} parent=1 // pred_fallthru
      _
    // Predicated region
    $region54: #{tpu_custom_call.1} parent=1 // pred_check
      _
    $region55: #{tpu_custom_call.1} parent=1 // pred_check_branch
      %1383 = sbr.rel (0) target = $region57
    $region56: #{tpu_custom_call.1} parent=1 // pred_region
      %1384 = dma.done [#allocation11], 128
    $region57: #{tpu_custom_call.1} parent=1 // pred_fallthru
      _
    %1385 = vsyncpa [#allocation5], 1
    %1386 = vsyncpa [#allocation8], 1
    %1387 = vsyncpa [#allocation6], 1
    %1388 = vsyncpa [#allocation11], 1

// kernel: tpu_custom_call.1
$region0: #{tpu_custom_call.1}
  #allocation0 [shape = 'u32[]', space=smem, size = 0x4, offset = 0x4, fixed_abs, tag = 'smem constant byte address 0x4 - core index']
  #allocation1 [shape = 'u32[144,128]{1,0:T(1,128)}', space=vmem, size = 0x12000, scoped, tag = 'internal scratch']
  #allocation2 [shape = 's32[1]{0}', space=sflag, size = 0x4, scoped, tag = 'scoped memory for tpu_custom_call.1']
  #allocation3 [shape = 's32[1]{0:T(128)S(6)}', space=smem, size = 0x200, scoped, tag = 'prefetched SMEM operand 0']
  %s0 = inlined_call_operand.<no memory space> [shape: s32[1], index: 0, kind: input, shape index: {}]
  %s1 = inlined_call_operand.hbm [shape: bf16[8,8,512], index: 1, kind: input, shape index: {}]
  %s2 = inlined_call_operand.hbm [shape: bf16[128,512], index: 2, kind: input, shape index: {}]
  %s3 = inlined_call_operand.vmem [shape: s32[8,1], index: 3, kind: input, shape index: {}]
  %s4 = inlined_call_operand.hbm [shape: f32[8,8,128], index: 4, kind: output, shape index: {0}]
  %s5 = inlined_call_operand.hbm [shape: f32[8,128], index: 5, kind: output, shape index: {1}]
  %s6 = inlined_call_operand.hbm [shape: f32[8,128], index: 6, kind: output, shape index: {2}]
  %7 = xla_tuple %s4, %s5, %s6
  %s8 = sld [smem:[#allocation0]]
  $region58: #{tpu_custom_call.1} parent=0
    _
  %s10 = ssub.s32 1, %s8
  %s11 = scalar_select 0, %s10, %s8
  %12 = sst [smem:[#allocation3]] %s0
  $region1: #{tpu_custom_call.1} parent=0
    #allocation4 [shape = 'u8[65536]{0}', space=vmem, size = 0x10000, scoped, tag = 'input window, operand 1, single buffered']
    #allocation5 [shape = 's32[1]{0}', space=sflag, size = 0x4, scoped, tag = 'scoped memory for tpu_custom_call.1']
    #allocation6 [shape = 's32[1]{0}', space=sflag, size = 0x4, scoped, tag = 'scoped memory for tpu_custom_call.1']
    #allocation7 [shape = 'u8[131072]{0}', space=vmem, size = 0x20000, scoped, tag = 'input window, operand 2, single buffered']
    #allocation8 [shape = 's32[1]{0}', space=sflag, size = 0x4, scoped, tag = 'scoped memory for tpu_custom_call.1']
    #allocation9 [shape = 'u8[32768]{0}', space=vmem, size = 0x8000, scoped, tag = 'output window, operand 0, single buffered']
    #allocation10 [shape = 'u8[4096]{0}', space=vmem, size = 0x1000, scoped, tag = 'output window, operand 1, single buffered']
    #allocation11 [shape = 's32[1]{0}', space=sflag, size = 0x4, scoped, tag = 'scoped memory for tpu_custom_call.1']
    #allocation12 [shape = 'u8[4096]{0}', space=vmem, size = 0x1000, scoped, tag = 'output window, operand 2, single buffered']
    %13 = vsyncpa [#allocation5], 0
    %14 = vsyncpa [#allocation8], 0
    %15 = vsyncpa [#allocation6], 0
    %16 = vsyncpa [#allocation11], 0
    // Predicated region
    $region2: #{tpu_custom_call.1} parent=1 // pred_check
      _
    $region3: #{tpu_custom_call.1} parent=1 // pred_check_branch
      %18 = sbr.rel (0) target = $region5
    $region4: #{tpu_custom_call.1} parent=1 // pred_region
      %s20 = ssub.s32 2048, 2048
      %21 = vsyncadd [#allocation5], %s20
      %s22 = sshll.u32 [#allocation4], 4
      %s23 = int_to_ptr.vmem [resolvable:$true] %s22
      %28 = dma.hbm_to_vmem [thread:$0]  %s1, 2048, %s23, [#allocation5], 256, 256, 16
    $region5: #{tpu_custom_call.1} parent=1 // pred_fallthru
      _
    // Predicated region
    $region6: #{tpu_custom_call.1} parent=1 // pred_check
      _
    $region7: #{tpu_custom_call.1} parent=1 // pred_check_branch
      %30 = sbr.rel (0) target = $region9
    $region8: #{tpu_custom_call.1} parent=1 // pred_region
      %s32 = ssub.s32 4096, 4096
      %33 = vsyncadd [#allocation8], %s32
      %s34 = sshll.u32 [#allocation7], 4
      %s35 = int_to_ptr.vmem [resolvable:$true] %s34
      %40 = dma.hbm_to_vmem [thread:$0]  %s2, 4096, %s35, [#allocation8], 256, 256, 16
    $region9: #{tpu_custom_call.1} parent=1 // pred_fallthru
      _
    // Predicated region
    $region10: #{tpu_custom_call.1} parent=1 // pred_check
      _
    $region11: #{tpu_custom_call.1} parent=1 // pred_check_branch
      %42 = sbr.rel (0) target = $region13
    $region12: #{tpu_custom_call.1} parent=1 // pred_region
      _
    $region13: #{tpu_custom_call.1} parent=1 // pred_fallthru
      _
    // Predicated region
    $region14: #{tpu_custom_call.1} parent=1 // pred_check
      _
    $region15: #{tpu_custom_call.1} parent=1 // pred_check_branch
      %44 = sbr.rel (0) target = $region17
    $region16: #{tpu_custom_call.1} parent=1 // pred_region
      %45 = dma.done [#allocation5], 2048
    $region17: #{tpu_custom_call.1} parent=1 // pred_fallthru
      _
    // Predicated region
    $region18: #{tpu_custom_call.1} parent=1 // pred_check
      _
    $region19: #{tpu_custom_call.1} parent=1 // pred_check_branch
      %47 = sbr.rel (0) target = $region21
    $region20: #{tpu_custom_call.1} parent=1 // pred_region
      %48 = dma.done [#allocation8], 4096
    $region21: #{tpu_custom_call.1} parent=1 // pred_fallthru
      _
    %s50 = smul.u32 0, 8
    %p51 = scmp.eq.s32.totalorder 0, 0
    // Predicated region
    $region22: #{tpu_custom_call.1} parent=1 // pred_check
      %p52 = pneg %p51
    $region23: #{tpu_custom_call.1} parent=1 // pred_check_branch
      %54 = sbr.rel (%p52) target = $region25
    $region24: #{tpu_custom_call.1} parent=1 // pred_region
      %55 = vst [vmem:[#allocation10] sm:$0xff] 0.0
      %56 = vst [vmem:[#allocation12] sm:$0xff] 0.0
    $region25: #{tpu_custom_call.1} parent=1 // pred_fallthru
      _
    %s57 = sld [smem:[#allocation3]]
    %p58 = scmp.ge.s32.totalorder %s50, %s57
    // Predicated region
    $region26: #{tpu_custom_call.1} parent=1 // pred_check
      %p59 = pneg %p58
    $region27: #{tpu_custom_call.1} parent=1 // pred_check_branch
      %61 = sbr.rel (%p59) target = $region29
    $region28: #{tpu_custom_call.1} parent=1 // pred_region
      %62 = vst [vmem:[#allocation9] sm:$0xff] 0.0
      %63 = vst [vmem:[#allocation9 + $0x8] sm:$0xff] 0.0
      %64 = vst [vmem:[#allocation9 + $0x10] sm:$0xff] 0.0
      %65 = vst [vmem:[#allocation9 + $0x18] sm:$0xff] 0.0
      %66 = vst [vmem:[#allocation9 + $0x20] sm:$0xff] 0.0
      %67 = vst [vmem:[#allocation9 + $0x28] sm:$0xff] 0.0
      %68 = vst [vmem:[#allocation9 + $0x30] sm:$0xff] 0.0
      %69 = vst [vmem:[#allocation9 + $0x38] sm:$0xff] 0.0
    $region29: #{tpu_custom_call.1} parent=1 // pred_fallthru
      _
    %p70 = scmp.lt.s32.totalorder %s50, %s57
    // Predicated region
    $region30: #{tpu_custom_call.1} parent=1 // pred_check
      %p71 = pneg %p70
    $region31: #{tpu_custom_call.1} parent=1 // pred_check_branch
      %73 = sbr.rel (%p71) target = $region33
    $region32: #{tpu_custom_call.1} parent=1 // pred_region
      %v74 = vld [vmem:[%s3] sm:$0xff]
      %v75 = vld [vmem:[#allocation7] sm:$0xff]
      %v76 = vld [vmem:[#allocation7 + $0x8] sm:$0xff]
      %v77 = vld [vmem:[#allocation7 + $0x10] sm:$0xff]
      %v78 = vld [vmem:[#allocation7 + $0x18] sm:$0xff]
      %v79 = vld [vmem:[#allocation7 + $0x20] sm:$0xff]
      %v80 = vld [vmem:[#allocation7 + $0x28] sm:$0xff]
      %v81 = vld [vmem:[#allocation7 + $0x30] sm:$0xff]
      %v82 = vld [vmem:[#allocation7 + $0x38] sm:$0xff]
      %v83 = vld [vmem:[#allocation7 + $0x40] sm:$0xff]
      %v84 = vld [vmem:[#allocation7 + $0x48] sm:$0xff]
      %v85 = vld [vmem:[#allocation7 + $0x50] sm:$0xff]
      %v86 = vld [vmem:[#allocation7 + $0x58] sm:$0xff]
      %v87 = vld [vmem:[#allocation7 + $0x60] sm:$0xff]
      %v88 = vld [vmem:[#allocation7 + $0x68] sm:$0xff]
      %v89 = vld [vmem:[#allocation7 + $0x70] sm:$0xff]
      %v90 = vld [vmem:[#allocation7 + $0x78] sm:$0xff]
      %v91 = vld [vmem:[#allocation7 + $0x80] sm:$0xff]
      %v92 = vld [vmem:[#allocation7 + $0x88] sm:$0xff]
      %v93 = vld [vmem:[#allocation7 + $0x90] sm:$0xff]
      %v94 = vld [vmem:[#allocation7 + $0x98] sm:$0xff]
      %v95 = vld [vmem:[#allocation7 + $0xa0] sm:$0xff]
      %v96 = vld [vmem:[#allocation7 + $0xa8] sm:$0xff]
      %v97 = vld [vmem:[#allocation7 + $0xb0] sm:$0xff]
      %v98 = vld [vmem:[#allocation7 + $0xb8] sm:$0xff]
      %v99 = vld [vmem:[#allocation7 + $0xc0] sm:$0xff]
      %v100 = vld [vmem:[#allocation7 + $0xc8] sm:$0xff]
      %v101 = vld [vmem:[#allocation7 + $0xd0] sm:$0xff]
      %v102 = vld [vmem:[#allocation7 + $0xd8] sm:$0xff]
      %v103 = vld [vmem:[#allocation7 + $0xe0] sm:$0xff]
      %v104 = vld [vmem:[#allocation7 + $0xe8] sm:$0xff]
      %v105 = vld [vmem:[#allocation7 + $0xf0] sm:$0xff]
      %v106 = vld [vmem:[#allocation7 + $0xf8] sm:$0xff]
      %v107 = vld [vmem:[#allocation10] sm:$0xff]
      %v108 = vld [vmem:[#allocation12] sm:$0xff]
      %v109 = vld [vmem:[#allocation4] sm:$0xff]
      %v110 = vld [vmem:[#allocation4 + $0x8] sm:$0xff]
      %v111 = vunpack.c.l.bf16 %v109
      %v112 = vunpack.c.h.bf16 %v109
      %v113 = vunpack.c.l.bf16 %v110
      %v114 = vunpack.c.h.bf16 %v110
      %v115 = vpack.c.bf16 %v107, %v107
      %v148 = vunpack.c.l.b16 %v75
      %v149 = vunpack.c.h.b16 %v75
      %v150 = vunpack.c.l.b16 %v76
      %v151 = vunpack.c.h.b16 %v76
      %v152 = vunpack.c.l.b16 %v77
      %v153 = vunpack.c.h.b16 %v77
      %v154 = vunpack.c.l.b16 %v78
      %v155 = vunpack.c.h.b16 %v78
      %v156 = vunpack.c.l.b16 %v79
      %v157 = vunpack.c.h.b16 %v79
      %v158 = vunpack.c.l.b16 %v80
      %v159 = vunpack.c.h.b16 %v80
      %v160 = vunpack.c.l.b16 %v81
      %v161 = vunpack.c.h.b16 %v81
      %v162 = vunpack.c.l.b16 %v82
      %v163 = vunpack.c.h.b16 %v82
      %v164 = vunpack.c.l.b16 %v83
      %v165 = vunpack.c.h.b16 %v83
      %v166 = vunpack.c.l.b16 %v84
      %v167 = vunpack.c.h.b16 %v84
      %v168 = vunpack.c.l.b16 %v85
      %v169 = vunpack.c.h.b16 %v85
      %v170 = vunpack.c.l.b16 %v86
      %v171 = vunpack.c.h.b16 %v86
      %v172 = vunpack.c.l.b16 %v87
      %v173 = vunpack.c.h.b16 %v87
      %v174 = vunpack.c.l.b16 %v88
      %v175 = vunpack.c.h.b16 %v88
      %v176 = vunpack.c.l.b16 %v89
      %v177 = vunpack.c.h.b16 %v89
      %v178 = vunpack.c.l.b16 %v90
      %v179 = vunpack.c.h.b16 %v90
      %v180 = vunpack.c.l.b16 %v91
      %v181 = vunpack.c.h.b16 %v91
      %v182 = vunpack.c.l.b16 %v92
      %v183 = vunpack.c.h.b16 %v92
      %v184 = vunpack.c.l.b16 %v93
      %v185 = vunpack.c.h.b16 %v93
      %v186 = vunpack.c.l.b16 %v94
      %v187 = vunpack.c.h.b16 %v94
      %v188 = vunpack.c.l.b16 %v95
      %v189 = vunpack.c.h.b16 %v95
      %v190 = vunpack.c.l.b16 %v96
      %v191 = vunpack.c.h.b16 %v96
      %v192 = vunpack.c.l.b16 %v97
      %v193 = vunpack.c.h.b16 %v97
      %v194 = vunpack.c.l.b16 %v98
      %v195 = vunpack.c.h.b16 %v98
      %v196 = vunpack.c.l.b16 %v99
      %v197 = vunpack.c.h.b16 %v99
      %v198 = vunpack.c.l.b16 %v100
      %v199 = vunpack.c.h.b16 %v100
      %v200 = vunpack.c.l.b16 %v101
      %v201 = vunpack.c.h.b16 %v101
      %v202 = vunpack.c.l.b16 %v102
      %v203 = vunpack.c.h.b16 %v102
      %v204 = vunpack.c.l.b16 %v103
      %v205 = vunpack.c.h.b16 %v103
      %v206 = vunpack.c.l.b16 %v104
      %v207 = vunpack.c.h.b16 %v104
      %v208 = vunpack.c.l.b16 %v105
      %v209 = vunpack.c.h.b16 %v105
      %v210 = vunpack.c.l.b16 %v106
      %v211 = vunpack.c.h.b16 %v106
      %v212 = vpack.c.b16 %v152, %v148
      %v213 = vpack.c.b16 %v153, %v149
      %v214 = vpack.c.b16 %v154, %v150
      %v215 = vpack.c.b16 %v155, %v151
      %v216 = vpack.c.b16 %v160, %v156
      %v217 = vpack.c.b16 %v161, %v157
      %v218 = vpack.c.b16 %v162, %v158
      %v219 = vpack.c.b16 %v163, %v159
      %v220 = vpack.c.b16 %v168, %v164
      %v221 = vpack.c.b16 %v169, %v165
      %v222 = vpack.c.b16 %v170, %v166
      %v223 = vpack.c.b16 %v171, %v167
      %v224 = vpack.c.b16 %v176, %v172
      %v225 = vpack.c.b16 %v177, %v173
      %v226 = vpack.c.b16 %v178, %v174
      %v227 = vpack.c.b16 %v179, %v175
      %v228 = vpack.c.b16 %v184, %v180
      %v229 = vpack.c.b16 %v185, %v181
      %v230 = vpack.c.b16 %v186, %v182
      %v231 = vpack.c.b16 %v187, %v183
      %v232 = vpack.c.b16 %v192, %v188
      %v233 = vpack.c.b16 %v193, %v189
      %v234 = vpack.c.b16 %v194, %v190
      %v235 = vpack.c.b16 %v195, %v191
      %v236 = vpack.c.b16 %v200, %v196
      %v237 = vpack.c.b16 %v201, %v197
      %v238 = vpack.c.b16 %v202, %v198
      %v239 = vpack.c.b16 %v203, %v199
      %v240 = vpack.c.b16 %v208, %v204
      %v241 = vpack.c.b16 %v209, %v205
      %v242 = vpack.c.b16 %v210, %v206
      %v243 = vpack.c.b16 %v211, %v207
      %276 = vmatprep.subr.bf16.mxu0 %v213
      %277 = vmatpush1.bf16.msra.mxu0 %v212
      %278 = vmatprep.subr.bf16.mxu0 %v217
      %279 = vmatpush1.bf16.msra.mxu0 %v216
      %280 = vmatprep.subr.bf16.mxu0 %v221
      %281 = vmatpush1.bf16.msra.mxu0 %v220
      %282 = vmatprep.subr.bf16.mxu0 %v225
      %283 = vmatpush1.bf16.msra.mxu0 %v224
      %284 = vmatprep.subr.bf16.mxu0 %v229
      %285 = vmatpush1.bf16.msra.mxu0 %v228
      %286 = vmatprep.subr.bf16.mxu0 %v233
      %287 = vmatpush1.bf16.msra.mxu0 %v232
      %288 = vmatprep.subr.bf16.mxu0 %v237
      %289 = vmatpush1.bf16.msra.mxu0 %v236
      %290 = vmatprep.subr.bf16.mxu0 %v241
      %291 = vmatpush1.bf16.msra.mxu0 %v240
      %292 = vmatprep.subr.bf16.mxu0 0
      %293 = vmatpush1.bf16.msra.mxu0 0
      %294 = vmatprep.subr.bf16.mxu0 0
      %295 = vmatpush1.bf16.msra.mxu0 0
      %296 = vmatprep.subr.bf16.mxu0 0
      %297 = vmatpush1.bf16.msra.mxu0 0
      %298 = vmatprep.subr.bf16.mxu0 0
      %299 = vmatpush1.bf16.msra.mxu0 0
      %300 = vmatprep.subr.bf16.mxu0 0
      %301 = vmatpush1.bf16.msra.mxu0 0
      %302 = vmatprep.subr.bf16.mxu0 0
      %303 = vmatpush1.bf16.msra.mxu0 0
      %304 = vmatprep.subr.bf16.mxu0 0
      %305 = vmatpush1.bf16.msra.mxu0 0
      %306 = vmatprep.subr.bf16.mxu0 0
      %307 = vmatpush1.bf16.msra.mxu0 0
      %308 = vmatprep.mubr.bf16.mxu0 0
      %309 = vmatmul.mubr.bf16.gmra.mrb[0].mxu0 %v115
      %v310 = vpop.f32.mrb[0].mxu0
      %v311 = vadd.f32 0.0, %v310
      %v312 = vpop.f32.mrb[0].mxu0
      %v313 = vadd.f32 0.0, %v312
      %v314 = vpop.f32.mrb[0].mxu0
      %v315 = vpop.f32.mrb[0].mxu0
      %316 = vdwg.mxu0
      %317 = vmatprep.subr.bf16.mxu0 %v215
      %318 = vmatpush1.bf16.msra.mxu0 %v214
      %319 = vmatprep.subr.bf16.mxu0 %v219
      %320 = vmatpush1.bf16.msra.mxu0 %v218
      %321 = vmatprep.subr.bf16.mxu0 %v223
      %322 = vmatpush1.bf16.msra.mxu0 %v222
      %323 = vmatprep.subr.bf16.mxu0 %v227
      %324 = vmatpush1.bf16.msra.mxu0 %v226
      %325 = vmatprep.subr.bf16.mxu0 %v231
      %326 = vmatpush1.bf16.msra.mxu0 %v230
      %327 = vmatprep.subr.bf16.mxu0 %v235
      %328 = vmatpush1.bf16.msra.mxu0 %v234
      %329 = vmatprep.subr.bf16.mxu0 %v239
      %330 = vmatpush1.bf16.msra.mxu0 %v238
      %331 = vmatprep.subr.bf16.mxu0 %v243
      %332 = vmatpush1.bf16.msra.mxu0 %v242
      %333 = vmatprep.subr.bf16.mxu0 0
      %334 = vmatpush1.bf16.msra.mxu0 0
      %335 = vmatprep.subr.bf16.mxu0 0
      %336 = vmatpush1.bf16.msra.mxu0 0
      %337 = vmatprep.subr.bf16.mxu0 0
      %338 = vmatpush1.bf16.msra.mxu0 0
      %339 = vmatprep.subr.bf16.mxu0 0
      %340 = vmatpush1.bf16.msra.mxu0 0
      %341 = vmatprep.subr.bf16.mxu0 0
      %342 = vmatpush1.bf16.msra.mxu0 0
      %343 = vmatprep.subr.bf16.mxu0 0
      %344 = vmatpush1.bf16.msra.mxu0 0
      %345 = vmatprep.subr.bf16.mxu0 0
      %346 = vmatpush1.bf16.msra.mxu0 0
      %347 = vmatprep.subr.bf16.mxu0 0
      %348 = vmatpush1.bf16.msra.mxu0 0
      %349 = vmatprep.mubr.bf16.mxu0 0
      %350 = vmatmul.mubr.bf16.gmra.mrb[0].mxu0 %v115
      %v351 = vpop.f32.mrb[0].mxu0
      %v352 = vadd.f32 0.0, %v351
      %v353 = vpop.f32.mrb[0].mxu0
      %v354 = vadd.f32 0.0, %v353
      %v355 = vpop.f32.mrb[0].mxu0
      %v356 = vpop.f32.mrb[0].mxu0
      %357 = vdwg.mxu0
      %v358 = vadd.f32 %v111, %v311
      %v359 = vadd.f32 %v112, %v313
      %v360 = vadd.f32 %v113, %v352
      %v361 = vadd.f32 %v114, %v354
      %v362 = vxor.u32 %v358, 2147483648
      %v363 = vmul.f32 %v362, 1.442695
      %v364 = vpow.pop %v363
      %v365 = vadd.f32 %v364, 1.0
      %v366 = vrcp.pop %v365
      %v367 = vmul.f32 1.0, %v366
      %v368 = vxor.u32 %v359, 2147483648
      %v369 = vmul.f32 %v368, 1.442695
      %v370 = vpow.pop %v369
      %v371 = vadd.f32 %v370, 1.0
      %v372 = vrcp.pop %v371
      %v373 = vmul.f32 1.0, %v372
      %v374 = vtanh.pop %v360
      %v375 = vxor.u32 %v361, 2147483648
      %v376 = vmul.f32 %v375, 1.442695
      %v377 = vpow.pop %v376
      %v378 = vadd.f32 %v377, 1.0
      %v379 = vrcp.pop %v378
      %v380 = vmul.f32 1.0, %v379
      %v381 = vmul.f32 %v373, %v108
      %v382 = vmul.f32 %v367, %v374
      %v383 = vadd.f32 %v381, %v382
      %v384 = vtanh.pop %v383
      %v385 = vmul.f32 %v380, %v384
      %v386 = vstv %s50
      %vm387 = vcmp.lt.s32.totalorder %v386, %v74
      %v388 = vsel %vm387, 1, 0
      %389 = vset.pattern.permute.xlu0 0
      %390 = vperm.xlu0 %389, %v388
      %v391 = vpop.permute.xlu0 %390
      %vm392 = vcmp.eq.s32.totalorder %v391, 1
      %v393 = vsel %vm392, %v385, %v107
      %394 = vst [vmem:[#allocation10] sm:$0xff] %v393
      %v395 = vsel %vm392, %v383, %v108
      %396 = vst [vmem:[#allocation12] sm:$0xff] %v395
      %v397 = vsel %vm392, %v385, 0.0
      %398 = vst [vmem:[#allocation9] sm:$0xff] %v397
      %v399 = vld [vmem:[#allocation10] sm:$0xff]
      %v400 = vld [vmem:[#allocation12] sm:$0xff]
      %s401 = scalar_lea.vmem [#allocation4], 16
      %v402 = vld [vmem:[%s401] sm:$0xff]
      %v403 = vld [vmem:[%s401 + $0x8] sm:$0xff]
      %v404 = vunpack.c.l.bf16 %v402
      %v405 = vunpack.c.h.bf16 %v402
      %v406 = vunpack.c.l.bf16 %v403
      %v407 = vunpack.c.h.bf16 %v403
      %v408 = vpack.c.bf16 %v399, %v399
      %409 = vmatprep.subr.bf16.mxu0 %v213
      %410 = vmatpush1.bf16.msra.mxu0 %v212
      %411 = vmatprep.subr.bf16.mxu0 %v217
      %412 = vmatpush1.bf16.msra.mxu0 %v216
      %413 = vmatprep.subr.bf16.mxu0 %v221
      %414 = vmatpush1.bf16.msra.mxu0 %v220
      %415 = vmatprep.subr.bf16.mxu0 %v225
      %416 = vmatpush1.bf16.msra.mxu0 %v224
      %417 = vmatprep.subr.bf16.mxu0 %v229
      %418 = vmatpush1.bf16.msra.mxu0 %v228
      %419 = vmatprep.subr.bf16.mxu0 %v233
      %420 = vmatpush1.bf16.msra.mxu0 %v232
      %421 = vmatprep.subr.bf16.mxu0 %v237
      %422 = vmatpush1.bf16.msra.mxu0 %v236
      %423 = vmatprep.subr.bf16.mxu0 %v241
      %424 = vmatpush1.bf16.msra.mxu0 %v240
      %425 = vmatprep.subr.bf16.mxu0 0
      %426 = vmatpush1.bf16.msra.mxu0 0
      %427 = vmatprep.subr.bf16.mxu0 0
      %428 = vmatpush1.bf16.msra.mxu0 0
      %429 = vmatprep.subr.bf16.mxu0 0
      %430 = vmatpush1.bf16.msra.mxu0 0
      %431 = vmatprep.subr.bf16.mxu0 0
      %432 = vmatpush1.bf16.msra.mxu0 0
      %433 = vmatprep.subr.bf16.mxu0 0
      %434 = vmatpush1.bf16.msra.mxu0 0
      %435 = vmatprep.subr.bf16.mxu0 0
      %436 = vmatpush1.bf16.msra.mxu0 0
      %437 = vmatprep.subr.bf16.mxu0 0
      %438 = vmatpush1.bf16.msra.mxu0 0
      %439 = vmatprep.subr.bf16.mxu0 0
      %440 = vmatpush1.bf16.msra.mxu0 0
      %441 = vmatprep.mubr.bf16.mxu0 0
      %442 = vmatmul.mubr.bf16.gmra.mrb[0].mxu0 %v408
      %v443 = vpop.f32.mrb[0].mxu0
      %v444 = vadd.f32 0.0, %v443
      %v445 = vpop.f32.mrb[0].mxu0
      %v446 = vadd.f32 0.0, %v445
      %v447 = vpop.f32.mrb[0].mxu0
      %v448 = vpop.f32.mrb[0].mxu0
      %449 = vdwg.mxu0
      %450 = vmatprep.subr.bf16.mxu0 %v215
      %451 = vmatpush1.bf16.msra.mxu0 %v214
      %452 = vmatprep.subr.bf16.mxu0 %v219
      %453 = vmatpush1.bf16.msra.mxu0 %v218
      %454 = vmatprep.subr.bf16.mxu0 %v223
      %455 = vmatpush1.bf16.msra.mxu0 %v222
      %456 = vmatprep.subr.bf16.mxu0 %v227
      %457 = vmatpush1.bf16.msra.mxu0 %v226
      %458 = vmatprep.subr.bf16.mxu0 %v231
      %459 = vmatpush1.bf16.msra.mxu0 %v230
      %460 = vmatprep.subr.bf16.mxu0 %v235
      %461 = vmatpush1.bf16.msra.mxu0 %v234
      %462 = vmatprep.subr.bf16.mxu0 %v239
      %463 = vmatpush1.bf16.msra.mxu0 %v238
      %464 = vmatprep.subr.bf16.mxu0 %v243
      %465 = vmatpush1.bf16.msra.mxu0 %v242
      %466 = vmatprep.subr.bf16.mxu0 0
      %467 = vmatpush1.bf16.msra.mxu0 0
      %468 = vmatprep.subr.bf16.mxu0 0
      %469 = vmatpush1.bf16.msra.mxu0 0
      %470 = vmatprep.subr.bf16.mxu0 0
      %471 = vmatpush1.bf16.msra.mxu0 0
      %472 = vmatprep.subr.bf16.mxu0 0
      %473 = vmatpush1.bf16.msra.mxu0 0
      %474 = vmatprep.subr.bf16.mxu0 0
      %475 = vmatpush1.bf16.msra.mxu0 0
      %476 = vmatprep.subr.bf16.mxu0 0
      %477 = vmatpush1.bf16.msra.mxu0 0
      %478 = vmatprep.subr.bf16.mxu0 0
      %479 = vmatpush1.bf16.msra.mxu0 0
      %480 = vmatprep.subr.bf16.mxu0 0
      %481 = vmatpush1.bf16.msra.mxu0 0
      %482 = vmatprep.mubr.bf16.mxu0 0
      %483 = vmatmul.mubr.bf16.gmra.mrb[0].mxu0 %v408
      %v484 = vpop.f32.mrb[0].mxu0
      %v485 = vadd.f32 0.0, %v484
      %v486 = vpop.f32.mrb[0].mxu0
      %v487 = vadd.f32 0.0, %v486
      %v488 = vpop.f32.mrb[0].mxu0
      %v489 = vpop.f32.mrb[0].mxu0
      %490 = vdwg.mxu0
      %v491 = vadd.f32 %v404, %v444
      %v492 = vadd.f32 %v405, %v446
      %v493 = vadd.f32 %v406, %v485
      %v494 = vadd.f32 %v407, %v487
      %v495 = vxor.u32 %v491, 2147483648
      %v496 = vmul.f32 %v495, 1.442695
      %v497 = vpow.pop %v496
      %v498 = vadd.f32 %v497, 1.0
      %v499 = vrcp.pop %v498
      %v500 = vmul.f32 1.0, %v499
      %v501 = vxor.u32 %v492, 2147483648
      %v502 = vmul.f32 %v501, 1.442695
      %v503 = vpow.pop %v502
      %v504 = vadd.f32 %v503, 1.0
      %v505 = vrcp.pop %v504
      %v506 = vmul.f32 1.0, %v505
      %v507 = vtanh.pop %v493
      %v508 = vxor.u32 %v494, 2147483648
      %v509 = vmul.f32 %v508, 1.442695
      %v510 = vpow.pop %v509
      %v511 = vadd.f32 %v510, 1.0
      %v512 = vrcp.pop %v511
      %v513 = vmul.f32 1.0, %v512
      %v514 = vmul.f32 %v506, %v400
      %v515 = vmul.f32 %v500, %v507
      %v516 = vadd.f32 %v514, %v515
      %v517 = vtanh.pop %v516
      %v518 = vmul.f32 %v513, %v517
      %s519 = sadd.s32 %s50, 1
      %v520 = vstv %s519
      %vm521 = vcmp.lt.s32.totalorder %v520, %v74
      %v522 = vsel %vm521, 1, 0
      %523 = vset.pattern.permute.xlu0 0
      %524 = vperm.xlu0 %523, %v522
      %v525 = vpop.permute.xlu0 %524
      %vm526 = vcmp.eq.s32.totalorder %v525, 1
      %v527 = vsel %vm526, %v518, %v399
      %528 = vst [vmem:[#allocation10] sm:$0xff] %v527
      %v529 = vsel %vm526, %v516, %v400
      %530 = vst [vmem:[#allocation12] sm:$0xff] %v529
      %v531 = vsel %vm526, %v518, 0.0
      %s532 = scalar_lea.vmem [#allocation9], 8
      %533 = vst [vmem:[%s532] sm:$0xff] %v531
      %v534 = vld [vmem:[#allocation10] sm:$0xff]
      %v535 = vld [vmem:[#allocation12] sm:$0xff]
      %s536 = scalar_lea.vmem [#allocation4], 32
      %v537 = vld [vmem:[%s536] sm:$0xff]
      %v538 = vld [vmem:[%s536 + $0x8] sm:$0xff]
      %v539 = vunpack.c.l.bf16 %v537
      %v540 = vunpack.c.h.bf16 %v537
      %v541 = vunpack.c.l.bf16 %v538
      %v542 = vunpack.c.h.bf16 %v538
      %v543 = vpack.c.bf16 %v534, %v534
      %544 = vmatprep.subr.bf16.mxu0 %v213
      %545 = vmatpush1.bf16.msra.mxu0 %v212
      %546 = vmatprep.subr.bf16.mxu0 %v217
      %547 = vmatpush1.bf16.msra.mxu0 %v216
      %548 = vmatprep.subr.bf16.mxu0 %v221
      %549 = vmatpush1.bf16.msra.mxu0 %v220
      %550 = vmatprep.subr.bf16.mxu0 %v225
      %551 = vmatpush1.bf16.msra.mxu0 %v224
      %552 = vmatprep.subr.bf16.mxu0 %v229
      %553 = vmatpush1.bf16.msra.mxu0 %v228
      %554 = vmatprep.subr.bf16.mxu0 %v233
      %555 = vmatpush1.bf16.msra.mxu0 %v232
      %556 = vmatprep.subr.bf16.mxu0 %v237
      %557 = vmatpush1.bf16.msra.mxu0 %v236
      %558 = vmatprep.subr.bf16.mxu0 %v241
      %559 = vmatpush1.bf16.msra.mxu0 %v240
      %560 = vmatprep.subr.bf16.mxu0 0
      %561 = vmatpush1.bf16.msra.mxu0 0
      %562 = vmatprep.subr.bf16.mxu0 0
      %563 = vmatpush1.bf16.msra.mxu0 0
      %564 = vmatprep.subr.bf16.mxu0 0
      %565 = vmatpush1.bf16.msra.mxu0 0
      %566 = vmatprep.subr.bf16.mxu0 0
      %567 = vmatpush1.bf16.msra.mxu0 0
      %568 = vmatprep.subr.bf16.mxu0 0
      %569 = vmatpush1.bf16.msra.mxu0 0
      %570 = vmatprep.subr.bf16.mxu0 0
      %571 = vmatpush1.bf16.msra.mxu0 0
      %572 = vmatprep.subr.bf16.mxu0 0
      %573 = vmatpush1.bf16.msra.mxu0 0
      %574 = vmatprep.subr.bf16.mxu0 0
      %575 = vmatpush1.bf16.msra.mxu0 0
      %576 = vmatprep.mubr.bf16.mxu0 0
      %577 = vmatmul.mubr.bf16.gmra.mrb[0].mxu0 %v543
      %v578 = vpop.f32.mrb[0].mxu0
      %v579 = vadd.f32 0.0, %v578
      %v580 = vpop.f32.mrb[0].mxu0
      %v581 = vadd.f32 0.0, %v580
      %v582 = vpop.f32.mrb[0].mxu0
      %v583 = vpop.f32.mrb[0].mxu0
      %584 = vdwg.mxu0
      %585 = vmatprep.subr.bf16.mxu0 %v215
      %586 = vmatpush1.bf16.msra.mxu0 %v214
      %587 = vmatprep.subr.bf16.mxu0 %v219
      %588 = vmatpush1.bf16.msra.mxu0 %v218
      %589 = vmatprep.subr.bf16.mxu0 %v223
      %590 = vmatpush1.bf16.msra.mxu0 %v222
      %591 = vmatprep.subr.bf16.mxu0 %v227
      %592 = vmatpush1.bf16.msra.mxu0 %v226
      %593 = vmatprep.subr.bf16.mxu0 %v231
      %594 = vmatpush1.bf16.msra.mxu0 %v230
      %595 = vmatprep.subr.bf16.mxu0 %v235
      %596 = vmatpush1.bf16.msra.mxu0 %v234
      %597 = vmatprep.subr.bf16.mxu0 %v239
      %598 = vmatpush1.bf16.msra.mxu0 %v238
      %599 = vmatprep.subr.bf16.mxu0 %v243
      %600 = vmatpush1.bf16.msra.mxu0 %v242
      %601 = vmatprep.subr.bf16.mxu0 0
      %602 = vmatpush1.bf16.msra.mxu0 0
      %603 = vmatprep.subr.bf16.mxu0 0
      %604 = vmatpush1.bf16.msra.mxu0 0
      %605 = vmatprep.subr.bf16.mxu0 0
      %606 = vmatpush1.bf16.msra.mxu0 0
      %607 = vmatprep.subr.bf16.mxu0 0
      %608 = vmatpush1.bf16.msra.mxu0 0
      %609 = vmatprep.subr.bf16.mxu0 0
      %610 = vmatpush1.bf16.msra.mxu0 0
      %611 = vmatprep.subr.bf16.mxu0 0
      %612 = vmatpush1.bf16.msra.mxu0 0
      %613 = vmatprep.subr.bf16.mxu0 0
      %614 = vmatpush1.bf16.msra.mxu0 0
      %615 = vmatprep.subr.bf16.mxu0 0
      %616 = vmatpush1.bf16.msra.mxu0 0
      %617 = vmatprep.mubr.bf16.mxu0 0
      %618 = vmatmul.mubr.bf16.gmra.mrb[0].mxu0 %v543
      %v619 = vpop.f32.mrb[0].mxu0
      %v620 = vadd.f32 0.0, %v619
      %v621 = vpop.f32.mrb[0].mxu0
      %v622 = vadd.f32 0.0, %v621
      %v623 = vpop.f32.mrb[0].mxu0
      %v624 = vpop.f32.mrb[0].mxu0
      %625 = vdwg.mxu0
      %v626 = vadd.f32 %v539, %v579
      %v627 = vadd.f32 %v540, %v581
      %v628 = vadd.f32 %v541, %v620
      %v629 = vadd.f32 %v542, %v622
      %v630 = vxor.u32 %v626, 2147483648
      %v631 = vmul.f32 %v630, 1.442695
      %v632 = vpow.pop %v631
      %v633 = vadd.f32 %v632, 1.0
      %v634 = vrcp.pop %v633
      %v635 = vmul.f32 1.0, %v634
      %v636 = vxor.u32 %v627, 2147483648
      %v637 = vmul.f32 %v636, 1.442695
      %v638 = vpow.pop %v637
      %v639 = vadd.f32 %v638, 1.0
      %v640 = vrcp.pop %v639
      %v641 = vmul.f32 1.0, %v640
      %v642 = vtanh.pop %v628
      %v643 = vxor.u32 %v629, 2147483648
      %v644 = vmul.f32 %v643, 1.442695
      %v645 = vpow.pop %v644
      %v646 = vadd.f32 %v645, 1.0
      %v647 = vrcp.pop %v646
      %v648 = vmul.f32 1.0, %v647
      %v649 = vmul.f32 %v641, %v535
      %v650 = vmul.f32 %v635, %v642
      %v651 = vadd.f32 %v649, %v650
      %v652 = vtanh.pop %v651
      %v653 = vmul.f32 %v648, %v652
      %s654 = sadd.s32 %s50, 2
      %v655 = vstv %s654
      %vm656 = vcmp.lt.s32.totalorder %v655, %v74
      %v657 = vsel %vm656, 1, 0
      %658 = vset.pattern.permute.xlu0 0
      %659 = vperm.xlu0 %658, %v657
      %v660 = vpop.permute.xlu0 %659
      %vm661 = vcmp.eq.s32.totalorder %v660, 1
      %v662 = vsel %vm661, %v653, %v534
      %663 = vst [vmem:[#allocation10] sm:$0xff] %v662
      %v664 = vsel %vm661, %v651, %v535
      %665 = vst [vmem:[#allocation12] sm:$0xff] %v664
      %v666 = vsel %vm661, %v653, 0.0
      %s667 = scalar_lea.vmem [#allocation9], 16
      %668 = vst [vmem:[%s667] sm:$0xff] %v666
      %v669 = vld [vmem:[#allocation10] sm:$0xff]
      %v670 = vld [vmem:[#allocation12] sm:$0xff]
      %s671 = scalar_lea.vmem [#allocation4], 48
      %v672 = vld [vmem:[%s671] sm:$0xff]
      %v673 = vld [vmem:[%s671 + $0x8] sm:$0xff]
      %v674 = vunpack.c.l.bf16 %v672
      %v675 = vunpack.c.h.bf16 %v672
      %v676 = vunpack.c.l.bf16 %v673
      %v677 = vunpack.c.h.bf16 %v673
      %v678 = vpack.c.bf16 %v669, %v669
      %679 = vmatprep.subr.bf16.mxu0 %v213
      %680 = vmatpush1.bf16.msra.mxu0 %v212
      %681 = vmatprep.subr.bf16.mxu0 %v217
      %682 = vmatpush1.bf16.msra.mxu0 %v216
      %683 = vmatprep.subr.bf16.mxu0 %v221
      %684 = vmatpush1.bf16.msra.mxu0 %v220
      %685 = vmatprep.subr.bf16.mxu0 %v225
      %686 = vmatpush1.bf16.msra.mxu0 %v224
      %687 = vmatprep.subr.bf16.mxu0 %v229
      %688 = vmatpush1.bf16.msra.mxu0 %v228
      %689 = vmatprep.subr.bf16.mxu0 %v233
      %690 = vmatpush1.bf16.msra.mxu0 %v232
      %691 = vmatprep.subr.bf16.mxu0 %v237
      %692 = vmatpush1.bf16.msra.mxu0 %v236
      %693 = vmatprep.subr.bf16.mxu0 %v241
      %694 = vmatpush1.bf16.msra.mxu0 %v240
      %695 = vmatprep.subr.bf16.mxu0 0
      %696 = vmatpush1.bf16.msra.mxu0 0
      %697 = vmatprep.subr.bf16.mxu0 0
      %698 = vmatpush1.bf16.msra.mxu0 0
      %699 = vmatprep.subr.bf16.mxu0 0
      %700 = vmatpush1.bf16.msra.mxu0 0
      %701 = vmatprep.subr.bf16.mxu0 0
      %702 = vmatpush1.bf16.msra.mxu0 0
      %703 = vmatprep.subr.bf16.mxu0 0
      %704 = vmatpush1.bf16.msra.mxu0 0
      %705 = vmatprep.subr.bf16.mxu0 0
      %706 = vmatpush1.bf16.msra.mxu0 0
      %707 = vmatprep.subr.bf16.mxu0 0
      %708 = vmatpush1.bf16.msra.mxu0 0
      %709 = vmatprep.subr.bf16.mxu0 0
      %710 = vmatpush1.bf16.msra.mxu0 0
      %711 = vmatprep.mubr.bf16.mxu0 0
      %712 = vmatmul.mubr.bf16.gmra.mrb[0].mxu0 %v678
      %v713 = vpop.f32.mrb[0].mxu0
      %v714 = vadd.f32 0.0, %v713
      %v715 = vpop.f32.mrb[0].mxu0
      %v716 = vadd.f32 0.0, %v715
      %v717 = vpop.f32.mrb[0].mxu0
      %v718 = vpop.f32.mrb[0].mxu0
      %719 = vdwg.mxu0
      %720 = vmatprep.subr.bf16.mxu0 %v215
      %721 = vmatpush1.bf16.msra.mxu0 %v214
      %722 = vmatprep.subr.bf16.mxu0 %v219
      %723 = vmatpush1.bf16.msra.mxu0 %v218
      %724 = vmatprep.subr.bf16.mxu0 %v223
      %725 = vmatpush1.bf16.msra.mxu0 %v222
      %726 = vmatprep.subr.bf16.mxu0 %v227
      %727 = vmatpush1.bf16.msra.mxu0 %v226
      %728 = vmatprep.subr.bf16.mxu0 %v231
      %729 = vmatpush1.bf16.msra.mxu0 %v230
      %730 = vmatprep.subr.bf16.mxu0 %v235
      %731 = vmatpush1.bf16.msra.mxu0 %v234
      %732 = vmatprep.subr.bf16.mxu0 %v239
      %733 = vmatpush1.bf16.msra.mxu0 %v238
      %734 = vmatprep.subr.bf16.mxu0 %v243
      %735 = vmatpush1.bf16.msra.mxu0 %v242
      %736 = vmatprep.subr.bf16.mxu0 0
      %737 = vmatpush1.bf16.msra.mxu0 0
      %738 = vmatprep.subr.bf16.mxu0 0
      %739 = vmatpush1.bf16.msra.mxu0 0
      %740 = vmatprep.subr.bf16.mxu0 0
      %741 = vmatpush1.bf16.msra.mxu0 0
      %742 = vmatprep.subr.bf16.mxu0 0
      %743 = vmatpush1.bf16.msra.mxu0 0
      %744 = vmatprep.subr.bf16.mxu0 0
      %745 = vmatpush1.bf16.msra.mxu0 0
      %746 = vmatprep.subr.bf16.mxu0 0
      %747 = vmatpush1.bf16.msra.mxu0 0
      %748 = vmatprep.subr.bf16.mxu0 0
      %749 = vmatpush1.bf16.msra.mxu0 0
      %750 = vmatprep.subr.bf16.mxu0 0
      %751 = vmatpush1.bf16.msra.mxu0 0
      %752 = vmatprep.mubr.bf16.mxu0 0
      %753 = vmatmul.mubr.bf16.gmra.mrb[0].mxu0 %v678
      %v754 = vpop.f32.mrb[0].mxu0
      %v755 = vadd.f32 0.0, %v754
      %v756 = vpop.f32.mrb[0].mxu0
      %v757 = vadd.f32 0.0, %v756
      %v758 = vpop.f32.mrb[0].mxu0
      %v759 = vpop.f32.mrb[0].mxu0
      %760 = vdwg.mxu0
      %v761 = vadd.f32 %v674, %v714
      %v762 = vadd.f32 %v675, %v716
      %v763 = vadd.f32 %v676, %v755
      %v764 = vadd.f32 %v677, %v757
      %v765 = vxor.u32 %v761, 2147483648
      %v766 = vmul.f32 %v765, 1.442695
      %v767 = vpow.pop %v766
      %v768 = vadd.f32 %v767, 1.0
      %v769 = vrcp.pop %v768
      %v770 = vmul.f32 1.0, %v769
      %v771 = vxor.u32 %v762, 2147483648
      %v772 = vmul.f32 %v771, 1.442695
      %v773 = vpow.pop %v772
      %v774 = vadd.f32 %v773, 1.0
      %v775 = vrcp.pop %v774
      %v776 = vmul.f32 1.0, %v775
      %v777 = vtanh.pop %v763
      %v778 = vxor.u32 %v764, 2147483648
      %v779 = vmul.f32 %v778, 1.442695
      %v780 = vpow.pop %v779
      %v781 = vadd.f32 %v780, 1.0
      %v782 = vrcp.pop %v781
      %v783 = vmul.f32 1.0, %v782
      %v784 = vmul.f32 %v776, %v670
      %v785 = vmul.f32 %v770, %v777
      %v786 = vadd.f32 %v784, %v785
      %v787 = vtanh.pop %v786
      %v788 = vmul.f32 %v783, %v787
      %s789 = sadd.s32 %s50, 3
      %v790 = vstv %s789
      %vm791 = vcmp.lt.s32.totalorder %v790, %v74
      %v792 = vsel %vm791, 1, 0
      %793 = vset.pattern.permute.xlu0 0
      %794 = vperm.xlu0 %793, %v792
      %v795 = vpop.permute.xlu0 %794
      %vm796 = vcmp.eq.s32.totalorder %v795, 1
      %v797 = vsel %vm796, %v788, %v669
      %798 = vst [vmem:[#allocation10] sm:$0xff] %v797
      %v799 = vsel %vm796, %v786, %v670
      %800 = vst [vmem:[#allocation12] sm:$0xff] %v799
      %v801 = vsel %vm796, %v788, 0.0
      %s802 = scalar_lea.vmem [#allocation9], 24
      %803 = vst [vmem:[%s802] sm:$0xff] %v801
      %v804 = vld [vmem:[#allocation10] sm:$0xff]
      %v805 = vld [vmem:[#allocation12] sm:$0xff]
      %s806 = scalar_lea.vmem [#allocation4], 64
      %v807 = vld [vmem:[%s806] sm:$0xff]
      %v808 = vld [vmem:[%s806 + $0x8] sm:$0xff]
      %v809 = vunpack.c.l.bf16 %v807
      %v810 = vunpack.c.h.bf16 %v807
      %v811 = vunpack.c.l.bf16 %v808
      %v812 = vunpack.c.h.bf16 %v808
      %v813 = vpack.c.bf16 %v804, %v804
      %814 = vmatprep.subr.bf16.mxu0 %v213
      %815 = vmatpush1.bf16.msra.mxu0 %v212
      %816 = vmatprep.subr.bf16.mxu0 %v217
      %817 = vmatpush1.bf16.msra.mxu0 %v216
      %818 = vmatprep.subr.bf16.mxu0 %v221
      %819 = vmatpush1.bf16.msra.mxu0 %v220
      %820 = vmatprep.subr.bf16.mxu0 %v225
      %821 = vmatpush1.bf16.msra.mxu0 %v224
      %822 = vmatprep.subr.bf16.mxu0 %v229
      %823 = vmatpush1.bf16.msra.mxu0 %v228
      %824 = vmatprep.subr.bf16.mxu0 %v233
      %825 = vmatpush1.bf16.msra.mxu0 %v232
      %826 = vmatprep.subr.bf16.mxu0 %v237
      %827 = vmatpush1.bf16.msra.mxu0 %v236
      %828 = vmatprep.subr.bf16.mxu0 %v241
      %829 = vmatpush1.bf16.msra.mxu0 %v240
      %830 = vmatprep.subr.bf16.mxu0 0
      %831 = vmatpush1.bf16.msra.mxu0 0
      %832 = vmatprep.subr.bf16.mxu0 0
      %833 = vmatpush1.bf16.msra.mxu0 0
      %834 = vmatprep.subr.bf16.mxu0 0
      %835 = vmatpush1.bf16.msra.mxu0 0
      %836 = vmatprep.subr.bf16.mxu0 0
      %837 = vmatpush1.bf16.msra.mxu0 0
      %838 = vmatprep.subr.bf16.mxu0 0
      %839 = vmatpush1.bf16.msra.mxu0 0
      %840 = vmatprep.subr.bf16.mxu0 0
      %841 = vmatpush1.bf16.msra.mxu0 0
      %842 = vmatprep.subr.bf16.mxu0 0
      %843 = vmatpush1.bf16.msra.mxu0 0
      %844 = vmatprep.subr.bf16.mxu0 0
      %845 = vmatpush1.bf16.msra.mxu0 0
      %846 = vmatprep.mubr.bf16.mxu0 0
      %847 = vmatmul.mubr.bf16.gmra.mrb[0].mxu0 %v813
      %v848 = vpop.f32.mrb[0].mxu0
      %v849 = vadd.f32 0.0, %v848
      %v850 = vpop.f32.mrb[0].mxu0
      %v851 = vadd.f32 0.0, %v850
      %v852 = vpop.f32.mrb[0].mxu0
      %v853 = vpop.f32.mrb[0].mxu0
      %854 = vdwg.mxu0
      %855 = vmatprep.subr.bf16.mxu0 %v215
      %856 = vmatpush1.bf16.msra.mxu0 %v214
      %857 = vmatprep.subr.bf16.mxu0 %v219
      %858 = vmatpush1.bf16.msra.mxu0 %v218
      %859 = vmatprep.subr.bf16.mxu0 %v223
      %860 = vmatpush1.bf16.msra.mxu0 %v222
      %861 = vmatprep.subr.bf16.mxu0 %v227
      %862 = vmatpush1.bf16.msra.mxu0 %v226
      %863 = vmatprep.subr.bf16.mxu0 %v231
      %864 = vmatpush1.bf16.msra.mxu0 %v230
      %865 = vmatprep.subr.bf16.mxu0 %v235
      %866 = vmatpush1.bf16.msra.mxu0 %v234
      %867 = vmatprep.subr.bf16.mxu0 %v239
      %868 = vmatpush1.bf16.msra.mxu0 %v238
      %869 = vmatprep.subr.bf16.mxu0 %v243
      %870 = vmatpush1.bf16.msra.mxu0 %v242
      %871 = vmatprep.subr.bf16.mxu0 0
      %872 = vmatpush1.bf16.msra.mxu0 0
      %873 = vmatprep.subr.bf16.mxu0 0
      %874 = vmatpush1.bf16.msra.mxu0 0
      %875 = vmatprep.subr.bf16.mxu0 0
      %876 = vmatpush1.bf16.msra.mxu0 0
      %877 = vmatprep.subr.bf16.mxu0 0
      %878 = vmatpush1.bf16.msra.mxu0 0
      %879 = vmatprep.subr.bf16.mxu0 0
      %880 = vmatpush1.bf16.msra.mxu0 0
      %881 = vmatprep.subr.bf16.mxu0 0
      %882 = vmatpush1.bf16.msra.mxu0 0
      %883 = vmatprep.subr.bf16.mxu0 0
      %884 = vmatpush1.bf16.msra.mxu0 0
      %885 = vmatprep.subr.bf16.mxu0 0
      %886 = vmatpush1.bf16.msra.mxu0 0
      %887 = vmatprep.mubr.bf16.mxu0 0
      %888 = vmatmul.mubr.bf16.gmra.mrb[0].mxu0 %v813
      %v889 = vpop.f32.mrb[0].mxu0
      %v890 = vadd.f32 0.0, %v889
      %v891 = vpop.f32.mrb[0].mxu0
      %v892 = vadd.f32 0.0, %v891
      %v893 = vpop.f32.mrb[0].mxu0
      %v894 = vpop.f32.mrb[0].mxu0
      %895 = vdwg.mxu0
      %v896 = vadd.f32 %v809, %v849
      %v897 = vadd.f32 %v810, %v851
      %v898 = vadd.f32 %v811, %v890
      %v899 = vadd.f32 %v812, %v892
      %v900 = vxor.u32 %v896, 2147483648
      %v901 = vmul.f32 %v900, 1.442695
      %v902 = vpow.pop %v901
      %v903 = vadd.f32 %v902, 1.0
      %v904 = vrcp.pop %v903
      %v905 = vmul.f32 1.0, %v904
      %v906 = vxor.u32 %v897, 2147483648
      %v907 = vmul.f32 %v906, 1.442695
      %v908 = vpow.pop %v907
      %v909 = vadd.f32 %v908, 1.0
      %v910 = vrcp.pop %v909
      %v911 = vmul.f32 1.0, %v910
      %v912 = vtanh.pop %v898
      %v913 = vxor.u32 %v899, 2147483648
      %v914 = vmul.f32 %v913, 1.442695
      %v915 = vpow.pop %v914
      %v916 = vadd.f32 %v915, 1.0
      %v917 = vrcp.pop %v916
      %v918 = vmul.f32 1.0, %v917
      %v919 = vmul.f32 %v911, %v805
      %v920 = vmul.f32 %v905, %v912
      %v921 = vadd.f32 %v919, %v920
      %v922 = vtanh.pop %v921
      %v923 = vmul.f32 %v918, %v922
      %s924 = sadd.s32 %s50, 4
      %v925 = vstv %s924
      %vm926 = vcmp.lt.s32.totalorder %v925, %v74
      %v927 = vsel %vm926, 1, 0
      %928 = vset.pattern.permute.xlu0 0
      %929 = vperm.xlu0 %928, %v927
      %v930 = vpop.permute.xlu0 %929
      %vm931 = vcmp.eq.s32.totalorder %v930, 1
      %v932 = vsel %vm931, %v923, %v804
      %933 = vst [vmem:[#allocation10] sm:$0xff] %v932
      %v934 = vsel %vm931, %v921, %v805
      %935 = vst [vmem:[#allocation12] sm:$0xff] %v934
      %v936 = vsel %vm931, %v923, 0.0
      %s937 = scalar_lea.vmem [#allocation9], 32
      %938 = vst [vmem:[%s937] sm:$0xff] %v936
      %v939 = vld [vmem:[#allocation10] sm:$0xff]
      %v940 = vld [vmem:[#allocation12] sm:$0xff]
      %s941 = scalar_lea.vmem [#allocation4], 80
      %v942 = vld [vmem:[%s941] sm:$0xff]
      %v943 = vld [vmem:[%s941 + $0x8] sm:$0xff]
      %v944 = vunpack.c.l.bf16 %v942
      %v945 = vunpack.c.h.bf16 %v942
      %v946 = vunpack.c.l.bf16 %v943
      %v947 = vunpack.c.h.bf16 %v943
      %v948 = vpack.c.bf16 %v939, %v939
      %949 = vmatprep.subr.bf16.mxu0 %v213
      %950 = vmatpush1.bf16.msra.mxu0 %v212
      %951 = vmatprep.subr.bf16.mxu0 %v217
      %952 = vmatpush1.bf16.msra.mxu0 %v216
      %953 = vmatprep.subr.bf16.mxu0 %v221
      %954 = vmatpush1.bf16.msra.mxu0 %v220
      %955 = vmatprep.subr.bf16.mxu0 %v225
      %956 = vmatpush1.bf16.msra.mxu0 %v224
      %957 = vmatprep.subr.bf16.mxu0 %v229
      %958 = vmatpush1.bf16.msra.mxu0 %v228
      %959 = vmatprep.subr.bf16.mxu0 %v233
      %960 = vmatpush1.bf16.msra.mxu0 %v232
      %961 = vmatprep.subr.bf16.mxu0 %v237
      %962 = vmatpush1.bf16.msra.mxu0 %v236
      %963 = vmatprep.subr.bf16.mxu0 %v241
      %964 = vmatpush1.bf16.msra.mxu0 %v240
      %965 = vmatprep.subr.bf16.mxu0 0
      %966 = vmatpush1.bf16.msra.mxu0 0
      %967 = vmatprep.subr.bf16.mxu0 0
      %968 = vmatpush1.bf16.msra.mxu0 0
      %969 = vmatprep.subr.bf16.mxu0 0
      %970 = vmatpush1.bf16.msra.mxu0 0
      %971 = vmatprep.subr.bf16.mxu0 0
      %972 = vmatpush1.bf16.msra.mxu0 0
      %973 = vmatprep.subr.bf16.mxu0 0
      %974 = vmatpush1.bf16.msra.mxu0 0
      %975 = vmatprep.subr.bf16.mxu0 0
      %976 = vmatpush1.bf16.msra.mxu0 0
      %977 = vmatprep.subr.bf16.mxu0 0
      %978 = vmatpush1.bf16.msra.mxu0 0
      %979 = vmatprep.subr.bf16.mxu0 0
      %980 = vmatpush1.bf16.msra.mxu0 0
      %981 = vmatprep.mubr.bf16.mxu0 0
      %982 = vmatmul.mubr.bf16.gmra.mrb[0].mxu0 %v948
      %v983 = vpop.f32.mrb[0].mxu0
      %v984 = vadd.f32 0.0, %v983
      %v985 = vpop.f32.mrb[0].mxu0
      %v986 = vadd.f32 0.0, %v985
      %v987 = vpop.f32.mrb[0].mxu0
      %v988 = vpop.f32.mrb[0].mxu0
      %989 = vdwg.mxu0
      %990 = vmatprep.subr.bf16.mxu0 %v215
      %991 = vmatpush1.bf16.msra.mxu0 %v214
      %992 = vmatprep.subr.bf16.mxu0 %v219
      %993 = vmatpush1.bf16.msra.mxu0 %v218
      %994 = vmatprep.subr.bf16.mxu0 %v223
      %995 = vmatpush1.bf16.msra.mxu0 %v222
      %996 = vmatprep.subr.bf16.mxu0 %v227
      %997 = vmatpush1.bf16.msra.mxu0 %v226
      %998 = vmatprep.subr.bf16.mxu0 %v231
      %999 = vmatpush1.bf16.msra.mxu0 %v230
      %1000 = vmatprep.subr.bf16.mxu0 %v235
      %1001 = vmatpush1.bf16.msra.mxu0 %v234
      %1002 = vmatprep.subr.bf16.mxu0 %v239
      %1003 = vmatpush1.bf16.msra.mxu0 %v238
      %1004 = vmatprep.subr.bf16.mxu0 %v243
      %1005 = vmatpush1.bf16.msra.mxu0 %v242
      %1006 = vmatprep.subr.bf16.mxu0 0
      %1007 = vmatpush1.bf16.msra.mxu0 0
      %1008 = vmatprep.subr.bf16.mxu0 0
      %1009 = vmatpush1.bf16.msra.mxu0 0
      %1010 = vmatprep.subr.bf16.mxu0 0
      %1011 = vmatpush1.bf16.msra.mxu0 0
      %1012 = vmatprep.subr.bf16.mxu0 0
      %1013 = vmatpush1.bf16.msra.mxu0 0
      %1014 = vmatprep.subr.bf16.mxu0 0
      %1015 = vmatpush1.bf16.msra.mxu0 0
      %1016 = vmatprep.subr.bf16.mxu0 0
      %1017 = vmatpush1.bf16.msra.mxu0 0
      %1018 = vmatprep.subr.bf16.mxu0 0
      %1019 = vmatpush1.bf16.msra.mxu0 0
      %1020 = vmatprep.subr.bf16.mxu0 0
      %1021 = vmatpush1.bf16.msra.mxu0 0
      %1022 = vmatprep.mubr.bf16.mxu0 0
      %1023 = vmatmul.mubr.bf16.gmra.mrb[0].mxu0 %v948
      %v1024 = vpop.f32.mrb[0].mxu0
      %v1025 = vadd.f32 0.0, %v1024
      %v1026 = vpop.f32.mrb[0].mxu0
      %v1027 = vadd.f32 0.0, %v1026
      %v1028 = vpop.f32.mrb[0].mxu0
      %v1029 = vpop.f32.mrb[0].mxu0
      %1030 = vdwg.mxu0
      %v1031 = vadd.f32 %v944, %v984
      %v1032 = vadd.f32 %v945, %v986
      %v1033 = vadd.f32 %v946, %v1025
      %v1034 = vadd.f32 %v947, %v1027
      %v1035 = vxor.u32 %v1031, 2147483648
      %v1036 = vmul.f32 %v1035, 1.442695
      %v1037 = vpow.pop %v1036
      %v1038 = vadd.f32 %v1037, 1.0
      %v1039 = vrcp.pop %v1038
      %v1040 = vmul.f32 1.0, %v1039
      %v1041 = vxor.u32 %v1032, 2147483648
      %v1042 = vmul.f32 %v1041, 1.442695
      %v1043 = vpow.pop %v1042
      %v1044 = vadd.f32 %v1043, 1.0
      %v1045 = vrcp.pop %v1044
      %v1046 = vmul.f32 1.0, %v1045
      %v1047 = vtanh.pop %v1033
      %v1048 = vxor.u32 %v1034, 2147483648
      %v1049 = vmul.f32 %v1048, 1.442695
      %v1050 = vpow.pop %v1049
      %v1051 = vadd.f32 %v1050, 1.0
      %v1052 = vrcp.pop %v1051
      %v1053 = vmul.f32 1.0, %v1052
      %v1054 = vmul.f32 %v1046, %v940
      %v1055 = vmul.f32 %v1040, %v1047
      %v1056 = vadd.f32 %v1054, %v1055
      %v1057 = vtanh.pop %v1056
      %v1058 = vmul.f32 %v1053, %v1057
      %s1059 = sadd.s32 %s50, 5
      %v1060 = vstv %s1059
      %vm1061 = vcmp.lt.s32.totalorder %v1060, %v74
      %v1062 = vsel %vm1061, 1, 0
      %1063 = vset.pattern.permute.xlu0 0
      %1064 = vperm.xlu0 %1063, %v1062
      %v1065 = vpop.permute.xlu0 %1064
      %vm1066 = vcmp.eq.s32.totalorder %v1065, 1
      %v1067 = vsel %vm1066, %v1058, %v939
      %1068 = vst [vmem:[#allocation10] sm:$0xff] %v1067
      %v1069 = vsel %vm1066, %v1056, %v940
      %1070 = vst [vmem:[#allocation12] sm:$0xff] %v1069
      %v1071 = vsel %vm1066, %v1058, 0.0
      %s1072 = scalar_lea.vmem [#allocation9], 40
      %1073 = vst [vmem:[%s1072] sm:$0xff] %v1071
      %v1074 = vld [vmem:[#allocation10] sm:$0xff]
      %v1075 = vld [vmem:[#allocation12] sm:$0xff]
      %s1076 = scalar_lea.vmem [#allocation4], 96
      %v1077 = vld [vmem:[%s1076] sm:$0xff]
      %v1078 = vld [vmem:[%s1076 + $0x8] sm:$0xff]
      %v1079 = vunpack.c.l.bf16 %v1077
      %v1080 = vunpack.c.h.bf16 %v1077
      %v1081 = vunpack.c.l.bf16 %v1078
      %v1082 = vunpack.c.h.bf16 %v1078
      %v1083 = vpack.c.bf16 %v1074, %v1074
      %1084 = vmatprep.subr.bf16.mxu0 %v213
      %1085 = vmatpush1.bf16.msra.mxu0 %v212
      %1086 = vmatprep.subr.bf16.mxu0 %v217
      %1087 = vmatpush1.bf16.msra.mxu0 %v216
      %1088 = vmatprep.subr.bf16.mxu0 %v221
      %1089 = vmatpush1.bf16.msra.mxu0 %v220
      %1090 = vmatprep.subr.bf16.mxu0 %v225
      %1091 = vmatpush1.bf16.msra.mxu0 %v224
      %1092 = vmatprep.subr.bf16.mxu0 %v229
      %1093 = vmatpush1.bf16.msra.mxu0 %v228
      %1094 = vmatprep.subr.bf16.mxu0 %v233
      %1095 = vmatpush1.bf16.msra.mxu0 %v232
      %1096 = vmatprep.subr.bf16.mxu0 %v237
      %1097 = vmatpush1.bf16.msra.mxu0 %v236
      %1098 = vmatprep.subr.bf16.mxu0 %v241
      %1099 = vmatpush1.bf16.msra.mxu0 %v240
      %1100 = vmatprep.subr.bf16.mxu0 0
      %1101 = vmatpush1.bf16.msra.mxu0 0
      %1102 = vmatprep.subr.bf16.mxu0 0
      %1103 = vmatpush1.bf16.msra.mxu0 0
      %1104 = vmatprep.subr.bf16.mxu0 0
      %1105 = vmatpush1.bf16.msra.mxu0 0
      %1106 = vmatprep.subr.bf16.mxu0 0
      %1107 = vmatpush1.bf16.msra.mxu0 0
      %1108 = vmatprep.subr.bf16.mxu0 0
      %1109 = vmatpush1.bf16.msra.mxu0 0
      %1110 = vmatprep.subr.bf16.mxu0 0
      %1111 = vmatpush1.bf16.msra.mxu0 0
      %1112 = vmatprep.subr.bf16.mxu0 0
      %1113 = vmatpush1.bf16.msra.mxu0 0
      %1114 = vmatprep.subr.bf16.mxu0 0
      %1115 = vmatpush1.bf16.msra.mxu0 0
      %1116 = vmatprep.mubr.bf16.mxu0 0
      %1117 = vmatmul.mubr.bf16.gmra.mrb[0].mxu0 %v1083
      %v1118 = vpop.f32.mrb[0].mxu0
      %v1119 = vadd.f32 0.0, %v1118
      %v1120 = vpop.f32.mrb[0].mxu0
      %v1121 = vadd.f32 0.0, %v1120
      %v1122 = vpop.f32.mrb[0].mxu0
      %v1123 = vpop.f32.mrb[0].mxu0
      %1124 = vdwg.mxu0
      %1125 = vmatprep.subr.bf16.mxu0 %v215
      %1126 = vmatpush1.bf16.msra.mxu0 %v214
      %1127 = vmatprep.subr.bf16.mxu0 %v219
      %1128 = vmatpush1.bf16.msra.mxu0 %v218
      %1129 = vmatprep.subr.bf16.mxu0 %v223
      %1130 = vmatpush1.bf16.msra.mxu0 %v222
      %1131 = vmatprep.subr.bf16.mxu0 %v227
      %1132 = vmatpush1.bf16.msra.mxu0 %v226
      %1133 = vmatprep.subr.bf16.mxu0 %v231
      %1134 = vmatpush1.bf16.msra.mxu0 %v230
      %1135 = vmatprep.subr.bf16.mxu0 %v235
      %1136 = vmatpush1.bf16.msra.mxu0 %v234
      %1137 = vmatprep.subr.bf16.mxu0 %v239
      %1138 = vmatpush1.bf16.msra.mxu0 %v238
      %1139 = vmatprep.subr.bf16.mxu0 %v243
      %1140 = vmatpush1.bf16.msra.mxu0 %v242
      %1141 = vmatprep.subr.bf16.mxu0 0
      %1142 = vmatpush1.bf16.msra.mxu0 0
      %1143 = vmatprep.subr.bf16.mxu0 0
      %1144 = vmatpush1.bf16.msra.mxu0 0
      %1145 = vmatprep.subr.bf16.mxu0 0
      %1146 = vmatpush1.bf16.msra.mxu0 0
      %1147 = vmatprep.subr.bf16.mxu0 0
      %1148 = vmatpush1.bf16.msra.mxu0 0
      %1149 = vmatprep.subr.bf16.mxu0 0
      %1150 = vmatpush1.bf16.msra.mxu0 0
      %1151 = vmatprep.subr.bf16.mxu0 0
      %1152 = vmatpush1.bf16.msra.mxu0 0
      %1153 = vmatprep.subr.bf16.mxu0 0
      %1154 = vmatpush1.bf16.msra.mxu0 0
      %1155 = vmatprep.subr.bf16.mxu0 0
      %1156 = vmatpush1.bf16.msra.mxu0 0
      %1157 = vmatprep.mubr.bf16.mxu0 0
      %1158 = vmatmul.mubr.bf16.gmra.mrb[0].mxu0 %v1083
      %v1159 = vpop.f32.mrb[0].mxu0
      %v1160 = vadd.f32 0.0, %v1159
      %v1161 = vpop.f32.mrb[0].mxu0
      %v1162 = vadd.f32 0.0, %v1161
      %v1163 = vpop.f32.mrb[0].mxu0
      %v1164 = vpop.f32.mrb[0].mxu0
      %1165 = vdwg.mxu0
      %v1166 = vadd.f32 %v1079, %v1119
      %v1167 = vadd.f32 %v1080, %v1121
      %v1168 = vadd.f32 %v1081, %v1160
      %v1169 = vadd.f32 %v1082, %v1162
      %v1170 = vxor.u32 %v1166, 2147483648
      %v1171 = vmul.f32 %v1170, 1.442695
      %v1172 = vpow.pop %v1171
      %v1173 = vadd.f32 %v1172, 1.0
      %v1174 = vrcp.pop %v1173
      %v1175 = vmul.f32 1.0, %v1174
      %v1176 = vxor.u32 %v1167, 2147483648
      %v1177 = vmul.f32 %v1176, 1.442695
      %v1178 = vpow.pop %v1177
      %v1179 = vadd.f32 %v1178, 1.0
      %v1180 = vrcp.pop %v1179
      %v1181 = vmul.f32 1.0, %v1180
      %v1182 = vtanh.pop %v1168
      %v1183 = vxor.u32 %v1169, 2147483648
      %v1184 = vmul.f32 %v1183, 1.442695
      %v1185 = vpow.pop %v1184
      %v1186 = vadd.f32 %v1185, 1.0
      %v1187 = vrcp.pop %v1186
      %v1188 = vmul.f32 1.0, %v1187
      %v1189 = vmul.f32 %v1181, %v1075
      %v1190 = vmul.f32 %v1175, %v1182
      %v1191 = vadd.f32 %v1189, %v1190
      %v1192 = vtanh.pop %v1191
      %v1193 = vmul.f32 %v1188, %v1192
      %s1194 = sadd.s32 %s50, 6
      %v1195 = vstv %s1194
      %vm1196 = vcmp.lt.s32.totalorder %v1195, %v74
      %v1197 = vsel %vm1196, 1, 0
      %1198 = vset.pattern.permute.xlu0 0
      %1199 = vperm.xlu0 %1198, %v1197
      %v1200 = vpop.permute.xlu0 %1199
      %vm1201 = vcmp.eq.s32.totalorder %v1200, 1
      %v1202 = vsel %vm1201, %v1193, %v1074
      %1203 = vst [vmem:[#allocation10] sm:$0xff] %v1202
      %v1204 = vsel %vm1201, %v1191, %v1075
      %1205 = vst [vmem:[#allocation12] sm:$0xff] %v1204
      %v1206 = vsel %vm1201, %v1193, 0.0
      %s1207 = scalar_lea.vmem [#allocation9], 48
      %1208 = vst [vmem:[%s1207] sm:$0xff] %v1206
      %v1209 = vld [vmem:[#allocation10] sm:$0xff]
      %v1210 = vld [vmem:[#allocation12] sm:$0xff]
      %s1211 = scalar_lea.vmem [#allocation4], 112
      %v1212 = vld [vmem:[%s1211] sm:$0xff]
      %v1213 = vld [vmem:[%s1211 + $0x8] sm:$0xff]
      %v1214 = vunpack.c.l.bf16 %v1212
      %v1215 = vunpack.c.h.bf16 %v1212
      %v1216 = vunpack.c.l.bf16 %v1213
      %v1217 = vunpack.c.h.bf16 %v1213
      %v1218 = vpack.c.bf16 %v1209, %v1209
      %1219 = vmatprep.subr.bf16.mxu0 %v213
      %1220 = vmatpush1.bf16.msra.mxu0 %v212
      %1221 = vmatprep.subr.bf16.mxu0 %v217
      %1222 = vmatpush1.bf16.msra.mxu0 %v216
      %1223 = vmatprep.subr.bf16.mxu0 %v221
      %1224 = vmatpush1.bf16.msra.mxu0 %v220
      %1225 = vmatprep.subr.bf16.mxu0 %v225
      %1226 = vmatpush1.bf16.msra.mxu0 %v224
      %1227 = vmatprep.subr.bf16.mxu0 %v229
      %1228 = vmatpush1.bf16.msra.mxu0 %v228
      %1229 = vmatprep.subr.bf16.mxu0 %v233
      %1230 = vmatpush1.bf16.msra.mxu0 %v232
      %1231 = vmatprep.subr.bf16.mxu0 %v237
      %1232 = vmatpush1.bf16.msra.mxu0 %v236
      %1233 = vmatprep.subr.bf16.mxu0 %v241
      %1234 = vmatpush1.bf16.msra.mxu0 %v240
      %1235 = vmatprep.subr.bf16.mxu0 0
      %1236 = vmatpush1.bf16.msra.mxu0 0
      %1237 = vmatprep.subr.bf16.mxu0 0
      %1238 = vmatpush1.bf16.msra.mxu0 0
      %1239 = vmatprep.subr.bf16.mxu0 0
      %1240 = vmatpush1.bf16.msra.mxu0 0
      %1241 = vmatprep.subr.bf16.mxu0 0
      %1242 = vmatpush1.bf16.msra.mxu0 0
      %1243 = vmatprep.subr.bf16.mxu0 0
      %1244 = vmatpush1.bf16.msra.mxu0 0
      %1245 = vmatprep.subr.bf16.mxu0 0
      %1246 = vmatpush1.bf16.msra.mxu0 0
      %1247 = vmatprep.subr.bf16.mxu0 0
      %1248 = vmatpush1.bf16.msra.mxu0 0
      %1249 = vmatprep.subr.bf16.mxu0 0
      %1250 = vmatpush1.bf16.msra.mxu0 0
      %1251 = vmatprep.mubr.bf16.mxu0 0
      %1252 = vmatmul.mubr.bf16.gmra.mrb[0].mxu0 %v1218
      %v1253 = vpop.f32.mrb[0].mxu0
      %v1254 = vadd.f32 0.0, %v1253
      %v1255 = vpop.f32.mrb[0].mxu0
      %v1256 = vadd.f32 0.0, %v1255
      %v1257 = vpop.f32.mrb[0].mxu0
      %v1258 = vpop.f32.mrb[0].mxu0
      %1259 = vdwg.mxu0
      %1260 = vmatprep.subr.bf16.mxu0 %v215
      %1261 = vmatpush1.bf16.msra.mxu0 %v214
      %1262 = vmatprep.subr.bf16.mxu0 %v219
      %1263 = vmatpush1.bf16.msra.mxu0 %v218
      %1264 = vmatprep.subr.bf16.mxu0 %v223
      %1265 = vmatpush1.bf16.msra.mxu0 %v222
      %1266 = vmatprep.subr.bf16.mxu0 %v227
      %1267 = vmatpush1.bf16.msra.mxu0 %v226
      %1268 = vmatprep.subr.bf16.mxu0 %v231
      %1269 = vmatpush1.bf16.msra.mxu0 %v230
      %1270 = vmatprep.subr.bf16.mxu0 %v235
      %1271 = vmatpush1.bf16.msra.mxu0 %v234
      %1272 = vmatprep.subr.bf16.mxu0 %v239
      %1273 = vmatpush1.bf16.msra.mxu0 %v238
      %1274 = vmatprep.subr.bf16.mxu0 %v243
      %1275 = vmatpush1.bf16.msra.mxu0 %v242
      %1276 = vmatprep.subr.bf16.mxu0 0
      %1277 = vmatpush1.bf16.msra.mxu0 0
      %1278 = vmatprep.subr.bf16.mxu0 0
      %1279 = vmatpush1.bf16.msra.mxu0 0
      %1280 = vmatprep.subr.bf16.mxu0 0
      %1281 = vmatpush1.bf16.msra.mxu0 0
      %1282 = vmatprep.subr.bf16.mxu0 0
      %1283 = vmatpush1.bf16.msra.mxu0 0
      %1284 = vmatprep.subr.bf16.mxu0 0
      %1285 = vmatpush1.bf16.msra.mxu0 0
      %1286 = vmatprep.subr.bf16.mxu0 0
      %1287 = vmatpush1.bf16.msra.mxu0 0
      %1288 = vmatprep.subr.bf16.mxu0 0
      %1289 = vmatpush1.bf16.msra.mxu0 0
      %1290 = vmatprep.subr.bf16.mxu0 0
      %1291 = vmatpush1.bf16.msra.mxu0 0
      %1292 = vmatprep.mubr.bf16.mxu0 0
      %1293 = vmatmul.mubr.bf16.gmra.mrb[0].mxu0 %v1218
      %v1294 = vpop.f32.mrb[0].mxu0
      %v1295 = vadd.f32 0.0, %v1294
      %v1296 = vpop.f32.mrb[0].mxu0
      %v1297 = vadd.f32 0.0, %v1296
      %v1298 = vpop.f32.mrb[0].mxu0
      %v1299 = vpop.f32.mrb[0].mxu0
      %1300 = vdwg.mxu0
      %v1301 = vadd.f32 %v1214, %v1254
      %v1302 = vadd.f32 %v1215, %v1256
      %v1303 = vadd.f32 %v1216, %v1295
      %v1304 = vadd.f32 %v1217, %v1297
      %v1305 = vxor.u32 %v1301, 2147483648
      %v1306 = vmul.f32 %v1305, 1.442695
      %v1307 = vpow.pop %v1306
      %v1308 = vadd.f32 %v1307, 1.0
      %v1309 = vrcp.pop %v1308
      %v1310 = vmul.f32 1.0, %v1309
      %v1311 = vxor.u32 %v1302, 2147483648
      %v1312 = vmul.f32 %v1311, 1.442695
      %v1313 = vpow.pop %v1312
      %v1314 = vadd.f32 %v1313, 1.0
      %v1315 = vrcp.pop %v1314
      %v1316 = vmul.f32 1.0, %v1315
      %v1317 = vtanh.pop %v1303
      %v1318 = vxor.u32 %v1304, 2147483648
      %v1319 = vmul.f32 %v1318, 1.442695
      %v1320 = vpow.pop %v1319
      %v1321 = vadd.f32 %v1320, 1.0
      %v1322 = vrcp.pop %v1321
      %v1323 = vmul.f32 1.0, %v1322
      %v1324 = vmul.f32 %v1316, %v1210
      %v1325 = vmul.f32 %v1310, %v1317
      %v1326 = vadd.f32 %v1324, %v1325
      %v1327 = vtanh.pop %v1326
      %v1328 = vmul.f32 %v1323, %v1327
      %s1329 = sadd.s32 %s50, 7
      %v1330 = vstv %s1329
      %vm1331 = vcmp.lt.s32.totalorder %v1330, %v74
      %v1332 = vsel %vm1331, 1, 0
      %1333 = vset.pattern.permute.xlu0 0
      %1334 = vperm.xlu0 %1333, %v1332
      %v1335 = vpop.permute.xlu0 %1334
      %vm1336 = vcmp.eq.s32.totalorder %v1335, 1
      %v1337 = vsel %vm1336, %v1328, %v1209
      %1338 = vst [vmem:[#allocation10] sm:$0xff] %v1337
      %v1339 = vsel %vm1336, %v1326, %v1210
      %1340 = vst [vmem:[#allocation12] sm:$0xff] %v1339
      %v1341 = vsel %vm1336, %v1328, 0.0
      %s1342 = scalar_lea.vmem [#allocation9], 56
      %1343 = vst [vmem:[%s1342] sm:$0xff] %v1341
    $region33: #{tpu_custom_call.1} parent=1 // pred_fallthru
      _
    // Predicated region
    $region34: #{tpu_custom_call.1} parent=1 // pred_check
      _
    $region35: #{tpu_custom_call.1} parent=1 // pred_check_branch
      %1345 = sbr.rel (0) target = $region37
    $region36: #{tpu_custom_call.1} parent=1 // pred_region
      %s1347 = ssub.s32 1024, 1024
      %1348 = vsyncadd [#allocation6], %s1347
      %s1349 = sshll.u32 [#allocation9], 4
      %s1350 = int_to_ptr.vmem [resolvable:$true] %s1349
      %1355 = dma.vmem_to_hbm [thread:$0]  %s1350, 1024, %s4, [#allocation6], 128, 128, 8
    $region37: #{tpu_custom_call.1} parent=1 // pred_fallthru
      _
    // Predicated region
    $region38: #{tpu_custom_call.1} parent=1 // pred_check
      _
    $region39: #{tpu_custom_call.1} parent=1 // pred_check_branch
      %1357 = sbr.rel (0) target = $region41
    $region40: #{tpu_custom_call.1} parent=1 // pred_region
      %s1359 = ssub.s32 128, 128
      %1360 = vsyncadd [#allocation11], %s1359
      %s1362 = sshll.u32 [#allocation10], 4
      %s1363 = int_to_ptr.vmem [resolvable:$true] %s1362
      %1365 = dma.vmem_to_hbm [thread:$0]  %s1363, 128, %s5, [#allocation11]
    $region41: #{tpu_custom_call.1} parent=1 // pred_fallthru
      _
    // Predicated region
    $region42: #{tpu_custom_call.1} parent=1 // pred_check
      _
    $region43: #{tpu_custom_call.1} parent=1 // pred_check_branch
      %1367 = sbr.rel (0) target = $region45
    $region44: #{tpu_custom_call.1} parent=1 // pred_region
      %s1369 = ssub.s32 128, 128
      %1370 = vsyncadd [#allocation11], %s1369
      %s1372 = sshll.u32 [#allocation12], 4
      %s1373 = int_to_ptr.vmem [resolvable:$true] %s1372
      %1375 = dma.vmem_to_hbm [thread:$0]  %s1373, 128, %s6, [#allocation11]
    $region45: #{tpu_custom_call.1} parent=1 // pred_fallthru
      _
    // Predicated region
    $region46: #{tpu_custom_call.1} parent=1 // pred_check
      _
    $region47: #{tpu_custom_call.1} parent=1 // pred_check_branch
      %1377 = sbr.rel (0) target = $region49
    $region48: #{tpu_custom_call.1} parent=1 // pred_region
      %1378 = dma.done [#allocation6], 1024
    $region49: #{tpu_custom_call.1} parent=1 // pred_fallthru
      _
    // Predicated region
    $region50: #{tpu_custom_call.1} parent=1 // pred_check
      _
    $region51: #{tpu_custom_call.1} parent=1 // pred_check_branch
      %1380 = sbr.rel (0) target = $region53
    $region52: #{tpu_custom_call.1} parent=1 // pred_region
      %1381 = dma.done [#allocation11], 128
    $region53: #{tpu_custom_call.1} parent=1 // pred_fallthru
      _
    // Predicated region
    $region54: #{tpu_custom_call.1} parent=1 // pred_check
      _
    $region55: #{tpu_custom_call.1} parent=1 // pred_check_branch
      %1383 = sbr.rel (0) target = $region57
    $region56: #{tpu_custom_call.1} parent=1 // pred_region
      %1384 = dma.done [#allocation11], 128
    $region57: #{tpu_custom_call.1} parent=1 // pred_fallthru
      _
    %1385 = vsyncpa [#allocation5], 1
    %1386 = vsyncpa [#allocation8], 1
    %1387 = vsyncpa [#allocation6], 1
    %1388 = vsyncpa [#allocation11], 1

</llo_original>
